<compile_context>
chip_gen: v7x
topology: tpu7x:2x2x1
jax: 0.10.0
libtpu: 0.0.40
codegen_flags: <defaults>
</compile_context>

<pallas_src>
import functools

import numpy as np

import jax
import jax.numpy as jnp
from jax.experimental import pallas as pl
from jax.experimental.pallas import tpu as pltpu

K = 4  # every conv in the encoder is 4x4


# -----------------------------------------------------------------------------
# The single fused encoder kernel (one grid step == one image).
# -----------------------------------------------------------------------------
def _encoder_kernel(x_ref, sel0, sel1, sel2, sel3,
                    wb1, wb2, wb3, wb4, w5, b5, wh, bh,
                    o_ref, buf1, buf2, buf3, buf4):
    f32 = jnp.float32
    bf16 = jnp.bfloat16

    def split_rows(val, sel, buf):
        # val : (2n, M) bf16 activation rows (H-major, W*C flattened minor)
        # sel : (2, n, 2n) constant 0/1 row-selection matrices (even / odd)
        # buf : (2, n+1, M) scratch holding the next conv's row-phase-split,
        #       zero-padded input:  buf[r, m, :] = val[2m + r - 1, :]
        n = sel.shape[1]
        m = val.shape[1]
        even = jnp.dot(sel[0], val, preferred_element_type=f32).astype(bf16)
        odd = jnp.dot(sel[1], val, preferred_element_type=f32).astype(bf16)
        zrow = jnp.zeros((1, m), bf16)
        buf[1, pl.ds(0, n), :] = even     # rows 0,2,4,...
        buf[1, pl.ds(n, 1), :] = zrow     # bottom padding row
        buf[0, pl.ds(0, 1), :] = zrow     # top padding row
        buf[0, pl.ds(1, n), :] = odd      # rows 1,3,5,...

    def conv_block(buf, wb):
        # buf: (2, oh+1, Win*Cin)   row-phase-split padded input
        # wb : (4, Win*Cin, ow*Cout) per-kernel-row weights with the kw taps,
        #      stride-2 column selection and width padding folded in.
        oh = buf.shape[1] - 1
        acc = jnp.zeros((oh, wb.shape[2]), f32)
        for kh in range(K):  # 4 accumulating MXU dots, K >= 256, N = 256
            slab = buf[kh % 2, pl.ds(kh // 2, oh), :]
            acc = acc + jnp.dot(slab, wb[kh], preferred_element_type=f32)
        return jnp.maximum(acc, 0.0).astype(bf16)  # bias-free conv + ReLU

    # conv1 .. conv4, all activations VMEM-resident.
    split_rows(x_ref[0], sel0, buf1)
    y = conv_block(buf1, wb1)          # (32, 32*nef)
    split_rows(y, sel1, buf2)
    y = conv_block(buf2, wb2)          # (16, 16*2nef)
    split_rows(y, sel2, buf3)
    y = conv_block(buf3, wb3)          # (8, 8*4nef)
    split_rows(y, sel3, buf4)
    y = conv_block(buf4, wb4)          # (4, 4*8nef)  == the 4x4 conv4 map

    # conv5 (4x4 valid, stride 1, bias) + ReLU + View, fused.
    acc5 = jnp.zeros((1, w5.shape[2]), f32)
    for kh in range(K):
        acc5 = acc5 + jnp.dot(y[kh:kh + 1, :], w5[kh],
                              preferred_element_type=f32)
    feat = jnp.maximum(acc5 + b5[...], 0.0).astype(bf16)   # (1, 16*nef)

    # Both Linear heads in one lane-dense matmul (padded to 128 lanes).
    heads = jnp.dot(feat, wh[...], preferred_element_type=f32) + bh[...]
    o_ref[...] = heads[None]


def _encoder_pallas(xf, enc):
    """xf: (B, H, W*nc) bf16 NHWC-flattened input; enc: prepared parameters."""
    B, H, WC = xf.shape
    n_out = enc["wh"].shape[1]

    operands = (xf, enc["sel0"], enc["sel1"], enc["sel2"], enc["sel3"],
                enc["wb1"], enc["wb2"], enc["wb3"], enc["wb4"],
                enc["w5"], enc["b5"], enc["wh"], enc["bh"])

    def const_spec(a):
        nd = a.ndim
        return pl.BlockSpec(a.shape, lambda b, _n=nd: (0,) * _n)

    in_specs = [pl.BlockSpec((1, H, WC), lambda b: (b, 0, 0))]
    in_specs += [const_spec(a) for a in operands[1:]]

    scratch = [
        pltpu.VMEM((2, H // 2 + 1, WC), jnp.bfloat16),
        pltpu.VMEM((2, H // 4 + 1, enc["wb1"].shape[2]), jnp.bfloat16),
        pltpu.VMEM((2, H // 8 + 1, enc["wb2"].shape[2]), jnp.bfloat16),
        pltpu.VMEM((2, H // 16 + 1, enc["wb3"].shape[2]), jnp.bfloat16),
    ]

    return pl.pallas_call(
        _encoder_kernel,
        grid=(B,),
        in_specs=in_specs,
        out_specs=pl.BlockSpec((1, 1, n_out), lambda b: (b, 0, 0)),
        out_shape=jax.ShapeDtypeStruct((B, 1, n_out), jnp.float32),
        scratch_shapes=scratch,
        compiler_params=pltpu.CompilerParams(
            dimension_semantics=("parallel",)),
    )(*operands)


# -----------------------------------------------------------------------------
# One-time parameter preprocessing (hoisted out of the forward path).
# -----------------------------------------------------------------------------
def init_params(key, nc, nef, nz):
    """Parameters in PyTorch layouts so trained weights can be threaded 1:1."""
    ks = jax.random.split(key, 10)

    def conv_w(k, cout, cin):
        return jax.random.normal(k, (cout, cin, K, K), jnp.float32) * 0.05

    return {
        "conv1_w": conv_w(ks[0], nef, nc),
        "conv2_w": conv_w(ks[1], nef * 2, nef),
        "conv3_w": conv_w(ks[2], nef * 4, nef * 2),
        "conv4_w": conv_w(ks[3], nef * 8, nef * 4),
        "conv5_w": conv_w(ks[4], nef * 16, nef * 8),
        "conv5_b": jax.random.normal(ks[5], (nef * 16,), jnp.float32) * 0.05,
        "fc_dist_w": jax.random.normal(ks[6], (nz * 2, nef * 16), jnp.float32) * 0.05,
        "fc_dist_b": jax.random.normal(ks[7], (nz * 2,), jnp.float32) * 0.05,
        # forward-time nn.Linear(nef*16, nz): randomly re-initialised in PyTorch
        # at every forward; supplied here as a deterministic parameter.
        "fc_feat_w": jax.random.normal(ks[8], (nz, nef * 16), jnp.float32) * 0.05,
        "fc_feat_b": jax.random.normal(ks[9], (nz,), jnp.float32) * 0.05,
    }


def prepare_encoder_params(params, *, nc, nef, nz, h=64, w=64):
    """Fold kw taps / stride-2 column selection / padding into the conv weights,
    build the row-selection matrices and the fused head matrix.  Called once."""
    assert h == 64 and w == 64, "Encoder requires 64x64 spatial input"

    def fold_conv(wt, win):
        wt = np.asarray(wt, np.float32)                   # (cout, cin, 4, 4)
        cout, cin = wt.shape[0], wt.shape[1]
        ow = win // 2
        wb = np.zeros((K, win * cin, ow * cout), np.float32)
        for kh in range(K):
            for kw in range(K):
                for j in range(ow):
                    col = 2 * j + kw - 1                  # unpadded input column
                    if 0 <= col < win:                    # pad columns dropped
                        wb[kh, col * cin:(col + 1) * cin,
                           j * cout:(j + 1) * cout] += wt[:, :, kh, kw].T
        return jnp.asarray(wb, jnp.bfloat16)

    def row_sel(rows):
        n = rows // 2
        s = np.zeros((2, n, rows), np.float32)
        s[0, np.arange(n), 2 * np.arange(n)] = 1.0        # even rows
        s[1, np.arange(n), 2 * np.arange(n) + 1] = 1.0    # odd rows
        return jnp.asarray(s, jnp.bfloat16)

    c4, c5 = nef * 8, nef * 16
    enc = {
        "sel0": row_sel(h),
        "sel1": row_sel(h // 2),
        "sel2": row_sel(h // 4),
        "sel3": row_sel(h // 8),
        "wb1": fold_conv(params["conv1_w"], w),
        "wb2": fold_conv(params["conv2_w"], w // 2),
        "wb3": fold_conv(params["conv3_w"], w // 4),
        "wb4": fold_conv(params["conv4_w"], w // 8),
    }

    # conv5 (4x4 valid, stride 1) as 4 per-row dense blocks over the 4x4 map.
    w5 = np.asarray(params["conv5_w"], np.float32)        # (c5, c4, 4, 4)
    w5m = np.zeros((K, K * c4, c5), np.float32)
    for kh in range(K):
        for kw in range(K):
            w5m[kh, kw * c4:(kw + 1) * c4, :] = w5[:, :, kh, kw].T
    enc["w5"] = jnp.asarray(w5m, jnp.bfloat16)
    enc["b5"] = jnp.asarray(np.asarray(params["conv5_b"], np.float32).reshape(1, c5))

    # Both heads concatenated, zero-padded to a lane-dense multiple of 128.
    n_heads = 3 * nz
    n_pad = ((n_heads + 127) // 128) * 128
    whm = np.zeros((c5, n_pad), np.float32)
    whm[:, :2 * nz] = np.asarray(params["fc_dist_w"], np.float32).T
    whm[:, 2 * nz:3 * nz] = np.asarray(params["fc_feat_w"], np.float32).T
    bhm = np.zeros((1, n_pad), np.float32)
    bhm[0, :2 * nz] = np.asarray(params["fc_dist_b"], np.float32)
    bhm[0, 2 * nz:3 * nz] = np.asarray(params["fc_feat_b"], np.float32)
    enc["wh"] = jnp.asarray(whm, jnp.bfloat16)
    enc["bh"] = jnp.asarray(bhm)
    return enc


# -----------------------------------------------------------------------------
# Forward wrapper (minimal per-forward XLA work: one transpose + output slice).
# -----------------------------------------------------------------------------
def encoder_forward(x_nchw, enc, *, nz):
    B, nc, H, W = x_nchw.shape
    xf = jnp.transpose(x_nchw, (0, 2, 3, 1)).reshape(B, H, W * nc).astype(jnp.bfloat16)
    out = _encoder_pallas(xf, enc).reshape(B, -1)
    distributions = out[:, :2 * nz]
    out_feature = out[:, 2 * nz:3 * nz]
    return distributions, out_feature


# -----------------------------------------------------------------------------
# Pure-JAX reference (mirrors the kernel's bf16/f32 numerics) for validation.
# -----------------------------------------------------------------------------
def reference_forward(x_nchw, params):
    def conv(a, wt, stride, pad):
        return jax.lax.conv_general_dilated(
            a, jnp.transpose(wt, (2, 3, 1, 0)).astype(jnp.bfloat16),
            window_strides=(stride, stride),
            padding=[(pad, pad), (pad, pad)],
            dimension_numbers=("NHWC", "HWIO", "NHWC"),
            preferred_element_type=jnp.float32)

    a = jnp.transpose(x_nchw, (0, 2, 3, 1)).astype(jnp.bfloat16)
    for name in ("conv1_w", "conv2_w", "conv3_w", "conv4_w"):
        a = jnp.maximum(conv(a, params[name], 2, 1), 0.0).astype(jnp.bfloat16)
    a = jnp.maximum(conv(a, params["conv5_w"], 1, 0) + params["conv5_b"], 0.0)
    feat = a.reshape(a.shape[0], -1).astype(jnp.bfloat16)
    dist = (jnp.dot(feat, params["fc_dist_w"].T.astype(jnp.bfloat16),
                    preferred_element_type=jnp.float32) + params["fc_dist_b"])
    out_feature = (jnp.dot(feat, params["fc_feat_w"].T.astype(jnp.bfloat16),
                           preferred_element_type=jnp.float32) + params["fc_feat_b"])
    return dist, out_feature


if __name__ == "__main__":
    # Small config: spatial must be 64 (four stride-2 convs then a 4x4 valid
    # conv -> 1x1 feature map, as required by View((-1, nef*16))).
    B, NC, NEF, NZ, S = 2, 4, 8, 16, 64

    key = jax.random.PRNGKey(0)
    kx, kp = jax.random.split(key)
    x = jax.random.normal(kx, (B, NC, S, S), jnp.float32)

    params = init_params(kp, NC, NEF, NZ)
    enc = prepare_encoder_params(params, nc=NC, nef=NEF, nz=NZ, h=S, w=S)

    fwd = jax.jit(functools.partial(encoder_forward, nz=NZ))
    distributions, out_feature = fwd(x, enc)
    jax.block_until_ready((distributions, out_feature))

    assert distributions.shape == (B, NZ * 2), distributions.shape
    assert out_feature.shape == (B, NZ), out_feature.shape

    ref_dist, ref_feat = reference_forward(x, params)
    np.testing.assert_allclose(np.asarray(distributions), np.asarray(ref_dist),
                               rtol=2e-2, atol=2e-3)
    np.testing.assert_allclose(np.asarray(out_feature), np.asarray(ref_feat),
                               rtol=2e-2, atol=2e-3)
    print("KERNEL_OK")
</pallas_src>

<mosaic_0001>
module attributes {stable_mosaic.version = 11 : i64} {
  func.func @_encoder_kernel(%arg0: i32, %arg1: memref<1x64x256xbf16, #tpu.memory_space<vmem>>, %arg2: memref<2x32x64xbf16, #tpu.memory_space<vmem>>, %arg3: memref<2x16x32xbf16, #tpu.memory_space<vmem>>, %arg4: memref<2x8x16xbf16, #tpu.memory_space<vmem>>, %arg5: memref<2x4x8xbf16, #tpu.memory_space<vmem>>, %arg6: memref<4x256x256xbf16, #tpu.memory_space<vmem>>, %arg7: memref<4x256x256xbf16, #tpu.memory_space<vmem>>, %arg8: memref<4x256x256xbf16, #tpu.memory_space<vmem>>, %arg9: memref<4x256x256xbf16, #tpu.memory_space<vmem>>, %arg10: memref<4x256x128xbf16, #tpu.memory_space<vmem>>, %arg11: memref<1x128xf32, #tpu.memory_space<vmem>>, %arg12: memref<128x128xbf16, #tpu.memory_space<vmem>>, %arg13: memref<1x128xf32, #tpu.memory_space<vmem>>, %arg14: memref<1x1x128xf32, #tpu.memory_space<vmem>>, %arg15: memref<2x33x256xbf16, #tpu.memory_space<vmem>>, %arg16: memref<2x17x256xbf16, #tpu.memory_space<vmem>>, %arg17: memref<2x9x256xbf16, #tpu.memory_space<vmem>>, %arg18: memref<2x5x256xbf16, #tpu.memory_space<vmem>>) attributes {dimension_semantics = [#tpu.dimension_semantics<parallel>], iteration_bounds = array<i64: 2>, scalar_prefetch = 0 : i64, scratch_operands = 4 : i64, tpu.core_type = #tpu.core_type<tc>, window_params = [{transform_indices = @transform_0, window_bounds = array<i64: 1, 64, 256>}, {pipeline_mode = #tpu.pipeline_mode<synchronous>, transform_indices = @transform_1, window_bounds = array<i64: 2, 32, 64>}, {pipeline_mode = #tpu.pipeline_mode<synchronous>, transform_indices = @transform_2, window_bounds = array<i64: 2, 16, 32>}, {pipeline_mode = #tpu.pipeline_mode<synchronous>, transform_indices = @transform_3, window_bounds = array<i64: 2, 8, 16>}, {pipeline_mode = #tpu.pipeline_mode<synchronous>, transform_indices = @transform_4, window_bounds = array<i64: 2, 4, 8>}, {pipeline_mode = #tpu.pipeline_mode<synchronous>, transform_indices = @transform_5, window_bounds = array<i64: 4, 256, 256>}, {pipeline_mode = #tpu.pipeline_mode<synchronous>, transform_indices = @transform_6, window_bounds = array<i64: 4, 256, 256>}, {pipeline_mode = #tpu.pipeline_mode<synchronous>, transform_indices = @transform_7, window_bounds = array<i64: 4, 256, 256>}, {pipeline_mode = #tpu.pipeline_mode<synchronous>, transform_indices = @transform_8, window_bounds = array<i64: 4, 256, 256>}, {pipeline_mode = #tpu.pipeline_mode<synchronous>, transform_indices = @transform_9, window_bounds = array<i64: 4, 256, 128>}, {pipeline_mode = #tpu.pipeline_mode<synchronous>, transform_indices = @transform_10, window_bounds = array<i64: 1, 128>}, {pipeline_mode = #tpu.pipeline_mode<synchronous>, transform_indices = @transform_11, window_bounds = array<i64: 128, 128>}, {pipeline_mode = #tpu.pipeline_mode<synchronous>, transform_indices = @transform_12, window_bounds = array<i64: 1, 128>}, {transform_indices = @transform_13, window_bounds = array<i64: 1, 1, 128>}]} {
    %c0 = arith.constant 0 : index
    %c0_0 = arith.constant 0 : index
    %c0_1 = arith.constant 0 : index
    %0 = vector.load %arg1[%c0, %c0_0, %c0_1] : memref<1x64x256xbf16, #tpu.memory_space<vmem>>, vector<1x64x256xbf16>
    %1 = vector.shape_cast %0 : vector<1x64x256xbf16> to vector<64x256xbf16>
    %c0_2 = arith.constant 0 : index
    %c0_3 = arith.constant 0 : index
    %c0_4 = arith.constant 0 : index
    %2 = vector.load %arg2[%c0_2, %c0_3, %c0_4] : memref<2x32x64xbf16, #tpu.memory_space<vmem>>, vector<1x32x64xbf16>
    %3 = vector.shape_cast %2 : vector<1x32x64xbf16> to vector<32x64xbf16>
    %cst = arith.constant dense<0.000000e+00> : vector<32x256xf32>
    %4 = tpu.matmul %3, %1, %cst {dimension_numbers = #tpu.dot_dimension_numbers<[1], [0], [0], [1], [0, 0, 1, 1], [], []>} : vector<32x64xbf16>, vector<64x256xbf16>, vector<32x256xf32> -> vector<32x256xf32>
    %5 = arith.truncf %4 : vector<32x256xf32> to vector<32x256xbf16>
    %c1 = arith.constant 1 : index
    %c0_5 = arith.constant 0 : index
    %c0_6 = arith.constant 0 : index
    %6 = vector.load %arg2[%c1, %c0_5, %c0_6] : memref<2x32x64xbf16, #tpu.memory_space<vmem>>, vector<1x32x64xbf16>
    %7 = vector.shape_cast %6 : vector<1x32x64xbf16> to vector<32x64xbf16>
    %cst_7 = arith.constant dense<0.000000e+00> : vector<32x256xf32>
    %8 = tpu.matmul %7, %1, %cst_7 {dimension_numbers = #tpu.dot_dimension_numbers<[1], [0], [0], [1], [0, 0, 1, 1], [], []>} : vector<32x64xbf16>, vector<64x256xbf16>, vector<32x256xf32> -> vector<32x256xf32>
    %9 = arith.truncf %8 : vector<32x256xf32> to vector<32x256xbf16>
    %cst_8 = arith.constant 0.000000e+00 : bf16
    %10 = vector.broadcast %cst_8 : bf16 to vector<1x256xbf16>
    %c1_9 = arith.constant 1 : index
    %c0_10 = arith.constant 0 : index
    %c0_11 = arith.constant 0 : index
    %11 = vector.load %arg15[%c1_9, %c0_10, %c0_11] : memref<2x33x256xbf16, #tpu.memory_space<vmem>>, vector<1x32x256xbf16>
    %12 = vector.shape_cast %11 : vector<1x32x256xbf16> to vector<32x256xbf16>
    %13 = vector.shape_cast %5 : vector<32x256xbf16> to vector<1x32x256xbf16>
    tpu.vector_store %arg15[%c1_9, %c0_10, %c0_11], %13 {strides = array<i32>} : memref<2x33x256xbf16, #tpu.memory_space<vmem>>, vector<1x32x256xbf16>,
    %c1_12 = arith.constant 1 : index
    %c32 = arith.constant 32 : index
    %c0_13 = arith.constant 0 : index
    %14 = vector.load %arg15[%c1_12, %c32, %c0_13] : memref<2x33x256xbf16, #tpu.memory_space<vmem>>, vector<1x1x256xbf16>
    %15 = vector.shape_cast %14 : vector<1x1x256xbf16> to vector<1x256xbf16>
    %16 = vector.shape_cast %10 : vector<1x256xbf16> to vector<1x1x256xbf16>
    tpu.vector_store %arg15[%c1_12, %c32, %c0_13], %16 {strides = array<i32>} : memref<2x33x256xbf16, #tpu.memory_space<vmem>>, vector<1x1x256xbf16>,
    %c0_14 = arith.constant 0 : index
    %c0_15 = arith.constant 0 : index
    %c0_16 = arith.constant 0 : index
    %17 = vector.load %arg15[%c0_14, %c0_15, %c0_16] : memref<2x33x256xbf16, #tpu.memory_space<vmem>>, vector<1x1x256xbf16>
    %18 = vector.shape_cast %17 : vector<1x1x256xbf16> to vector<1x256xbf16>
    %19 = vector.shape_cast %10 : vector<1x256xbf16> to vector<1x1x256xbf16>
    tpu.vector_store %arg15[%c0_14, %c0_15, %c0_16], %19 {strides = array<i32>} : memref<2x33x256xbf16, #tpu.memory_space<vmem>>, vector<1x1x256xbf16>,
    %c0_17 = arith.constant 0 : index
    %c1_18 = arith.constant 1 : index
    %c0_19 = arith.constant 0 : index
    %20 = vector.load %arg15[%c0_17, %c1_18, %c0_19] : memref<2x33x256xbf16, #tpu.memory_space<vmem>>, vector<1x32x256xbf16>
    %21 = vector.shape_cast %20 : vector<1x32x256xbf16> to vector<32x256xbf16>
    %22 = vector.shape_cast %9 : vector<32x256xbf16> to vector<1x32x256xbf16>
    tpu.vector_store %arg15[%c0_17, %c1_18, %c0_19], %22 {strides = array<i32>} : memref<2x33x256xbf16, #tpu.memory_space<vmem>>, vector<1x32x256xbf16>,
    %cst_20 = arith.constant 0.000000e+00 : f32
    %23 = vector.broadcast %cst_20 : f32 to vector<32x256xf32>
    %c0_21 = arith.constant 0 : index
    %c0_22 = arith.constant 0 : index
    %c0_23 = arith.constant 0 : index
    %24 = vector.load %arg15[%c0_21, %c0_22, %c0_23] : memref<2x33x256xbf16, #tpu.memory_space<vmem>>, vector<1x32x256xbf16>
    %25 = vector.shape_cast %24 : vector<1x32x256xbf16> to vector<32x256xbf16>
    %c0_24 = arith.constant 0 : index
    %c0_25 = arith.constant 0 : index
    %c0_26 = arith.constant 0 : index
    %26 = vector.load %arg6[%c0_24, %c0_25, %c0_26] : memref<4x256x256xbf16, #tpu.memory_space<vmem>>, vector<1x256x256xbf16>
    %27 = vector.shape_cast %26 : vector<1x256x256xbf16> to vector<256x256xbf16>
    %cst_27 = arith.constant dense<0.000000e+00> : vector<32x256xf32>
    %28 = tpu.matmul %25, %27, %cst_27 {dimension_numbers = #tpu.dot_dimension_numbers<[1], [0], [0], [1], [0, 0, 1, 1], [], []>} : vector<32x256xbf16>, vector<256x256xbf16>, vector<32x256xf32> -> vector<32x256xf32>
    %29 = arith.addf %23, %28 : vector<32x256xf32>
    %c1_28 = arith.constant 1 : index
    %c0_29 = arith.constant 0 : index
    %c0_30 = arith.constant 0 : index
    %30 = vector.load %arg15[%c1_28, %c0_29, %c0_30] : memref<2x33x256xbf16, #tpu.memory_space<vmem>>, vector<1x32x256xbf16>
    %31 = vector.shape_cast %30 : vector<1x32x256xbf16> to vector<32x256xbf16>
    %c1_31 = arith.constant 1 : index
    %c0_32 = arith.constant 0 : index
    %c0_33 = arith.constant 0 : index
    %32 = vector.load %arg6[%c1_31, %c0_32, %c0_33] : memref<4x256x256xbf16, #tpu.memory_space<vmem>>, vector<1x256x256xbf16>
    %33 = vector.shape_cast %32 : vector<1x256x256xbf16> to vector<256x256xbf16>
    %cst_34 = arith.constant dense<0.000000e+00> : vector<32x256xf32>
    %34 = tpu.matmul %31, %33, %cst_34 {dimension_numbers = #tpu.dot_dimension_numbers<[1], [0], [0], [1], [0, 0, 1, 1], [], []>} : vector<32x256xbf16>, vector<256x256xbf16>, vector<32x256xf32> -> vector<32x256xf32>
    %35 = arith.addf %29, %34 : vector<32x256xf32>
    %c0_35 = arith.constant 0 : index
    %c1_36 = arith.constant 1 : index
    %c0_37 = arith.constant 0 : index
    %36 = vector.load %arg15[%c0_35, %c1_36, %c0_37] : memref<2x33x256xbf16, #tpu.memory_space<vmem>>, vector<1x32x256xbf16>
    %37 = vector.shape_cast %36 : vector<1x32x256xbf16> to vector<32x256xbf16>
    %c2 = arith.constant 2 : index
    %c0_38 = arith.constant 0 : index
    %c0_39 = arith.constant 0 : index
    %38 = vector.load %arg6[%c2, %c0_38, %c0_39] : memref<4x256x256xbf16, #tpu.memory_space<vmem>>, vector<1x256x256xbf16>
    %39 = vector.shape_cast %38 : vector<1x256x256xbf16> to vector<256x256xbf16>
    %cst_40 = arith.constant dense<0.000000e+00> : vector<32x256xf32>
    %40 = tpu.matmul %37, %39, %cst_40 {dimension_numbers = #tpu.dot_dimension_numbers<[1], [0], [0], [1], [0, 0, 1, 1], [], []>} : vector<32x256xbf16>, vector<256x256xbf16>, vector<32x256xf32> -> vector<32x256xf32>
    %41 = arith.addf %35, %40 : vector<32x256xf32>
    %c1_41 = arith.constant 1 : index
    %c1_42 = arith.constant 1 : index
    %c0_43 = arith.constant 0 : index
    %42 = vector.load %arg15[%c1_41, %c1_42, %c0_43] : memref<2x33x256xbf16, #tpu.memory_space<vmem>>, vector<1x32x256xbf16>
    %43 = vector.shape_cast %42 : vector<1x32x256xbf16> to vector<32x256xbf16>
    %c3 = arith.constant 3 : index
    %c0_44 = arith.constant 0 : index
    %c0_45 = arith.constant 0 : index
    %44 = vector.load %arg6[%c3, %c0_44, %c0_45] : memref<4x256x256xbf16, #tpu.memory_space<vmem>>, vector<1x256x256xbf16>
    %45 = vector.shape_cast %44 : vector<1x256x256xbf16> to vector<256x256xbf16>
    %cst_46 = arith.constant dense<0.000000e+00> : vector<32x256xf32>
    %46 = tpu.matmul %43, %45, %cst_46 {dimension_numbers = #tpu.dot_dimension_numbers<[1], [0], [0], [1], [0, 0, 1, 1], [], []>} : vector<32x256xbf16>, vector<256x256xbf16>, vector<32x256xf32> -> vector<32x256xf32>
    %47 = arith.addf %41, %46 : vector<32x256xf32>
    %cst_47 = arith.constant 0.000000e+00 : f32
    %48 = vector.broadcast %cst_47 : f32 to vector<32x256xf32>
    %49 = arith.maximumf %47, %48 : vector<32x256xf32>
    %50 = arith.truncf %49 : vector<32x256xf32> to vector<32x256xbf16>
    %c0_48 = arith.constant 0 : index
    %c0_49 = arith.constant 0 : index
    %c0_50 = arith.constant 0 : index
    %51 = vector.load %arg3[%c0_48, %c0_49, %c0_50] : memref<2x16x32xbf16, #tpu.memory_space<vmem>>, vector<1x16x32xbf16>
    %52 = vector.shape_cast %51 : vector<1x16x32xbf16> to vector<16x32xbf16>
    %cst_51 = arith.constant dense<0.000000e+00> : vector<16x256xf32>
    %53 = tpu.matmul %52, %50, %cst_51 {dimension_numbers = #tpu.dot_dimension_numbers<[1], [0], [0], [1], [0, 0, 1, 1], [], []>} : vector<16x32xbf16>, vector<32x256xbf16>, vector<16x256xf32> -> vector<16x256xf32>
    %54 = arith.truncf %53 : vector<16x256xf32> to vector<16x256xbf16>
    %c1_52 = arith.constant 1 : index
    %c0_53 = arith.constant 0 : index
    %c0_54 = arith.constant 0 : index
    %55 = vector.load %arg3[%c1_52, %c0_53, %c0_54] : memref<2x16x32xbf16, #tpu.memory_space<vmem>>, vector<1x16x32xbf16>
    %56 = vector.shape_cast %55 : vector<1x16x32xbf16> to vector<16x32xbf16>
    %cst_55 = arith.constant dense<0.000000e+00> : vector<16x256xf32>
    %57 = tpu.matmul %56, %50, %cst_55 {dimension_numbers = #tpu.dot_dimension_numbers<[1], [0], [0], [1], [0, 0, 1, 1], [], []>} : vector<16x32xbf16>, vector<32x256xbf16>, vector<16x256xf32> -> vector<16x256xf32>
    %58 = arith.truncf %57 : vector<16x256xf32> to vector<16x256xbf16>
    %cst_56 = arith.constant 0.000000e+00 : bf16
    %59 = vector.broadcast %cst_56 : bf16 to vector<1x256xbf16>
    %c1_57 = arith.constant 1 : index
    %c0_58 = arith.constant 0 : index
    %c0_59 = arith.constant 0 : index
    %60 = vector.load %arg16[%c1_57, %c0_58, %c0_59] : memref<2x17x256xbf16, #tpu.memory_space<vmem>>, vector<1x16x256xbf16>
    %61 = vector.shape_cast %60 : vector<1x16x256xbf16> to vector<16x256xbf16>
    %62 = vector.shape_cast %54 : vector<16x256xbf16> to vector<1x16x256xbf16>
    tpu.vector_store %arg16[%c1_57, %c0_58, %c0_59], %62 {strides = array<i32>} : memref<2x17x256xbf16, #tpu.memory_space<vmem>>, vector<1x16x256xbf16>,
    %c1_60 = arith.constant 1 : index
    %c16 = arith.constant 16 : index
    %c0_61 = arith.constant 0 : index
    %63 = vector.load %arg16[%c1_60, %c16, %c0_61] : memref<2x17x256xbf16, #tpu.memory_space<vmem>>, vector<1x1x256xbf16>
    %64 = vector.shape_cast %63 : vector<1x1x256xbf16> to vector<1x256xbf16>
    %65 = vector.shape_cast %59 : vector<1x256xbf16> to vector<1x1x256xbf16>
    tpu.vector_store %arg16[%c1_60, %c16, %c0_61], %65 {strides = array<i32>} : memref<2x17x256xbf16, #tpu.memory_space<vmem>>, vector<1x1x256xbf16>,
    %c0_62 = arith.constant 0 : index
    %c0_63 = arith.constant 0 : index
    %c0_64 = arith.constant 0 : index
    %66 = vector.load %arg16[%c0_62, %c0_63, %c0_64] : memref<2x17x256xbf16, #tpu.memory_space<vmem>>, vector<1x1x256xbf16>
    %67 = vector.shape_cast %66 : vector<1x1x256xbf16> to vector<1x256xbf16>
    %68 = vector.shape_cast %59 : vector<1x256xbf16> to vector<1x1x256xbf16>
    tpu.vector_store %arg16[%c0_62, %c0_63, %c0_64], %68 {strides = array<i32>} : memref<2x17x256xbf16, #tpu.memory_space<vmem>>, vector<1x1x256xbf16>,
    %c0_65 = arith.constant 0 : index
    %c1_66 = arith.constant 1 : index
    %c0_67 = arith.constant 0 : index
    %69 = vector.load %arg16[%c0_65, %c1_66, %c0_67] : memref<2x17x256xbf16, #tpu.memory_space<vmem>>, vector<1x16x256xbf16>
    %70 = vector.shape_cast %69 : vector<1x16x256xbf16> to vector<16x256xbf16>
    %71 = vector.shape_cast %58 : vector<16x256xbf16> to vector<1x16x256xbf16>
    tpu.vector_store %arg16[%c0_65, %c1_66, %c0_67], %71 {strides = array<i32>} : memref<2x17x256xbf16, #tpu.memory_space<vmem>>, vector<1x16x256xbf16>,
    %cst_68 = arith.constant 0.000000e+00 : f32
    %72 = vector.broadcast %cst_68 : f32 to vector<16x256xf32>
    %c0_69 = arith.constant 0 : index
    %c0_70 = arith.constant 0 : index
    %c0_71 = arith.constant 0 : index
    %73 = vector.load %arg16[%c0_69, %c0_70, %c0_71] : memref<2x17x256xbf16, #tpu.memory_space<vmem>>, vector<1x16x256xbf16>
    %74 = vector.shape_cast %73 : vector<1x16x256xbf16> to vector<16x256xbf16>
    %c0_72 = arith.constant 0 : index
    %c0_73 = arith.constant 0 : index
    %c0_74 = arith.constant 0 : index
    %75 = vector.load %arg7[%c0_72, %c0_73, %c0_74] : memref<4x256x256xbf16, #tpu.memory_space<vmem>>, vector<1x256x256xbf16>
    %76 = vector.shape_cast %75 : vector<1x256x256xbf16> to vector<256x256xbf16>
    %cst_75 = arith.constant dense<0.000000e+00> : vector<16x256xf32>
    %77 = tpu.matmul %74, %76, %cst_75 {dimension_numbers = #tpu.dot_dimension_numbers<[1], [0], [0], [1], [0, 0, 1, 1], [], []>} : vector<16x256xbf16>, vector<256x256xbf16>, vector<16x256xf32> -> vector<16x256xf32>
    %78 = arith.addf %72, %77 : vector<16x256xf32>
    %c1_76 = arith.constant 1 : index
    %c0_77 = arith.constant 0 : index
    %c0_78 = arith.constant 0 : index
    %79 = vector.load %arg16[%c1_76, %c0_77, %c0_78] : memref<2x17x256xbf16, #tpu.memory_space<vmem>>, vector<1x16x256xbf16>
    %80 = vector.shape_cast %79 : vector<1x16x256xbf16> to vector<16x256xbf16>
    %c1_79 = arith.constant 1 : index
    %c0_80 = arith.constant 0 : index
    %c0_81 = arith.constant 0 : index
    %81 = vector.load %arg7[%c1_79, %c0_80, %c0_81] : memref<4x256x256xbf16, #tpu.memory_space<vmem>>, vector<1x256x256xbf16>
    %82 = vector.shape_cast %81 : vector<1x256x256xbf16> to vector<256x256xbf16>
    %cst_82 = arith.constant dense<0.000000e+00> : vector<16x256xf32>
    %83 = tpu.matmul %80, %82, %cst_82 {dimension_numbers = #tpu.dot_dimension_numbers<[1], [0], [0], [1], [0, 0, 1, 1], [], []>} : vector<16x256xbf16>, vector<256x256xbf16>, vector<16x256xf32> -> vector<16x256xf32>
    %84 = arith.addf %78, %83 : vector<16x256xf32>
    %c0_83 = arith.constant 0 : index
    %c1_84 = arith.constant 1 : index
    %c0_85 = arith.constant 0 : index
    %85 = vector.load %arg16[%c0_83, %c1_84, %c0_85] : memref<2x17x256xbf16, #tpu.memory_space<vmem>>, vector<1x16x256xbf16>
    %86 = vector.shape_cast %85 : vector<1x16x256xbf16> to vector<16x256xbf16>
    %c2_86 = arith.constant 2 : index
    %c0_87 = arith.constant 0 : index
    %c0_88 = arith.constant 0 : index
    %87 = vector.load %arg7[%c2_86, %c0_87, %c0_88] : memref<4x256x256xbf16, #tpu.memory_space<vmem>>, vector<1x256x256xbf16>
    %88 = vector.shape_cast %87 : vector<1x256x256xbf16> to vector<256x256xbf16>
    %cst_89 = arith.constant dense<0.000000e+00> : vector<16x256xf32>
    %89 = tpu.matmul %86, %88, %cst_89 {dimension_numbers = #tpu.dot_dimension_numbers<[1], [0], [0], [1], [0, 0, 1, 1], [], []>} : vector<16x256xbf16>, vector<256x256xbf16>, vector<16x256xf32> -> vector<16x256xf32>
    %90 = arith.addf %84, %89 : vector<16x256xf32>
    %c1_90 = arith.constant 1 : index
    %c1_91 = arith.constant 1 : index
    %c0_92 = arith.constant 0 : index
    %91 = vector.load %arg16[%c1_90, %c1_91, %c0_92] : memref<2x17x256xbf16, #tpu.memory_space<vmem>>, vector<1x16x256xbf16>
    %92 = vector.shape_cast %91 : vector<1x16x256xbf16> to vector<16x256xbf16>
    %c3_93 = arith.constant 3 : index
    %c0_94 = arith.constant 0 : index
    %c0_95 = arith.constant 0 : index
    %93 = vector.load %arg7[%c3_93, %c0_94, %c0_95] : memref<4x256x256xbf16, #tpu.memory_space<vmem>>, vector<1x256x256xbf16>
    %94 = vector.shape_cast %93 : vector<1x256x256xbf16> to vector<256x256xbf16>
    %cst_96 = arith.constant dense<0.000000e+00> : vector<16x256xf32>
    %95 = tpu.matmul %92, %94, %cst_96 {dimension_numbers = #tpu.dot_dimension_numbers<[1], [0], [0], [1], [0, 0, 1, 1], [], []>} : vector<16x256xbf16>, vector<256x256xbf16>, vector<16x256xf32> -> vector<16x256xf32>
    %96 = arith.addf %90, %95 : vector<16x256xf32>
    %cst_97 = arith.constant 0.000000e+00 : f32
    %97 = vector.broadcast %cst_97 : f32 to vector<16x256xf32>
    %98 = arith.maximumf %96, %97 : vector<16x256xf32>
    %99 = arith.truncf %98 : vector<16x256xf32> to vector<16x256xbf16>
    %c0_98 = arith.constant 0 : index
    %c0_99 = arith.constant 0 : index
    %c0_100 = arith.constant 0 : index
    %100 = vector.load %arg4[%c0_98, %c0_99, %c0_100] : memref<2x8x16xbf16, #tpu.memory_space<vmem>>, vector<1x8x16xbf16>
    %101 = vector.shape_cast %100 : vector<1x8x16xbf16> to vector<8x16xbf16>
    %cst_101 = arith.constant dense<0.000000e+00> : vector<8x256xf32>
    %102 = tpu.matmul %101, %99, %cst_101 {dimension_numbers = #tpu.dot_dimension_numbers<[1], [0], [0], [1], [0, 0, 1, 1], [], []>} : vector<8x16xbf16>, vector<16x256xbf16>, vector<8x256xf32> -> vector<8x256xf32>
    %103 = arith.truncf %102 : vector<8x256xf32> to vector<8x256xbf16>
    %c1_102 = arith.constant 1 : index
    %c0_103 = arith.constant 0 : index
    %c0_104 = arith.constant 0 : index
    %104 = vector.load %arg4[%c1_102, %c0_103, %c0_104] : memref<2x8x16xbf16, #tpu.memory_space<vmem>>, vector<1x8x16xbf16>
    %105 = vector.shape_cast %104 : vector<1x8x16xbf16> to vector<8x16xbf16>
    %cst_105 = arith.constant dense<0.000000e+00> : vector<8x256xf32>
    %106 = tpu.matmul %105, %99, %cst_105 {dimension_numbers = #tpu.dot_dimension_numbers<[1], [0], [0], [1], [0, 0, 1, 1], [], []>} : vector<8x16xbf16>, vector<16x256xbf16>, vector<8x256xf32> -> vector<8x256xf32>
    %107 = arith.truncf %106 : vector<8x256xf32> to vector<8x256xbf16>
    %cst_106 = arith.constant 0.000000e+00 : bf16
    %108 = vector.broadcast %cst_106 : bf16 to vector<1x256xbf16>
    %c1_107 = arith.constant 1 : index
    %c0_108 = arith.constant 0 : index
    %c0_109 = arith.constant 0 : index
    %109 = vector.load %arg17[%c1_107, %c0_108, %c0_109] : memref<2x9x256xbf16, #tpu.memory_space<vmem>>, vector<1x8x256xbf16>
    %110 = vector.shape_cast %109 : vector<1x8x256xbf16> to vector<8x256xbf16>
    %111 = vector.shape_cast %103 : vector<8x256xbf16> to vector<1x8x256xbf16>
    tpu.vector_store %arg17[%c1_107, %c0_108, %c0_109], %111 {strides = array<i32>} : memref<2x9x256xbf16, #tpu.memory_space<vmem>>, vector<1x8x256xbf16>,
    %c1_110 = arith.constant 1 : index
    %c8 = arith.constant 8 : index
    %c0_111 = arith.constant 0 : index
    %112 = vector.load %arg17[%c1_110, %c8, %c0_111] : memref<2x9x256xbf16, #tpu.memory_space<vmem>>, vector<1x1x256xbf16>
    %113 = vector.shape_cast %112 : vector<1x1x256xbf16> to vector<1x256xbf16>
    %114 = vector.shape_cast %108 : vector<1x256xbf16> to vector<1x1x256xbf16>
    tpu.vector_store %arg17[%c1_110, %c8, %c0_111], %114 {strides = array<i32>} : memref<2x9x256xbf16, #tpu.memory_space<vmem>>, vector<1x1x256xbf16>,
    %c0_112 = arith.constant 0 : index
    %c0_113 = arith.constant 0 : index
    %c0_114 = arith.constant 0 : index
    %115 = vector.load %arg17[%c0_112, %c0_113, %c0_114] : memref<2x9x256xbf16, #tpu.memory_space<vmem>>, vector<1x1x256xbf16>
    %116 = vector.shape_cast %115 : vector<1x1x256xbf16> to vector<1x256xbf16>
    %117 = vector.shape_cast %108 : vector<1x256xbf16> to vector<1x1x256xbf16>
    tpu.vector_store %arg17[%c0_112, %c0_113, %c0_114], %117 {strides = array<i32>} : memref<2x9x256xbf16, #tpu.memory_space<vmem>>, vector<1x1x256xbf16>,
    %c0_115 = arith.constant 0 : index
    %c1_116 = arith.constant 1 : index
    %c0_117 = arith.constant 0 : index
    %118 = vector.load %arg17[%c0_115, %c1_116, %c0_117] : memref<2x9x256xbf16, #tpu.memory_space<vmem>>, vector<1x8x256xbf16>
    %119 = vector.shape_cast %118 : vector<1x8x256xbf16> to vector<8x256xbf16>
    %120 = vector.shape_cast %107 : vector<8x256xbf16> to vector<1x8x256xbf16>
    tpu.vector_store %arg17[%c0_115, %c1_116, %c0_117], %120 {strides = array<i32>} : memref<2x9x256xbf16, #tpu.memory_space<vmem>>, vector<1x8x256xbf16>,
    %cst_118 = arith.constant 0.000000e+00 : f32
    %121 = vector.broadcast %cst_118 : f32 to vector<8x256xf32>
    %c0_119 = arith.constant 0 : index
    %c0_120 = arith.constant 0 : index
    %c0_121 = arith.constant 0 : index
    %122 = vector.load %arg17[%c0_119, %c0_120, %c0_121] : memref<2x9x256xbf16, #tpu.memory_space<vmem>>, vector<1x8x256xbf16>
    %123 = vector.shape_cast %122 : vector<1x8x256xbf16> to vector<8x256xbf16>
    %c0_122 = arith.constant 0 : index
    %c0_123 = arith.constant 0 : index
    %c0_124 = arith.constant 0 : index
    %124 = vector.load %arg8[%c0_122, %c0_123, %c0_124] : memref<4x256x256xbf16, #tpu.memory_space<vmem>>, vector<1x256x256xbf16>
    %125 = vector.shape_cast %124 : vector<1x256x256xbf16> to vector<256x256xbf16>
    %cst_125 = arith.constant dense<0.000000e+00> : vector<8x256xf32>
    %126 = tpu.matmul %123, %125, %cst_125 {dimension_numbers = #tpu.dot_dimension_numbers<[1], [0], [0], [1], [0, 0, 1, 1], [], []>} : vector<8x256xbf16>, vector<256x256xbf16>, vector<8x256xf32> -> vector<8x256xf32>
    %127 = arith.addf %121, %126 : vector<8x256xf32>
    %c1_126 = arith.constant 1 : index
    %c0_127 = arith.constant 0 : index
    %c0_128 = arith.constant 0 : index
    %128 = vector.load %arg17[%c1_126, %c0_127, %c0_128] : memref<2x9x256xbf16, #tpu.memory_space<vmem>>, vector<1x8x256xbf16>
    %129 = vector.shape_cast %128 : vector<1x8x256xbf16> to vector<8x256xbf16>
    %c1_129 = arith.constant 1 : index
    %c0_130 = arith.constant 0 : index
    %c0_131 = arith.constant 0 : index
    %130 = vector.load %arg8[%c1_129, %c0_130, %c0_131] : memref<4x256x256xbf16, #tpu.memory_space<vmem>>, vector<1x256x256xbf16>
    %131 = vector.shape_cast %130 : vector<1x256x256xbf16> to vector<256x256xbf16>
    %cst_132 = arith.constant dense<0.000000e+00> : vector<8x256xf32>
    %132 = tpu.matmul %129, %131, %cst_132 {dimension_numbers = #tpu.dot_dimension_numbers<[1], [0], [0], [1], [0, 0, 1, 1], [], []>} : vector<8x256xbf16>, vector<256x256xbf16>, vector<8x256xf32> -> vector<8x256xf32>
    %133 = arith.addf %127, %132 : vector<8x256xf32>
    %c0_133 = arith.constant 0 : index
    %c1_134 = arith.constant 1 : index
    %c0_135 = arith.constant 0 : index
    %134 = vector.load %arg17[%c0_133, %c1_134, %c0_135] : memref<2x9x256xbf16, #tpu.memory_space<vmem>>, vector<1x8x256xbf16>
    %135 = vector.shape_cast %134 : vector<1x8x256xbf16> to vector<8x256xbf16>
    %c2_136 = arith.constant 2 : index
    %c0_137 = arith.constant 0 : index
    %c0_138 = arith.constant 0 : index
    %136 = vector.load %arg8[%c2_136, %c0_137, %c0_138] : memref<4x256x256xbf16, #tpu.memory_space<vmem>>, vector<1x256x256xbf16>
    %137 = vector.shape_cast %136 : vector<1x256x256xbf16> to vector<256x256xbf16>
    %cst_139 = arith.constant dense<0.000000e+00> : vector<8x256xf32>
    %138 = tpu.matmul %135, %137, %cst_139 {dimension_numbers = #tpu.dot_dimension_numbers<[1], [0], [0], [1], [0, 0, 1, 1], [], []>} : vector<8x256xbf16>, vector<256x256xbf16>, vector<8x256xf32> -> vector<8x256xf32>
    %139 = arith.addf %133, %138 : vector<8x256xf32>
    %c1_140 = arith.constant 1 : index
    %c1_141 = arith.constant 1 : index
    %c0_142 = arith.constant 0 : index
    %140 = vector.load %arg17[%c1_140, %c1_141, %c0_142] : memref<2x9x256xbf16, #tpu.memory_space<vmem>>, vector<1x8x256xbf16>
    %141 = vector.shape_cast %140 : vector<1x8x256xbf16> to vector<8x256xbf16>
    %c3_143 = arith.constant 3 : index
    %c0_144 = arith.constant 0 : index
    %c0_145 = arith.constant 0 : index
    %142 = vector.load %arg8[%c3_143, %c0_144, %c0_145] : memref<4x256x256xbf16, #tpu.memory_space<vmem>>, vector<1x256x256xbf16>
    %143 = vector.shape_cast %142 : vector<1x256x256xbf16> to vector<256x256xbf16>
    %cst_146 = arith.constant dense<0.000000e+00> : vector<8x256xf32>
    %144 = tpu.matmul %141, %143, %cst_146 {dimension_numbers = #tpu.dot_dimension_numbers<[1], [0], [0], [1], [0, 0, 1, 1], [], []>} : vector<8x256xbf16>, vector<256x256xbf16>, vector<8x256xf32> -> vector<8x256xf32>
    %145 = arith.addf %139, %144 : vector<8x256xf32>
    %cst_147 = arith.constant 0.000000e+00 : f32
    %146 = vector.broadcast %cst_147 : f32 to vector<8x256xf32>
    %147 = arith.maximumf %145, %146 : vector<8x256xf32>
    %148 = arith.truncf %147 : vector<8x256xf32> to vector<8x256xbf16>
    %c0_148 = arith.constant 0 : index
    %c0_149 = arith.constant 0 : index
    %c0_150 = arith.constant 0 : index
    %149 = vector.load %arg5[%c0_148, %c0_149, %c0_150] : memref<2x4x8xbf16, #tpu.memory_space<vmem>>, vector<1x4x8xbf16>
    %150 = vector.shape_cast %149 : vector<1x4x8xbf16> to vector<4x8xbf16>
    %cst_151 = arith.constant dense<0.000000e+00> : vector<4x256xf32>
    %151 = tpu.matmul %150, %148, %cst_151 {dimension_numbers = #tpu.dot_dimension_numbers<[1], [0], [0], [1], [0, 0, 1, 1], [], []>} : vector<4x8xbf16>, vector<8x256xbf16>, vector<4x256xf32> -> vector<4x256xf32>
    %152 = arith.truncf %151 : vector<4x256xf32> to vector<4x256xbf16>
    %c1_152 = arith.constant 1 : index
    %c0_153 = arith.constant 0 : index
    %c0_154 = arith.constant 0 : index
    %153 = vector.load %arg5[%c1_152, %c0_153, %c0_154] : memref<2x4x8xbf16, #tpu.memory_space<vmem>>, vector<1x4x8xbf16>
    %154 = vector.shape_cast %153 : vector<1x4x8xbf16> to vector<4x8xbf16>
    %cst_155 = arith.constant dense<0.000000e+00> : vector<4x256xf32>
    %155 = tpu.matmul %154, %148, %cst_155 {dimension_numbers = #tpu.dot_dimension_numbers<[1], [0], [0], [1], [0, 0, 1, 1], [], []>} : vector<4x8xbf16>, vector<8x256xbf16>, vector<4x256xf32> -> vector<4x256xf32>
    %156 = arith.truncf %155 : vector<4x256xf32> to vector<4x256xbf16>
    %cst_156 = arith.constant 0.000000e+00 : bf16
    %157 = vector.broadcast %cst_156 : bf16 to vector<1x256xbf16>
    %c1_157 = arith.constant 1 : index
    %c0_158 = arith.constant 0 : index
    %c0_159 = arith.constant 0 : index
    %158 = vector.load %arg18[%c1_157, %c0_158, %c0_159] : memref<2x5x256xbf16, #tpu.memory_space<vmem>>, vector<1x4x256xbf16>
    %159 = vector.shape_cast %158 : vector<1x4x256xbf16> to vector<4x256xbf16>
    %160 = vector.shape_cast %152 : vector<4x256xbf16> to vector<1x4x256xbf16>
    tpu.vector_store %arg18[%c1_157, %c0_158, %c0_159], %160 {strides = array<i32>} : memref<2x5x256xbf16, #tpu.memory_space<vmem>>, vector<1x4x256xbf16>,
    %c1_160 = arith.constant 1 : index
    %c4 = arith.constant 4 : index
    %c0_161 = arith.constant 0 : index
    %161 = vector.load %arg18[%c1_160, %c4, %c0_161] : memref<2x5x256xbf16, #tpu.memory_space<vmem>>, vector<1x1x256xbf16>
    %162 = vector.shape_cast %161 : vector<1x1x256xbf16> to vector<1x256xbf16>
    %163 = vector.shape_cast %157 : vector<1x256xbf16> to vector<1x1x256xbf16>
    tpu.vector_store %arg18[%c1_160, %c4, %c0_161], %163 {strides = array<i32>} : memref<2x5x256xbf16, #tpu.memory_space<vmem>>, vector<1x1x256xbf16>,
    %c0_162 = arith.constant 0 : index
    %c0_163 = arith.constant 0 : index
    %c0_164 = arith.constant 0 : index
    %164 = vector.load %arg18[%c0_162, %c0_163, %c0_164] : memref<2x5x256xbf16, #tpu.memory_space<vmem>>, vector<1x1x256xbf16>
    %165 = vector.shape_cast %164 : vector<1x1x256xbf16> to vector<1x256xbf16>
    %166 = vector.shape_cast %157 : vector<1x256xbf16> to vector<1x1x256xbf16>
    tpu.vector_store %arg18[%c0_162, %c0_163, %c0_164], %166 {strides = array<i32>} : memref<2x5x256xbf16, #tpu.memory_space<vmem>>, vector<1x1x256xbf16>,
    %c0_165 = arith.constant 0 : index
    %c1_166 = arith.constant 1 : index
    %c0_167 = arith.constant 0 : index
    %167 = vector.load %arg18[%c0_165, %c1_166, %c0_167] : memref<2x5x256xbf16, #tpu.memory_space<vmem>>, vector<1x4x256xbf16>
    %168 = vector.shape_cast %167 : vector<1x4x256xbf16> to vector<4x256xbf16>
    %169 = vector.shape_cast %156 : vector<4x256xbf16> to vector<1x4x256xbf16>
    tpu.vector_store %arg18[%c0_165, %c1_166, %c0_167], %169 {strides = array<i32>} : memref<2x5x256xbf16, #tpu.memory_space<vmem>>, vector<1x4x256xbf16>,
    %cst_168 = arith.constant 0.000000e+00 : f32
    %170 = vector.broadcast %cst_168 : f32 to vector<4x256xf32>
    %c0_169 = arith.constant 0 : index
    %c0_170 = arith.constant 0 : index
    %c0_171 = arith.constant 0 : index
    %171 = vector.load %arg18[%c0_169, %c0_170, %c0_171] : memref<2x5x256xbf16, #tpu.memory_space<vmem>>, vector<1x4x256xbf16>
    %172 = vector.shape_cast %171 : vector<1x4x256xbf16> to vector<4x256xbf16>
    %c0_172 = arith.constant 0 : index
    %c0_173 = arith.constant 0 : index
    %c0_174 = arith.constant 0 : index
    %173 = vector.load %arg9[%c0_172, %c0_173, %c0_174] : memref<4x256x256xbf16, #tpu.memory_space<vmem>>, vector<1x256x256xbf16>
    %174 = vector.shape_cast %173 : vector<1x256x256xbf16> to vector<256x256xbf16>
    %cst_175 = arith.constant dense<0.000000e+00> : vector<4x256xf32>
    %175 = tpu.matmul %172, %174, %cst_175 {dimension_numbers = #tpu.dot_dimension_numbers<[1], [0], [0], [1], [0, 0, 1, 1], [], []>} : vector<4x256xbf16>, vector<256x256xbf16>, vector<4x256xf32> -> vector<4x256xf32>
    %176 = arith.addf %170, %175 : vector<4x256xf32>
    %c1_176 = arith.constant 1 : index
    %c0_177 = arith.constant 0 : index
    %c0_178 = arith.constant 0 : index
    %177 = vector.load %arg18[%c1_176, %c0_177, %c0_178] : memref<2x5x256xbf16, #tpu.memory_space<vmem>>, vector<1x4x256xbf16>
    %178 = vector.shape_cast %177 : vector<1x4x256xbf16> to vector<4x256xbf16>
    %c1_179 = arith.constant 1 : index
    %c0_180 = arith.constant 0 : index
    %c0_181 = arith.constant 0 : index
    %179 = vector.load %arg9[%c1_179, %c0_180, %c0_181] : memref<4x256x256xbf16, #tpu.memory_space<vmem>>, vector<1x256x256xbf16>
    %180 = vector.shape_cast %179 : vector<1x256x256xbf16> to vector<256x256xbf16>
    %cst_182 = arith.constant dense<0.000000e+00> : vector<4x256xf32>
    %181 = tpu.matmul %178, %180, %cst_182 {dimension_numbers = #tpu.dot_dimension_numbers<[1], [0], [0], [1], [0, 0, 1, 1], [], []>} : vector<4x256xbf16>, vector<256x256xbf16>, vector<4x256xf32> -> vector<4x256xf32>
    %182 = arith.addf %176, %181 : vector<4x256xf32>
    %c0_183 = arith.constant 0 : index
    %c1_184 = arith.constant 1 : index
    %c0_185 = arith.constant 0 : index
    %183 = vector.load %arg18[%c0_183, %c1_184, %c0_185] : memref<2x5x256xbf16, #tpu.memory_space<vmem>>, vector<1x4x256xbf16>
    %184 = vector.shape_cast %183 : vector<1x4x256xbf16> to vector<4x256xbf16>
    %c2_186 = arith.constant 2 : index
    %c0_187 = arith.constant 0 : index
    %c0_188 = arith.constant 0 : index
    %185 = vector.load %arg9[%c2_186, %c0_187, %c0_188] : memref<4x256x256xbf16, #tpu.memory_space<vmem>>, vector<1x256x256xbf16>
    %186 = vector.shape_cast %185 : vector<1x256x256xbf16> to vector<256x256xbf16>
    %cst_189 = arith.constant dense<0.000000e+00> : vector<4x256xf32>
    %187 = tpu.matmul %184, %186, %cst_189 {dimension_numbers = #tpu.dot_dimension_numbers<[1], [0], [0], [1], [0, 0, 1, 1], [], []>} : vector<4x256xbf16>, vector<256x256xbf16>, vector<4x256xf32> -> vector<4x256xf32>
    %188 = arith.addf %182, %187 : vector<4x256xf32>
    %c1_190 = arith.constant 1 : index
    %c1_191 = arith.constant 1 : index
    %c0_192 = arith.constant 0 : index
    %189 = vector.load %arg18[%c1_190, %c1_191, %c0_192] : memref<2x5x256xbf16, #tpu.memory_space<vmem>>, vector<1x4x256xbf16>
    %190 = vector.shape_cast %189 : vector<1x4x256xbf16> to vector<4x256xbf16>
    %c3_193 = arith.constant 3 : index
    %c0_194 = arith.constant 0 : index
    %c0_195 = arith.constant 0 : index
    %191 = vector.load %arg9[%c3_193, %c0_194, %c0_195] : memref<4x256x256xbf16, #tpu.memory_space<vmem>>, vector<1x256x256xbf16>
    %192 = vector.shape_cast %191 : vector<1x256x256xbf16> to vector<256x256xbf16>
    %cst_196 = arith.constant dense<0.000000e+00> : vector<4x256xf32>
    %193 = tpu.matmul %190, %192, %cst_196 {dimension_numbers = #tpu.dot_dimension_numbers<[1], [0], [0], [1], [0, 0, 1, 1], [], []>} : vector<4x256xbf16>, vector<256x256xbf16>, vector<4x256xf32> -> vector<4x256xf32>
    %194 = arith.addf %188, %193 : vector<4x256xf32>
    %cst_197 = arith.constant 0.000000e+00 : f32
    %195 = vector.broadcast %cst_197 : f32 to vector<4x256xf32>
    %196 = arith.maximumf %194, %195 : vector<4x256xf32>
    %197 = arith.truncf %196 : vector<4x256xf32> to vector<4x256xbf16>
    %cst_198 = arith.constant 0.000000e+00 : f32
    %198 = vector.broadcast %cst_198 : f32 to vector<1x128xf32>
    %199 = vector.extract_strided_slice %197 {offsets = [0, 0], sizes = [1, 256], strides = [1, 1]} : vector<4x256xbf16> to vector<1x256xbf16>
    %c0_199 = arith.constant 0 : index
    %c0_200 = arith.constant 0 : index
    %c0_201 = arith.constant 0 : index
    %200 = vector.load %arg10[%c0_199, %c0_200, %c0_201] : memref<4x256x128xbf16, #tpu.memory_space<vmem>>, vector<1x256x128xbf16>
    %201 = vector.shape_cast %200 : vector<1x256x128xbf16> to vector<256x128xbf16>
    %cst_202 = arith.constant dense<0.000000e+00> : vector<1x128xf32>
    %202 = tpu.matmul %199, %201, %cst_202 {dimension_numbers = #tpu.dot_dimension_numbers<[1], [0], [0], [1], [0, 0, 1, 1], [], []>} : vector<1x256xbf16>, vector<256x128xbf16>, vector<1x128xf32> -> vector<1x128xf32>
    %203 = arith.addf %198, %202 : vector<1x128xf32>
    %204 = vector.extract_strided_slice %197 {offsets = [1, 0], sizes = [1, 256], strides = [1, 1]} : vector<4x256xbf16> to vector<1x256xbf16>
    %c1_203 = arith.constant 1 : index
    %c0_204 = arith.constant 0 : index
    %c0_205 = arith.constant 0 : index
    %205 = vector.load %arg10[%c1_203, %c0_204, %c0_205] : memref<4x256x128xbf16, #tpu.memory_space<vmem>>, vector<1x256x128xbf16>
    %206 = vector.shape_cast %205 : vector<1x256x128xbf16> to vector<256x128xbf16>
    %cst_206 = arith.constant dense<0.000000e+00> : vector<1x128xf32>
    %207 = tpu.matmul %204, %206, %cst_206 {dimension_numbers = #tpu.dot_dimension_numbers<[1], [0], [0], [1], [0, 0, 1, 1], [], []>} : vector<1x256xbf16>, vector<256x128xbf16>, vector<1x128xf32> -> vector<1x128xf32>
    %208 = arith.addf %203, %207 : vector<1x128xf32>
    %209 = vector.extract_strided_slice %197 {offsets = [2, 0], sizes = [1, 256], strides = [1, 1]} : vector<4x256xbf16> to vector<1x256xbf16>
    %c2_207 = arith.constant 2 : index
    %c0_208 = arith.constant 0 : index
    %c0_209 = arith.constant 0 : index
    %210 = vector.load %arg10[%c2_207, %c0_208, %c0_209] : memref<4x256x128xbf16, #tpu.memory_space<vmem>>, vector<1x256x128xbf16>
    %211 = vector.shape_cast %210 : vector<1x256x128xbf16> to vector<256x128xbf16>
    %cst_210 = arith.constant dense<0.000000e+00> : vector<1x128xf32>
    %212 = tpu.matmul %209, %211, %cst_210 {dimension_numbers = #tpu.dot_dimension_numbers<[1], [0], [0], [1], [0, 0, 1, 1], [], []>} : vector<1x256xbf16>, vector<256x128xbf16>, vector<1x128xf32> -> vector<1x128xf32>
    %213 = arith.addf %208, %212 : vector<1x128xf32>
    %214 = vector.extract_strided_slice %197 {offsets = [3, 0], sizes = [1, 256], strides = [1, 1]} : vector<4x256xbf16> to vector<1x256xbf16>
    %c3_211 = arith.constant 3 : index
    %c0_212 = arith.constant 0 : index
    %c0_213 = arith.constant 0 : index
    %215 = vector.load %arg10[%c3_211, %c0_212, %c0_213] : memref<4x256x128xbf16, #tpu.memory_space<vmem>>, vector<1x256x128xbf16>
    %216 = vector.shape_cast %215 : vector<1x256x128xbf16> to vector<256x128xbf16>
    %cst_214 = arith.constant dense<0.000000e+00> : vector<1x128xf32>
    %217 = tpu.matmul %214, %216, %cst_214 {dimension_numbers = #tpu.dot_dimension_numbers<[1], [0], [0], [1], [0, 0, 1, 1], [], []>} : vector<1x256xbf16>, vector<256x128xbf16>, vector<1x128xf32> -> vector<1x128xf32>
    %218 = arith.addf %213, %217 : vector<1x128xf32>
    %c0_215 = arith.constant 0 : index
    %c0_216 = arith.constant 0 : index
    %219 = vector.load %arg11[%c0_215, %c0_216] : memref<1x128xf32, #tpu.memory_space<vmem>>, vector<1x128xf32>
    %220 = arith.addf %218, %219 : vector<1x128xf32>
    %cst_217 = arith.constant 0.000000e+00 : f32
    %221 = vector.broadcast %cst_217 : f32 to vector<1x128xf32>
    %222 = arith.maximumf %220, %221 : vector<1x128xf32>
    %223 = arith.truncf %222 : vector<1x128xf32> to vector<1x128xbf16>
    %c0_218 = arith.constant 0 : index
    %c0_219 = arith.constant 0 : index
    %224 = vector.load %arg12[%c0_218, %c0_219] : memref<128x128xbf16, #tpu.memory_space<vmem>>, vector<128x128xbf16>
    %cst_220 = arith.constant dense<0.000000e+00> : vector<1x128xf32>
    %225 = tpu.matmul %223, %224, %cst_220 {dimension_numbers = #tpu.dot_dimension_numbers<[1], [0], [0], [1], [0, 0, 1, 1], [], []>} : vector<1x128xbf16>, vector<128x128xbf16>, vector<1x128xf32> -> vector<1x128xf32>
    %c0_221 = arith.constant 0 : index
    %c0_222 = arith.constant 0 : index
    %226 = vector.load %arg13[%c0_221, %c0_222] : memref<1x128xf32, #tpu.memory_space<vmem>>, vector<1x128xf32>
    %227 = arith.addf %225, %226 : vector<1x128xf32>
    %228 = vector.shape_cast %227 : vector<1x128xf32> to vector<1x1x128xf32>
    %c0_223 = arith.constant 0 : index
    %c0_224 = arith.constant 0 : index
    %c0_225 = arith.constant 0 : index
    %229 = vector.load %arg14[%c0_223, %c0_224, %c0_225] : memref<1x1x128xf32, #tpu.memory_space<vmem>>, vector<1x1x128xf32>
    tpu.vector_store %arg14[%c0_223, %c0_224, %c0_225], %228 {strides = array<i32>} : memref<1x1x128xf32, #tpu.memory_space<vmem>>, vector<1x1x128xf32>,
    return
  }
  func.func @transform_0(%arg0: i32) -> (i32, i32, i32) {
    %c0_i32 = arith.constant 0 : i32
    %c0_i32_0 = arith.constant 0 : i32
    %c0_i32_1 = arith.constant 0 : i32
    return %arg0, %c0_i32, %c0_i32_0 : i32, i32, i32
  }
  func.func @transform_1(%arg0: i32) -> (i32, i32, i32) {
    %c0_i32 = arith.constant 0 : i32
    %c0_i32_0 = arith.constant 0 : i32
    %c0_i32_1 = arith.constant 0 : i32
    %c0_i32_2 = arith.constant 0 : i32
    return %c0_i32, %c0_i32_0, %c0_i32_1 : i32, i32, i32
  }
  func.func @transform_2(%arg0: i32) -> (i32, i32, i32) {
    %c0_i32 = arith.constant 0 : i32
    %c0_i32_0 = arith.constant 0 : i32
    %c0_i32_1 = arith.constant 0 : i32
    %c0_i32_2 = arith.constant 0 : i32
    return %c0_i32, %c0_i32_0, %c0_i32_1 : i32, i32, i32
  }
  func.func @transform_3(%arg0: i32) -> (i32, i32, i32) {
    %c0_i32 = arith.constant 0 : i32
    %c0_i32_0 = arith.constant 0 : i32
    %c0_i32_1 = arith.constant 0 : i32
    %c0_i32_2 = arith.constant 0 : i32
    return %c0_i32, %c0_i32_0, %c0_i32_1 : i32, i32, i32
  }
  func.func @transform_4(%arg0: i32) -> (i32, i32, i32) {
    %c0_i32 = arith.constant 0 : i32
    %c0_i32_0 = arith.constant 0 : i32
    %c0_i32_1 = arith.constant 0 : i32
    %c0_i32_2 = arith.constant 0 : i32
    return %c0_i32, %c0_i32_0, %c0_i32_1 : i32, i32, i32
  }
  func.func @transform_5(%arg0: i32) -> (i32, i32, i32) {
    %c0_i32 = arith.constant 0 : i32
    %c0_i32_0 = arith.constant 0 : i32
    %c0_i32_1 = arith.constant 0 : i32
    %c0_i32_2 = arith.constant 0 : i32
    return %c0_i32, %c0_i32_0, %c0_i32_1 : i32, i32, i32
  }
  func.func @transform_6(%arg0: i32) -> (i32, i32, i32) {
    %c0_i32 = arith.constant 0 : i32
    %c0_i32_0 = arith.constant 0 : i32
    %c0_i32_1 = arith.constant 0 : i32
    %c0_i32_2 = arith.constant 0 : i32
    return %c0_i32, %c0_i32_0, %c0_i32_1 : i32, i32, i32
  }
  func.func @transform_7(%arg0: i32) -> (i32, i32, i32) {
    %c0_i32 = arith.constant 0 : i32
    %c0_i32_0 = arith.constant 0 : i32
    %c0_i32_1 = arith.constant 0 : i32
    %c0_i32_2 = arith.constant 0 : i32
    return %c0_i32, %c0_i32_0, %c0_i32_1 : i32, i32, i32
  }
  func.func @transform_8(%arg0: i32) -> (i32, i32, i32) {
    %c0_i32 = arith.constant 0 : i32
    %c0_i32_0 = arith.constant 0 : i32
    %c0_i32_1 = arith.constant 0 : i32
    %c0_i32_2 = arith.constant 0 : i32
    return %c0_i32, %c0_i32_0, %c0_i32_1 : i32, i32, i32
  }
  func.func @transform_9(%arg0: i32) -> (i32, i32, i32) {
    %c0_i32 = arith.constant 0 : i32
    %c0_i32_0 = arith.constant 0 : i32
    %c0_i32_1 = arith.constant 0 : i32
    %c0_i32_2 = arith.constant 0 : i32
    return %c0_i32, %c0_i32_0, %c0_i32_1 : i32, i32, i32
  }
  func.func @transform_10(%arg0: i32) -> (i32, i32) {
    %c0_i32 = arith.constant 0 : i32
    %c0_i32_0 = arith.constant 0 : i32
    %c0_i32_1 = arith.constant 0 : i32
    return %c0_i32, %c0_i32_0 : i32, i32
  }
  func.func @transform_11(%arg0: i32) -> (i32, i32) {
    %c0_i32 = arith.constant 0 : i32
    %c0_i32_0 = arith.constant 0 : i32
    %c0_i32_1 = arith.constant 0 : i32
    return %c0_i32, %c0_i32_0 : i32, i32
  }
  func.func @transform_12(%arg0: i32) -> (i32, i32) {
    %c0_i32 = arith.constant 0 : i32
    %c0_i32_0 = arith.constant 0 : i32
    %c0_i32_1 = arith.constant 0 : i32
    return %c0_i32, %c0_i32_0 : i32, i32
  }
  func.func @transform_13(%arg0: i32) -> (i32, i32, i32) {
    %c0_i32 = arith.constant 0 : i32
    %c0_i32_0 = arith.constant 0 : i32
    %c0_i32_1 = arith.constant 0 : i32
    return %arg0, %c0_i32, %c0_i32_0 : i32, i32, i32
  }
}

</mosaic_0001>

<llo_original>
// kernel: encoder_forward.1
$region0: #{encoder_forward.1}
  #allocation0 [shape = 'u32[]', space=smem, size = 0x4, offset = 0x4, fixed_abs, tag = 'smem constant byte address 0x4 - core index']
  #allocation1 [shape = 'u32[144,128]{1,0:T(1,128)}', space=vmem, size = 0x12000, scoped, tag = 'internal scratch']
  #allocation2 [shape = 'bf16[2,33,256]{2,1,0:T(8,128)(2,1)}', space=vmem, size = 0xa000, scoped, tag = 'scratch operand']
  #allocation3 [shape = 'bf16[2,17,256]{2,1,0:T(8,128)(2,1)}', space=vmem, size = 0x6000, scoped, tag = 'scratch operand']
  #allocation4 [shape = 'bf16[2,9,256]{2,1,0:T(8,128)(2,1)}', space=vmem, size = 0x4000, scoped, tag = 'scratch operand']
  #allocation5 [shape = 'bf16[2,5,256]{2,1,0:T(8,128)(2,1)}', space=vmem, size = 0x2000, scoped, tag = 'scratch operand']
  %s0 = inlined_call_operand.vmem [shape: bf16[2,64,256], index: 0, kind: input, shape index: {}]
  %s1 = inlined_call_operand.vmem [shape: bf16[2,32,64], index: 1, kind: input, shape index: {}]
  %s2 = inlined_call_operand.vmem [shape: bf16[2,16,32], index: 2, kind: input, shape index: {}]
  %s3 = inlined_call_operand.vmem [shape: bf16[2,8,16], index: 3, kind: input, shape index: {}]
  %s4 = inlined_call_operand.vmem [shape: bf16[2,4,8], index: 4, kind: input, shape index: {}]
  %s5 = inlined_call_operand.vmem [shape: bf16[4,256,256], index: 5, kind: input, shape index: {}]
  %s6 = inlined_call_operand.hbm [shape: bf16[4,256,256], index: 6, kind: input, shape index: {}]
  %s7 = inlined_call_operand.hbm [shape: bf16[4,256,256], index: 7, kind: input, shape index: {}]
  %s8 = inlined_call_operand.hbm [shape: bf16[4,256,256], index: 8, kind: input, shape index: {}]
  %s9 = inlined_call_operand.vmem [shape: bf16[4,256,128], index: 9, kind: input, shape index: {}]
  %s10 = inlined_call_operand.vmem [shape: f32[1,128], index: 10, kind: input, shape index: {}]
  %s11 = inlined_call_operand.vmem [shape: bf16[128,128], index: 11, kind: input, shape index: {}]
  %s12 = inlined_call_operand.vmem [shape: f32[1,128], index: 12, kind: input, shape index: {}]
  %s13 = inlined_call_operand.vmem [shape: f32[2,1,128], index: 13, kind: output, shape index: {}]
  %s14 = sld [smem:[#allocation0]]
  $region97: #{encoder_forward.1} parent=0
    _
  %s16 = ssub.s32 1, %s14
  %s17 = scalar_select 0, %s16, %s14
  $region1: #{encoder_forward.1} parent=0
    #allocation6 [shape = 'u8[524288]{0}', space=vmem, size = 0x80000, scoped, tag = 'input window, operand 6, single buffered']
    #allocation7 [shape = 's32[2]{0}', space=sflag, size = 0x8, scoped, tag = 'scoped memory for encoder_forward.1']
    #allocation8 [shape = 'u8[524288]{0}', space=vmem, size = 0x80000, scoped, tag = 'input window, operand 7, single buffered']
    #allocation9 [shape = 's32[1]{0}', space=sflag, size = 0x4, scoped, tag = 'scoped memory for encoder_forward.1']
    #allocation10 [shape = 'u8[524288]{0}', space=vmem, size = 0x80000, scoped, tag = 'input window, operand 8, single buffered']
    %18 = vsyncpa [#allocation7], 0
    %19 = vsyncpa [#allocation9], 0
    loop: start=0, step=1, limit=4
    $region2: #{encoder_forward.1} parent=1 // loop_pre_header
      _
    $region3: #{encoder_forward.1} parent=1 // loop_header
      %s21 = sphi 0, %s25
      %p22 = scmp.ge.s32.totalorder %s21, 4
      %s31 = sphi 0, %s33
      %s34 = sphi 0, %s31
      %s35 = sphi 0, %s34
      %s51 = sphi 0, %s35
      %s55 = sphi 0, %s55
      %s57 = sphi 0, %s55
      %s58 = sphi 0, %s57
      %s72 = sphi 0, %s58
      %s76 = sphi 0, %s76
      %s78 = sphi 0, %s76
      %s79 = sphi 0, %s78
      %s93 = sphi 0, %s79
      %s97 = sphi 0, %s97
      %s99 = sphi 0, %s97
      %s100 = sphi 0, %s99
      %s114 = sphi 0, %s100
      %s118 = sphi 0, %s118
      %s120 = sphi 0, %s118
      %s121 = sphi 0, %s120
      %s135 = sphi 0, %s121
      %s139 = sphi 0, %s139
      %s141 = sphi 0, %s139
      %s142 = sphi 0, %s141
      %s156 = sphi 0, %s142
      %s160 = sphi 0, %s160
      %s162 = sphi 0, %s160
      %s163 = sphi 0, %s162
      %s177 = sphi 0, %s163
      %s181 = sphi 0, %s181
      %s183 = sphi 0, %s181
      %s184 = sphi 0, %s183
      %s198 = sphi 0, %s184
      %s202 = sphi 0, %s202
      %s204 = sphi 0, %s202
      %s205 = sphi 0, %s204
      %s219 = sphi 0, %s205
      %s223 = sphi 0, %s223
      %s225 = sphi 0, %s223
      %s226 = sphi 0, %s225
      %s240 = sphi 0, %s226
      %s244 = sphi 0, %s244
      %s246 = sphi 0, %s244
      %s247 = sphi 0, %s246
      %s261 = sphi 0, %s247
      %s265 = sphi 0, %s265
      %s267 = sphi 0, %s265
      %s268 = sphi 0, %s267
      %s282 = sphi 0, %s268
      %s286 = sphi 0, %s286
      %s288 = sphi 0, %s286
      %s289 = sphi 0, %s288
      %s303 = sphi 0, %s289
      %s309 = sphi 0, %s311
      %s312 = sphi 0, %s309
      %s313 = sphi 0, %s312
      %s329 = sphi 0, %s313
    $region4: #{encoder_forward.1} parent=1 // loop_header_branch
      %24 = sbr.rel (%p22) target = $region8
    $region5: #{encoder_forward.1} parent=1 // loop_body
      %s26 = ssub.s32 %s21, 1
      %s27 = ssub.s32 %s21, 2
      %s28 = sadd.s32 %s21, 1
      %s29 = ssub.s32 %s21, %s28
      %p30 = scmp.eq.s32.totalorder %s29, 0
      %s32 = sadd.s32 %s31, 1
      %s33 = scalar_select %p30, %s31, %s32
      %p36 = pneg %p30
      %p37 = scmp.eq.s32.totalorder %s21, 1
      %p38 = por %p36, %p37
      %p39 = scmp.ne.s32.totalorder %s31, %s34
      %p40 = scmp.eq.s32.totalorder %s21, 0
      %p41 = por %p39, %p40
      %p42 = scmp.ne.s32.totalorder %s31, %s34
      %p43 = scmp.eq.s32.totalorder %s26, 1
      %p44 = por %p42, %p43
      %p45 = scmp.ne.s32.totalorder %s34, %s35
      %p46 = scmp.eq.s32.totalorder %s26, 0
      %p47 = por %p45, %p46
      %p48 = scmp.ne.s32.totalorder %s34, %s35
      %p49 = scmp.eq.s32.totalorder %s27, 1
      %p50 = por %p48, %p49
      %p52 = scmp.ne.s32.totalorder %s35, %s51
      %p53 = scmp.eq.s32.totalorder %s27, 0
      %p54 = por %p52, %p53
      %s56 = sadd.s32 %s55, 1
      %p59 = scmp.eq.s32.totalorder %s21, 1
      %p60 = scmp.ne.s32.totalorder %s55, %s57
      %p61 = scmp.eq.s32.totalorder %s21, 0
      %p62 = por %p60, %p61
      %p63 = scmp.ne.s32.totalorder %s55, %s57
      %p64 = scmp.eq.s32.totalorder %s26, 1
      %p65 = por %p63, %p64
      %p66 = scmp.ne.s32.totalorder %s57, %s58
      %p67 = scmp.eq.s32.totalorder %s26, 0
      %p68 = por %p66, %p67
      %p69 = scmp.ne.s32.totalorder %s57, %s58
      %p70 = scmp.eq.s32.totalorder %s27, 1
      %p71 = por %p69, %p70
      %p73 = scmp.ne.s32.totalorder %s58, %s72
      %p74 = scmp.eq.s32.totalorder %s27, 0
      %p75 = por %p73, %p74
      %s77 = sadd.s32 %s76, 1
      %p80 = scmp.eq.s32.totalorder %s21, 1
      %p81 = scmp.ne.s32.totalorder %s76, %s78
      %p82 = scmp.eq.s32.totalorder %s21, 0
      %p83 = por %p81, %p82
      %p84 = scmp.ne.s32.totalorder %s76, %s78
      %p85 = scmp.eq.s32.totalorder %s26, 1
      %p86 = por %p84, %p85
      %p87 = scmp.ne.s32.totalorder %s78, %s79
      %p88 = scmp.eq.s32.totalorder %s26, 0
      %p89 = por %p87, %p88
      %p90 = scmp.ne.s32.totalorder %s78, %s79
      %p91 = scmp.eq.s32.totalorder %s27, 1
      %p92 = por %p90, %p91
      %p94 = scmp.ne.s32.totalorder %s79, %s93
      %p95 = scmp.eq.s32.totalorder %s27, 0
      %p96 = por %p94, %p95
      %s98 = sadd.s32 %s97, 1
      %p101 = scmp.eq.s32.totalorder %s21, 1
      %p102 = scmp.ne.s32.totalorder %s97, %s99
      %p103 = scmp.eq.s32.totalorder %s21, 0
      %p104 = por %p102, %p103
      %p105 = scmp.ne.s32.totalorder %s97, %s99
      %p106 = scmp.eq.s32.totalorder %s26, 1
      %p107 = por %p105, %p106
      %p108 = scmp.ne.s32.totalorder %s99, %s100
      %p109 = scmp.eq.s32.totalorder %s26, 0
      %p110 = por %p108, %p109
      %p111 = scmp.ne.s32.totalorder %s99, %s100
      %p112 = scmp.eq.s32.totalorder %s27, 1
      %p113 = por %p111, %p112
      %p115 = scmp.ne.s32.totalorder %s100, %s114
      %p116 = scmp.eq.s32.totalorder %s27, 0
      %p117 = por %p115, %p116
      %s119 = sadd.s32 %s118, 1
      %p122 = scmp.eq.s32.totalorder %s21, 1
      %p123 = scmp.ne.s32.totalorder %s118, %s120
      %p124 = scmp.eq.s32.totalorder %s21, 0
      %p125 = por %p123, %p124
      %p126 = scmp.ne.s32.totalorder %s118, %s120
      %p127 = scmp.eq.s32.totalorder %s26, 1
      %p128 = por %p126, %p127
      %p129 = scmp.ne.s32.totalorder %s120, %s121
      %p130 = scmp.eq.s32.totalorder %s26, 0
      %p131 = por %p129, %p130
      %p132 = scmp.ne.s32.totalorder %s120, %s121
      %p133 = scmp.eq.s32.totalorder %s27, 1
      %p134 = por %p132, %p133
      %p136 = scmp.ne.s32.totalorder %s121, %s135
      %p137 = scmp.eq.s32.totalorder %s27, 0
      %p138 = por %p136, %p137
      %s140 = sadd.s32 %s139, 1
      %p143 = scmp.eq.s32.totalorder %s21, 1
      %p144 = scmp.ne.s32.totalorder %s139, %s141
      %p145 = scmp.eq.s32.totalorder %s21, 0
      %p146 = por %p144, %p145
      %p147 = scmp.ne.s32.totalorder %s139, %s141
      %p148 = scmp.eq.s32.totalorder %s26, 1
      %p149 = por %p147, %p148
      %p150 = scmp.ne.s32.totalorder %s141, %s142
      %p151 = scmp.eq.s32.totalorder %s26, 0
      %p152 = por %p150, %p151
      %p153 = scmp.ne.s32.totalorder %s141, %s142
      %p154 = scmp.eq.s32.totalorder %s27, 1
      %p155 = por %p153, %p154
      %p157 = scmp.ne.s32.totalorder %s142, %s156
      %p158 = scmp.eq.s32.totalorder %s27, 0
      %p159 = por %p157, %p158
      %s161 = sadd.s32 %s160, 1
      %p164 = scmp.eq.s32.totalorder %s21, 1
      %p165 = scmp.ne.s32.totalorder %s160, %s162
      %p166 = scmp.eq.s32.totalorder %s21, 0
      %p167 = por %p165, %p166
      %p168 = scmp.ne.s32.totalorder %s160, %s162
      %p169 = scmp.eq.s32.totalorder %s26, 1
      %p170 = por %p168, %p169
      %p171 = scmp.ne.s32.totalorder %s162, %s163
      %p172 = scmp.eq.s32.totalorder %s26, 0
      %p173 = por %p171, %p172
      %p174 = scmp.ne.s32.totalorder %s162, %s163
      %p175 = scmp.eq.s32.totalorder %s27, 1
      %p176 = por %p174, %p175
      %p178 = scmp.ne.s32.totalorder %s163, %s177
      %p179 = scmp.eq.s32.totalorder %s27, 0
      %p180 = por %p178, %p179
      %s182 = sadd.s32 %s181, 1
      %p185 = scmp.eq.s32.totalorder %s21, 1
      %p186 = scmp.ne.s32.totalorder %s181, %s183
      %p187 = scmp.eq.s32.totalorder %s21, 0
      %p188 = por %p186, %p187
      %p189 = scmp.ne.s32.totalorder %s181, %s183
      %p190 = scmp.eq.s32.totalorder %s26, 1
      %p191 = por %p189, %p190
      %p192 = scmp.ne.s32.totalorder %s183, %s184
      %p193 = scmp.eq.s32.totalorder %s26, 0
      %p194 = por %p192, %p193
      %p195 = scmp.ne.s32.totalorder %s183, %s184
      %p196 = scmp.eq.s32.totalorder %s27, 1
      %p197 = por %p195, %p196
      %p199 = scmp.ne.s32.totalorder %s184, %s198
      %p200 = scmp.eq.s32.totalorder %s27, 0
      %p201 = por %p199, %p200
      %s203 = sadd.s32 %s202, 1
      %p206 = scmp.eq.s32.totalorder %s21, 1
      %p207 = scmp.ne.s32.totalorder %s202, %s204
      %p208 = scmp.eq.s32.totalorder %s21, 0
      %p209 = por %p207, %p208
      %p210 = scmp.ne.s32.totalorder %s202, %s204
      %p211 = scmp.eq.s32.totalorder %s26, 1
      %p212 = por %p210, %p211
      %p213 = scmp.ne.s32.totalorder %s204, %s205
      %p214 = scmp.eq.s32.totalorder %s26, 0
      %p215 = por %p213, %p214
      %p216 = scmp.ne.s32.totalorder %s204, %s205
      %p217 = scmp.eq.s32.totalorder %s27, 1
      %p218 = por %p216, %p217
      %p220 = scmp.ne.s32.totalorder %s205, %s219
      %p221 = scmp.eq.s32.totalorder %s27, 0
      %p222 = por %p220, %p221
      %s224 = sadd.s32 %s223, 1
      %p227 = scmp.eq.s32.totalorder %s21, 1
      %p228 = scmp.ne.s32.totalorder %s223, %s225
      %p229 = scmp.eq.s32.totalorder %s21, 0
      %p230 = por %p228, %p229
      %p231 = scmp.ne.s32.totalorder %s223, %s225
      %p232 = scmp.eq.s32.totalorder %s26, 1
      %p233 = por %p231, %p232
      %p234 = scmp.ne.s32.totalorder %s225, %s226
      %p235 = scmp.eq.s32.totalorder %s26, 0
      %p236 = por %p234, %p235
      %p237 = scmp.ne.s32.totalorder %s225, %s226
      %p238 = scmp.eq.s32.totalorder %s27, 1
      %p239 = por %p237, %p238
      %p241 = scmp.ne.s32.totalorder %s226, %s240
      %p242 = scmp.eq.s32.totalorder %s27, 0
      %p243 = por %p241, %p242
      %s245 = sadd.s32 %s244, 1
      %p248 = scmp.eq.s32.totalorder %s21, 1
      %p249 = scmp.ne.s32.totalorder %s244, %s246
      %p250 = scmp.eq.s32.totalorder %s21, 0
      %p251 = por %p249, %p250
      %p252 = scmp.ne.s32.totalorder %s244, %s246
      %p253 = scmp.eq.s32.totalorder %s26, 1
      %p254 = por %p252, %p253
      %p255 = scmp.ne.s32.totalorder %s246, %s247
      %p256 = scmp.eq.s32.totalorder %s26, 0
      %p257 = por %p255, %p256
      %p258 = scmp.ne.s32.totalorder %s246, %s247
      %p259 = scmp.eq.s32.totalorder %s27, 1
      %p260 = por %p258, %p259
      %p262 = scmp.ne.s32.totalorder %s247, %s261
      %p263 = scmp.eq.s32.totalorder %s27, 0
      %p264 = por %p262, %p263
      %s266 = sadd.s32 %s265, 1
      %p269 = scmp.eq.s32.totalorder %s21, 1
      %p270 = scmp.ne.s32.totalorder %s265, %s267
      %p271 = scmp.eq.s32.totalorder %s21, 0
      %p272 = por %p270, %p271
      %p273 = scmp.ne.s32.totalorder %s265, %s267
      %p274 = scmp.eq.s32.totalorder %s26, 1
      %p275 = por %p273, %p274
      %p276 = scmp.ne.s32.totalorder %s267, %s268
      %p277 = scmp.eq.s32.totalorder %s26, 0
      %p278 = por %p276, %p277
      %p279 = scmp.ne.s32.totalorder %s267, %s268
      %p280 = scmp.eq.s32.totalorder %s27, 1
      %p281 = por %p279, %p280
      %p283 = scmp.ne.s32.totalorder %s268, %s282
      %p284 = scmp.eq.s32.totalorder %s27, 0
      %p285 = por %p283, %p284
      %s287 = sadd.s32 %s286, 1
      %p290 = scmp.eq.s32.totalorder %s21, 1
      %p291 = scmp.ne.s32.totalorder %s286, %s288
      %p292 = scmp.eq.s32.totalorder %s21, 0
      %p293 = por %p291, %p292
      %p294 = scmp.ne.s32.totalorder %s286, %s288
      %p295 = scmp.eq.s32.totalorder %s26, 1
      %p296 = por %p294, %p295
      %p297 = scmp.ne.s32.totalorder %s288, %s289
      %p298 = scmp.eq.s32.totalorder %s26, 0
      %p299 = por %p297, %p298
      %p300 = scmp.ne.s32.totalorder %s288, %s289
      %p301 = scmp.eq.s32.totalorder %s27, 1
      %p302 = por %p300, %p301
      %p304 = scmp.ne.s32.totalorder %s289, %s303
      %p305 = scmp.eq.s32.totalorder %s27, 0
      %p306 = por %p304, %p305
      %s307 = ssub.s32 %s21, %s28
      %p308 = scmp.eq.s32.totalorder %s307, 0
      %s310 = sadd.s32 %s309, 1
      %s311 = scalar_select %p308, %s309, %s310
      %p314 = pneg %p308
      %p315 = scmp.eq.s32.totalorder %s21, 1
      %p316 = por %p314, %p315
      %p317 = scmp.ne.s32.totalorder %s309, %s312
      %p318 = scmp.eq.s32.totalorder %s21, 0
      %p319 = por %p317, %p318
      %p320 = scmp.ne.s32.totalorder %s309, %s312
      %p321 = scmp.eq.s32.totalorder %s26, 1
      %p322 = por %p320, %p321
      %p323 = scmp.ne.s32.totalorder %s312, %s313
      %p324 = scmp.eq.s32.totalorder %s26, 0
      %p325 = por %p323, %p324
      %p326 = scmp.ne.s32.totalorder %s312, %s313
      %p327 = scmp.eq.s32.totalorder %s27, 1
      %p328 = por %p326, %p327
      %p330 = scmp.ne.s32.totalorder %s313, %s329
      %p331 = scmp.eq.s32.totalorder %s27, 0
      %p332 = por %p330, %p331
      %p333 = scmp.le.s32.totalorder 1, %s21
      %p334 = scmp.lt.s32.totalorder %s21, 3
      %p335 = pnand %p333, %p334
      %p336 = pneg %p335
      // Predicated region
      $region9: #{encoder_forward.1} parent=5 // pred_check
        _
      $region10: #{encoder_forward.1} parent=5 // pred_check_branch
        %338 = sbr.rel (%p335) target = $region12
      $region11: #{encoder_forward.1} parent=5 // pred_region
        %s339 = ssub.s32 %s21, 1
        // Predicated region
        $region13: #{encoder_forward.1} parent=11 // pred_check
          %p340 = pneg %p68
        $region14: #{encoder_forward.1} parent=11 // pred_check_branch
          %342 = sbr.rel (%p340) target = $region16
        $region15: #{encoder_forward.1} parent=11 // pred_region
          _
        $region16: #{encoder_forward.1} parent=11 // pred_fallthru
          _
        // Predicated region
        $region17: #{encoder_forward.1} parent=11 // pred_check
          %p343 = pneg %p89
        $region18: #{encoder_forward.1} parent=11 // pred_check_branch
          %345 = sbr.rel (%p343) target = $region20
        $region19: #{encoder_forward.1} parent=11 // pred_region
          _
        $region20: #{encoder_forward.1} parent=11 // pred_fallthru
          _
        // Predicated region
        $region21: #{encoder_forward.1} parent=11 // pred_check
          %p346 = pneg %p110
        $region22: #{encoder_forward.1} parent=11 // pred_check_branch
          %348 = sbr.rel (%p346) target = $region24
        $region23: #{encoder_forward.1} parent=11 // pred_region
          _
        $region24: #{encoder_forward.1} parent=11 // pred_fallthru
          _
        // Predicated region
        $region25: #{encoder_forward.1} parent=11 // pred_check
          %p349 = pneg %p131
        $region26: #{encoder_forward.1} parent=11 // pred_check_branch
          %351 = sbr.rel (%p349) target = $region28
        $region27: #{encoder_forward.1} parent=11 // pred_region
          _
        $region28: #{encoder_forward.1} parent=11 // pred_fallthru
          _
        // Predicated region
        $region29: #{encoder_forward.1} parent=11 // pred_check
          %p352 = pneg %p152
        $region30: #{encoder_forward.1} parent=11 // pred_check_branch
          %354 = sbr.rel (%p352) target = $region32
        $region31: #{encoder_forward.1} parent=11 // pred_region
          _
        $region32: #{encoder_forward.1} parent=11 // pred_fallthru
          _
        // Predicated region
        $region33: #{encoder_forward.1} parent=11 // pred_check
          %p355 = pneg %p173
        $region34: #{encoder_forward.1} parent=11 // pred_check_branch
          %357 = sbr.rel (%p355) target = $region36
        $region35: #{encoder_forward.1} parent=11 // pred_region
          %s359 = ssub.s32 16384, 16384
          %360 = vsyncadd [#allocation7], %s359
          %s361 = sshll.u32 [#allocation6], 4
          %s362 = int_to_ptr.vmem [resolvable:$true] %s361
          %367 = dma.hbm_to_vmem [thread:$0]  %s6, 16384, %s362, [#allocation7], 128, 128, 8
        $region36: #{encoder_forward.1} parent=11 // pred_fallthru
          _
        // Predicated region
        $region37: #{encoder_forward.1} parent=11 // pred_check
          %p368 = pneg %p194
        $region38: #{encoder_forward.1} parent=11 // pred_check_branch
          %370 = sbr.rel (%p368) target = $region40
        $region39: #{encoder_forward.1} parent=11 // pred_region
          %s372 = ssub.s32 16384, 16384
          %373 = vsyncadd [#allocation9], %s372
          %s374 = sshll.u32 [#allocation8], 4
          %s375 = int_to_ptr.vmem [resolvable:$true] %s374
          %380 = dma.hbm_to_vmem [thread:$0]  %s7, 16384, %s375, [#allocation9], 128, 128, 8
        $region40: #{encoder_forward.1} parent=11 // pred_fallthru
          _
        // Predicated region
        $region41: #{encoder_forward.1} parent=11 // pred_check
          %p381 = pneg %p215
        $region42: #{encoder_forward.1} parent=11 // pred_check_branch
          %383 = sbr.rel (%p381) target = $region44
        $region43: #{encoder_forward.1} parent=11 // pred_region
          %s385 = ssub.s32 16384, 16384
          %386 = vsyncadd [#allocation9], %s385
          %s387 = sshll.u32 [#allocation10], 4
          %s388 = int_to_ptr.vmem [resolvable:$true] %s387
          %393 = dma.hbm_to_vmem [thread:$0]  %s8, 16384, %s388, [#allocation9], 128, 128, 8
        $region44: #{encoder_forward.1} parent=11 // pred_fallthru
          _
        // Predicated region
        $region45: #{encoder_forward.1} parent=11 // pred_check
          %p394 = pneg %p236
        $region46: #{encoder_forward.1} parent=11 // pred_check_branch
          %396 = sbr.rel (%p394) target = $region48
        $region47: #{encoder_forward.1} parent=11 // pred_region
          _
        $region48: #{encoder_forward.1} parent=11 // pred_fallthru
          _
        // Predicated region
        $region49: #{encoder_forward.1} parent=11 // pred_check
          %p397 = pneg %p257
        $region50: #{encoder_forward.1} parent=11 // pred_check_branch
          %399 = sbr.rel (%p397) target = $region52
        $region51: #{encoder_forward.1} parent=11 // pred_region
          _
        $region52: #{encoder_forward.1} parent=11 // pred_fallthru
          _
        // Predicated region
        $region53: #{encoder_forward.1} parent=11 // pred_check
          %p400 = pneg %p278
        $region54: #{encoder_forward.1} parent=11 // pred_check_branch
          %402 = sbr.rel (%p400) target = $region56
        $region55: #{encoder_forward.1} parent=11 // pred_region
          _
        $region56: #{encoder_forward.1} parent=11 // pred_fallthru
          _
        // Predicated region
        $region57: #{encoder_forward.1} parent=11 // pred_check
          %p403 = pneg %p299
        $region58: #{encoder_forward.1} parent=11 // pred_check_branch
          %405 = sbr.rel (%p403) target = $region60
        $region59: #{encoder_forward.1} parent=11 // pred_region
          _
        $region60: #{encoder_forward.1} parent=11 // pred_fallthru
          _
      $region12: #{encoder_forward.1} parent=5 // pred_fallthru
        _
      %p406 = scmp.lt.s32.totalorder %s21, 2
      // Predicated region
      $region61: #{encoder_forward.1} parent=5 // pred_check
        %p407 = pneg %p406
      $region62: #{encoder_forward.1} parent=5 // pred_check_branch
        %409 = sbr.rel (%p407) target = $region64
      $region63: #{encoder_forward.1} parent=5 // pred_region
        // Predicated region
        $region65: #{encoder_forward.1} parent=63 // pred_check
          %p410 = pneg %p41
        $region66: #{encoder_forward.1} parent=63 // pred_check_branch
          %412 = sbr.rel (%p410) target = $region68
        $region67: #{encoder_forward.1} parent=63 // pred_region
          %p413 = scmp.lt.s32.totalorder %s21, 1
          %s414 = scalar_select %p413, %s21, 1
          %s415 = smul.addr %s414, 16
          %s416 = smul.addr %s415, 4
          %s417 = scalar_lea.vmem %s0, %s416
        $region68: #{encoder_forward.1} parent=63 // pred_fallthru
          _
      $region64: #{encoder_forward.1} parent=5 // pred_fallthru
        _
      %p418 = scmp.le.s32.totalorder 1, %s21
      %p419 = scmp.lt.s32.totalorder %s21, 3
      %p420 = pnand %p418, %p419
      %p421 = pneg %p420
      // Predicated region
      $region69: #{encoder_forward.1} parent=5 // pred_check
        _
      $region70: #{encoder_forward.1} parent=5 // pred_check_branch
        %423 = sbr.rel (%p420) target = $region72
      $region71: #{encoder_forward.1} parent=5 // pred_region
        %s424 = ssub.s32 %s21, 1
        // Predicated region
        $region73: #{encoder_forward.1} parent=71 // pred_check
          %p425 = pneg %p173
        $region74: #{encoder_forward.1} parent=71 // pred_check_branch
          %427 = sbr.rel (%p425) target = $region76
        $region75: #{encoder_forward.1} parent=71 // pred_region
          %428 = dma.done [#allocation7], 16384
        $region76: #{encoder_forward.1} parent=71 // pred_fallthru
          _
        // Predicated region
        $region77: #{encoder_forward.1} parent=71 // pred_check
          %p429 = pneg %p194
        $region78: #{encoder_forward.1} parent=71 // pred_check_branch
          %431 = sbr.rel (%p429) target = $region80
        $region79: #{encoder_forward.1} parent=71 // pred_region
          %432 = dma.done [#allocation9], 16384
        $region80: #{encoder_forward.1} parent=71 // pred_fallthru
          _
        // Predicated region
        $region81: #{encoder_forward.1} parent=71 // pred_check
          %p433 = pneg %p215
        $region82: #{encoder_forward.1} parent=71 // pred_check_branch
          %435 = sbr.rel (%p433) target = $region84
        $region83: #{encoder_forward.1} parent=71 // pred_region
          %436 = dma.done [#allocation9], 16384
        $region84: #{encoder_forward.1} parent=71 // pred_fallthru
          _
        %p437 = scmp.lt.s32.totalorder %s26, 1
        %s438 = scalar_select %p437, %s26, 1
        %s439 = smul.addr %s438, 16
        %s440 = smul.addr %s439, 4
        %s441 = scalar_lea.vmem %s0, %s440
        %p442 = pneg %p47
        %p443 = pneg %p44
        %p444 = pneg %p68
        %p445 = pneg %p65
        %p446 = pneg %p89
        %p447 = pneg %p86
        %p448 = pneg %p110
        %p449 = pneg %p107
        %p450 = pneg %p131
        %p451 = pneg %p128
        %p452 = pneg %p152
        %p453 = pneg %p149
        %p454 = pneg %p173
        %p455 = pneg %p170
        %p456 = pneg %p194
        %p457 = pneg %p191
        %p458 = pneg %p215
        %p459 = pneg %p212
        %p460 = pneg %p236
        %p461 = pneg %p233
        %p462 = pneg %p257
        %p463 = pneg %p254
        %p464 = pneg %p278
        %p465 = pneg %p275
        %p466 = pneg %p299
        %p467 = pneg %p296
        %p468 = pneg %p325
        %p469 = pneg %p322
        %p470 = scmp.lt.s32.totalorder %s26, 1
        %s471 = scalar_select %p470, %s26, 1
        %s472 = scalar_lea.vmem %s13, %s471
        %p473 = scmp.lt.s32.totalorder %s26, 1
        %s474 = scalar_select %p473, %s26, 1
        %s475 = smul.addr %s474, 16
        %s476 = smul.addr %s475, 4
        %s477 = scalar_lea.vmem %s0, %s476
        %p478 = scmp.lt.s32.totalorder %s26, 1
        %s479 = scalar_select %p478, %s26, 1
        %s480 = scalar_lea.vmem %s13, %s479
        %v482 = vld [vmem:[%s477] sm:$0xff]
        %v483 = vld [vmem:[%s477 + $0x8] sm:$0xff]
        %v484 = vld [vmem:[%s477 + $0x10] sm:$0xff]
        %v485 = vld [vmem:[%s477 + $0x18] sm:$0xff]
        %v486 = vld [vmem:[%s477 + $0x20] sm:$0xff]
        %v487 = vld [vmem:[%s477 + $0x28] sm:$0xff]
        %v488 = vld [vmem:[%s477 + $0x30] sm:$0xff]
        %v489 = vld [vmem:[%s477 + $0x38] sm:$0xff]
        %v490 = vld [vmem:[%s1] sm:$0xf]
        %v491 = vld [vmem:[%s1 + $0x4] sm:$0xf]
        %v492 = vld [vmem:[%s1 + $0x8] sm:$0xf]
        %v493 = vld [vmem:[%s1 + $0xc] sm:$0xf]
        %v498 = vunpack.c.l.b16 %v490
        %v499 = vunpack.c.l.b16 %v491
        %v500 = vunpack.c.l.b16 %v492
        %v501 = vunpack.c.l.b16 %v493
        %v502 = vpack.c.b16 %v499, %v498
        %v503 = vpack.c.b16 %v501, %v500
        %v512 = vunpack.c.l.b16 %v482
        %v513 = vunpack.c.h.b16 %v482
        %v514 = vunpack.c.l.b16 %v483
        %v515 = vunpack.c.h.b16 %v483
        %v516 = vunpack.c.l.b16 %v484
        %v517 = vunpack.c.h.b16 %v484
        %v518 = vunpack.c.l.b16 %v485
        %v519 = vunpack.c.h.b16 %v485
        %v520 = vunpack.c.l.b16 %v486
        %v521 = vunpack.c.h.b16 %v486
        %v522 = vunpack.c.l.b16 %v487
        %v523 = vunpack.c.h.b16 %v487
        %v524 = vunpack.c.l.b16 %v488
        %v525 = vunpack.c.h.b16 %v488
        %v526 = vunpack.c.l.b16 %v489
        %v527 = vunpack.c.h.b16 %v489
        %v528 = vpack.c.b16 %v514, %v512
        %v529 = vpack.c.b16 %v515, %v513
        %v530 = vpack.c.b16 %v518, %v516
        %v531 = vpack.c.b16 %v519, %v517
        %v532 = vpack.c.b16 %v522, %v520
        %v533 = vpack.c.b16 %v523, %v521
        %v534 = vpack.c.b16 %v526, %v524
        %v535 = vpack.c.b16 %v527, %v525
        %vm544 = vcmask 523264
        %v546 = vsel %vm544, %v502, 0
        %v549 = vsel %vm544, %v503, 0
        %551 = vmatprep.subr.bf16.mxu0 %v529
        %552 = vmatpush1.bf16.msra.mxu0 %v528
        %553 = vmatprep.subr.bf16.mxu0 %v531
        %554 = vmatpush1.bf16.msra.mxu0 %v530
        %555 = vmatprep.subr.bf16.mxu0 %v533
        %556 = vmatpush1.bf16.msra.mxu0 %v532
        %557 = vmatprep.subr.bf16.mxu0 %v535
        %558 = vmatpush1.bf16.msra.mxu0 %v534
        %559 = vmatprep.subr.bf16.mxu0 0
        %560 = vmatpush1.bf16.msra.mxu0 0
        %561 = vmatprep.subr.bf16.mxu0 0
        %562 = vmatpush1.bf16.msra.mxu0 0
        %563 = vmatprep.subr.bf16.mxu0 0
        %564 = vmatpush1.bf16.msra.mxu0 0
        %565 = vmatprep.subr.bf16.mxu0 0
        %566 = vmatpush1.bf16.msra.mxu0 0
        %567 = vmatprep.subr.bf16.mxu0 0
        %568 = vmatpush1.bf16.msra.mxu0 0
        %569 = vmatprep.subr.bf16.mxu0 0
        %570 = vmatpush1.bf16.msra.mxu0 0
        %571 = vmatprep.subr.bf16.mxu0 0
        %572 = vmatpush1.bf16.msra.mxu0 0
        %573 = vmatprep.subr.bf16.mxu0 0
        %574 = vmatpush1.bf16.msra.mxu0 0
        %575 = vmatprep.subr.bf16.mxu0 0
        %576 = vmatpush1.bf16.msra.mxu0 0
        %577 = vmatprep.subr.bf16.mxu0 0
        %578 = vmatpush1.bf16.msra.mxu0 0
        %579 = vmatprep.subr.bf16.mxu0 0
        %580 = vmatpush1.bf16.msra.mxu0 0
        %581 = vmatprep.subr.bf16.mxu0 0
        %582 = vmatpush1.bf16.msra.mxu0 0
        %583 = vmatprep.mubr.bf16.mxu0 0
        %584 = vmatmul.mubr.bf16.gmra.mrb[0].mxu0 %v546
        %v585 = vpop.f32.mrb[0].mxu0
        %v586 = vadd.f32 0.0, %v585
        %v587 = vpop.f32.mrb[0].mxu0
        %v588 = vadd.f32 0.0, %v587
        %v589 = vpop.f32.mrb[0].mxu0
        %v590 = vadd.f32 0.0, %v589
        %v591 = vpop.f32.mrb[0].mxu0
        %v592 = vadd.f32 0.0, %v591
        %593 = vmatprep.mubr.bf16.mxu0 0
        %594 = vmatmul.mubr.bf16.gmra.mrb[0].mxu0 %v549
        %v595 = vpop.f32.mrb[0].mxu0
        %v596 = vadd.f32 0.0, %v595
        %v597 = vpop.f32.mrb[0].mxu0
        %v598 = vadd.f32 0.0, %v597
        %v599 = vpop.f32.mrb[0].mxu0
        %v600 = vadd.f32 0.0, %v599
        %v601 = vpop.f32.mrb[0].mxu0
        %v602 = vadd.f32 0.0, %v601
        %603 = vdwg.mxu0
        %v604 = vpack.c.bf16 %v590, %v586
        %v605 = vpack.c.bf16 %v592, %v588
        %v606 = vpack.c.bf16 %v600, %v596
        %v607 = vpack.c.bf16 %v602, %v598
        %s608 = scalar_lea.vmem %s1, 16
        %v609 = vld [vmem:[%s608] sm:$0xf]
        %v610 = vld [vmem:[%s608 + $0x4] sm:$0xf]
        %v611 = vld [vmem:[%s608 + $0x8] sm:$0xf]
        %v612 = vld [vmem:[%s608 + $0xc] sm:$0xf]
        %v617 = vunpack.c.l.b16 %v609
        %v618 = vunpack.c.l.b16 %v610
        %v619 = vunpack.c.l.b16 %v611
        %v620 = vunpack.c.l.b16 %v612
        %v621 = vpack.c.b16 %v618, %v617
        %v622 = vpack.c.b16 %v620, %v619
        %v624 = vsel %vm544, %v621, 0
        %v627 = vsel %vm544, %v622, 0
        %629 = vmatprep.subr.bf16.mxu0 %v529
        %630 = vmatpush1.bf16.msra.mxu0 %v528
        %631 = vmatprep.subr.bf16.mxu0 %v531
        %632 = vmatpush1.bf16.msra.mxu0 %v530
        %633 = vmatprep.subr.bf16.mxu0 %v533
        %634 = vmatpush1.bf16.msra.mxu0 %v532
        %635 = vmatprep.subr.bf16.mxu0 %v535
        %636 = vmatpush1.bf16.msra.mxu0 %v534
        %637 = vmatprep.subr.bf16.mxu0 0
        %638 = vmatpush1.bf16.msra.mxu0 0
        %639 = vmatprep.subr.bf16.mxu0 0
        %640 = vmatpush1.bf16.msra.mxu0 0
        %641 = vmatprep.subr.bf16.mxu0 0
        %642 = vmatpush1.bf16.msra.mxu0 0
        %643 = vmatprep.subr.bf16.mxu0 0
        %644 = vmatpush1.bf16.msra.mxu0 0
        %645 = vmatprep.subr.bf16.mxu0 0
        %646 = vmatpush1.bf16.msra.mxu0 0
        %647 = vmatprep.subr.bf16.mxu0 0
        %648 = vmatpush1.bf16.msra.mxu0 0
        %649 = vmatprep.subr.bf16.mxu0 0
        %650 = vmatpush1.bf16.msra.mxu0 0
        %651 = vmatprep.subr.bf16.mxu0 0
        %652 = vmatpush1.bf16.msra.mxu0 0
        %653 = vmatprep.subr.bf16.mxu0 0
        %654 = vmatpush1.bf16.msra.mxu0 0
        %655 = vmatprep.subr.bf16.mxu0 0
        %656 = vmatpush1.bf16.msra.mxu0 0
        %657 = vmatprep.subr.bf16.mxu0 0
        %658 = vmatpush1.bf16.msra.mxu0 0
        %659 = vmatprep.subr.bf16.mxu0 0
        %660 = vmatpush1.bf16.msra.mxu0 0
        %661 = vmatprep.mubr.bf16.mxu0 0
        %662 = vmatmul.mubr.bf16.gmra.mrb[0].mxu0 %v624
        %v663 = vpop.f32.mrb[0].mxu0
        %v664 = vadd.f32 0.0, %v663
        %v665 = vpop.f32.mrb[0].mxu0
        %v666 = vadd.f32 0.0, %v665
        %v667 = vpop.f32.mrb[0].mxu0
        %v668 = vadd.f32 0.0, %v667
        %v669 = vpop.f32.mrb[0].mxu0
        %v670 = vadd.f32 0.0, %v669
        %671 = vmatprep.mubr.bf16.mxu0 0
        %672 = vmatmul.mubr.bf16.gmra.mrb[0].mxu0 %v627
        %v673 = vpop.f32.mrb[0].mxu0
        %v674 = vadd.f32 0.0, %v673
        %v675 = vpop.f32.mrb[0].mxu0
        %v676 = vadd.f32 0.0, %v675
        %v677 = vpop.f32.mrb[0].mxu0
        %v678 = vadd.f32 0.0, %v677
        %v679 = vpop.f32.mrb[0].mxu0
        %v680 = vadd.f32 0.0, %v679
        %681 = vdwg.mxu0
        %v682 = vpack.c.bf16 %v668, %v664
        %v683 = vpack.c.bf16 %v670, %v666
        %v684 = vpack.c.bf16 %v678, %v674
        %v685 = vpack.c.bf16 %v680, %v676
        %v690 = vunpack.c.l.b16 %v604
        %v691 = vunpack.c.l.b16 %v605
        %v692 = vunpack.c.h.b16 %v604
        %v693 = vunpack.c.h.b16 %v605
        %v694 = vunpack.c.l.b16 %v606
        %v695 = vunpack.c.l.b16 %v607
        %v696 = vunpack.c.h.b16 %v606
        %v697 = vunpack.c.h.b16 %v607
        %v698 = vpack.c.b16 %v691, %v690
        %v699 = vpack.c.b16 %v693, %v692
        %v700 = vpack.c.b16 %v695, %v694
        %v701 = vpack.c.b16 %v697, %v696
        %s706 = scalar_lea.vmem [#allocation2], 40
        %707 = vst [vmem:[%s706] sm:$0xff] %v698
        %708 = vst [vmem:[%s706 + $0x8] sm:$0xff] %v699
        %709 = vst [vmem:[%s706 + $0x10] sm:$0xff] %v700
        %710 = vst [vmem:[%s706 + $0x18] sm:$0xff] %v701
        %vm711 = vcmask 1040384
        %vm712 = vsmask.f32 256
        %vm713 = vmand %vm711, %vm712
        %vm714 = vcmask 1044484
        %vm715 = vsmask.f32 4352
        %vm716 = vmand %vm714, %vm715
        %vm717 = vmor %vm716, %vm713
        %v718 = vld [vmem:[%s706 + $0x20] sm:$0x11]
        %v719 = vsel %vm717, 0, %v718
        %720 = vst [vmem:[%s706 + $0x20] sm:$0x11] %v719
        %v721 = vld [vmem:[#allocation2] sm:$0x11]
        %v722 = vsel %vm717, 0, %v721
        %723 = vst [vmem:[#allocation2] sm:$0x11] %v722
        %v728 = vunpack.c.l.b16 %v682
        %v729 = vunpack.c.l.b16 %v683
        %v730 = vunpack.c.h.b16 %v682
        %v731 = vunpack.c.h.b16 %v683
        %v732 = vunpack.c.l.b16 %v684
        %v733 = vunpack.c.l.b16 %v685
        %v734 = vunpack.c.h.b16 %v684
        %v735 = vunpack.c.h.b16 %v685
        %v736 = vpack.c.b16 %v729, %v728
        %v737 = vpack.c.b16 %v731, %v730
        %v738 = vpack.c.b16 %v733, %v732
        %v739 = vpack.c.b16 %v735, %v734
        %vm740 = vsmask.f32 4368
        %vm741 = vmor %vm712, %vm740
        %v743 = vshrl.u32 %v736, 16
        %v745 = vrot.slane %v743, 7
        %v746 = vshll.u32 %v736, 16
        %v748 = vor.u32 %v745, %v746
        %v749 = vrot.slane %v745, 4
        %v751 = vshrl.u32 %v737, 16
        %v753 = vrot.slane %v751, 7
        %v754 = vshll.u32 %v737, 16
        %v756 = vor.u32 %v753, %v754
        %v757 = vsel %vm741, %v749, %v756
        %v758 = vrot.slane %v753, 4
        %v760 = vshrl.u32 %v738, 16
        %v762 = vrot.slane %v760, 7
        %v763 = vshll.u32 %v738, 16
        %v765 = vor.u32 %v762, %v763
        %v766 = vsel %vm741, %v758, %v765
        %v767 = vrot.slane %v762, 4
        %v769 = vshrl.u32 %v739, 16
        %v771 = vrot.slane %v769, 7
        %v772 = vshll.u32 %v739, 16
        %v774 = vor.u32 %v771, %v772
        %v775 = vsel %vm741, %v767, %v774
        %v776 = vrot.slane %v771, 4
        %vm782 = vcmask 1043456
        %vm783 = vsmask.f32 7938
        %vm784 = vmand %vm782, %vm783
        %vm785 = vcmask 1047556
        %vm786 = vsmask.f32 7954
        %vm787 = vmand %vm785, %vm786
        %vm788 = vmor %vm787, %vm784
        %v789 = vld [vmem:[#allocation2] sm:$0xff]
        %v790 = vsel %vm788, %v748, %v789
        %791 = vst [vmem:[#allocation2] sm:$0xff] %v790
        %792 = vst [vmem:[#allocation2 + $0x8] sm:$0xff] %v757
        %793 = vst [vmem:[#allocation2 + $0x10] sm:$0xff] %v766
        %794 = vst [vmem:[#allocation2 + $0x18] sm:$0xff] %v775
        %v795 = vld [vmem:[#allocation2 + $0x20] sm:$0x11]
        %v796 = vsel %vm717, %v776, %v795
        %797 = vst [vmem:[#allocation2 + $0x20] sm:$0x11] %v796
        %v798 = vld [vmem:[#allocation2] sm:$0xff]
        %v799 = vld [vmem:[#allocation2 + $0x8] sm:$0xff]
        %v800 = vld [vmem:[#allocation2 + $0x10] sm:$0xff]
        %v801 = vld [vmem:[#allocation2 + $0x18] sm:$0xff]
        %v802 = vld [vmem:[%s5] sm:$0xff]
        %v803 = vld [vmem:[%s5 + $0x8] sm:$0xff]
        %v804 = vld [vmem:[%s5 + $0x10] sm:$0xff]
        %v805 = vld [vmem:[%s5 + $0x18] sm:$0xff]
        %v806 = vld [vmem:[%s5 + $0x20] sm:$0xff]
        %v807 = vld [vmem:[%s5 + $0x28] sm:$0xff]
        %v808 = vld [vmem:[%s5 + $0x30] sm:$0xff]
        %v809 = vld [vmem:[%s5 + $0x38] sm:$0xff]
        %v810 = vld [vmem:[%s5 + $0x40] sm:$0xff]
        %v811 = vld [vmem:[%s5 + $0x48] sm:$0xff]
        %v812 = vld [vmem:[%s5 + $0x50] sm:$0xff]
        %v813 = vld [vmem:[%s5 + $0x58] sm:$0xff]
        %v814 = vld [vmem:[%s5 + $0x60] sm:$0xff]
        %v815 = vld [vmem:[%s5 + $0x68] sm:$0xff]
        %v816 = vld [vmem:[%s5 + $0x70] sm:$0xff]
        %v817 = vld [vmem:[%s5 + $0x78] sm:$0xff]
        %v818 = vld [vmem:[%s5 + $0x80] sm:$0xff]
        %v819 = vld [vmem:[%s5 + $0x88] sm:$0xff]
        %v820 = vld [vmem:[%s5 + $0x90] sm:$0xff]
        %v821 = vld [vmem:[%s5 + $0x98] sm:$0xff]
        %v822 = vld [vmem:[%s5 + $0xa0] sm:$0xff]
        %v823 = vld [vmem:[%s5 + $0xa8] sm:$0xff]
        %v824 = vld [vmem:[%s5 + $0xb0] sm:$0xff]
        %v825 = vld [vmem:[%s5 + $0xb8] sm:$0xff]
        %v826 = vld [vmem:[%s5 + $0xc0] sm:$0xff]
        %v827 = vld [vmem:[%s5 + $0xc8] sm:$0xff]
        %v828 = vld [vmem:[%s5 + $0xd0] sm:$0xff]
        %v829 = vld [vmem:[%s5 + $0xd8] sm:$0xff]
        %v830 = vld [vmem:[%s5 + $0xe0] sm:$0xff]
        %v831 = vld [vmem:[%s5 + $0xe8] sm:$0xff]
        %v832 = vld [vmem:[%s5 + $0xf0] sm:$0xff]
        %v833 = vld [vmem:[%s5 + $0xf8] sm:$0xff]
        %v834 = vld [vmem:[%s706] sm:$0xff]
        %v835 = vld [vmem:[%s706 + $0x8] sm:$0xff]
        %v836 = vld [vmem:[%s706 + $0x10] sm:$0xff]
        %v837 = vld [vmem:[%s706 + $0x18] sm:$0xff]
        %s838 = scalar_lea.vmem %s5, 256
        %v839 = vld [vmem:[%s838] sm:$0xff]
        %v840 = vld [vmem:[%s838 + $0x8] sm:$0xff]
        %v841 = vld [vmem:[%s838 + $0x10] sm:$0xff]
        %v842 = vld [vmem:[%s838 + $0x18] sm:$0xff]
        %v843 = vld [vmem:[%s838 + $0x20] sm:$0xff]
        %v844 = vld [vmem:[%s838 + $0x28] sm:$0xff]
        %v845 = vld [vmem:[%s838 + $0x30] sm:$0xff]
        %v846 = vld [vmem:[%s838 + $0x38] sm:$0xff]
        %v847 = vld [vmem:[%s838 + $0x40] sm:$0xff]
        %v848 = vld [vmem:[%s838 + $0x48] sm:$0xff]
        %v849 = vld [vmem:[%s838 + $0x50] sm:$0xff]
        %v850 = vld [vmem:[%s838 + $0x58] sm:$0xff]
        %v851 = vld [vmem:[%s838 + $0x60] sm:$0xff]
        %v852 = vld [vmem:[%s838 + $0x68] sm:$0xff]
        %v853 = vld [vmem:[%s838 + $0x70] sm:$0xff]
        %v854 = vld [vmem:[%s838 + $0x78] sm:$0xff]
        %v855 = vld [vmem:[%s838 + $0x80] sm:$0xff]
        %v856 = vld [vmem:[%s838 + $0x88] sm:$0xff]
        %v857 = vld [vmem:[%s838 + $0x90] sm:$0xff]
        %v858 = vld [vmem:[%s838 + $0x98] sm:$0xff]
        %v859 = vld [vmem:[%s838 + $0xa0] sm:$0xff]
        %v860 = vld [vmem:[%s838 + $0xa8] sm:$0xff]
        %v861 = vld [vmem:[%s838 + $0xb0] sm:$0xff]
        %v862 = vld [vmem:[%s838 + $0xb8] sm:$0xff]
        %v863 = vld [vmem:[%s838 + $0xc0] sm:$0xff]
        %v864 = vld [vmem:[%s838 + $0xc8] sm:$0xff]
        %v865 = vld [vmem:[%s838 + $0xd0] sm:$0xff]
        %v866 = vld [vmem:[%s838 + $0xd8] sm:$0xff]
        %v867 = vld [vmem:[%s838 + $0xe0] sm:$0xff]
        %v868 = vld [vmem:[%s838 + $0xe8] sm:$0xff]
        %v869 = vld [vmem:[%s838 + $0xf0] sm:$0xff]
        %v870 = vld [vmem:[%s838 + $0xf8] sm:$0xff]
        %v875 = vunpack.c.l.b16 %v834
        %v876 = vunpack.c.h.b16 %v834
        %v877 = vunpack.c.l.b16 %v835
        %v878 = vunpack.c.h.b16 %v835
        %v879 = vunpack.c.l.b16 %v836
        %v880 = vunpack.c.h.b16 %v836
        %v881 = vunpack.c.l.b16 %v837
        %v882 = vunpack.c.h.b16 %v837
        %v883 = vpack.c.b16 %v877, %v875
        %v884 = vpack.c.b16 %v878, %v876
        %v885 = vpack.c.b16 %v881, %v879
        %v886 = vpack.c.b16 %v882, %v880
        %v923 = vunpack.c.l.b16 %v839
        %v924 = vunpack.c.h.b16 %v839
        %v925 = vunpack.c.l.b16 %v840
        %v926 = vunpack.c.h.b16 %v840
        %v927 = vunpack.c.l.b16 %v841
        %v928 = vunpack.c.h.b16 %v841
        %v929 = vunpack.c.l.b16 %v842
        %v930 = vunpack.c.h.b16 %v842
        %v931 = vunpack.c.l.b16 %v843
        %v932 = vunpack.c.h.b16 %v843
        %v933 = vunpack.c.l.b16 %v844
        %v934 = vunpack.c.h.b16 %v844
        %v935 = vunpack.c.l.b16 %v845
        %v936 = vunpack.c.h.b16 %v845
        %v937 = vunpack.c.l.b16 %v846
        %v938 = vunpack.c.h.b16 %v846
        %v939 = vunpack.c.l.b16 %v847
        %v940 = vunpack.c.h.b16 %v847
        %v941 = vunpack.c.l.b16 %v848
        %v942 = vunpack.c.h.b16 %v848
        %v943 = vunpack.c.l.b16 %v849
        %v944 = vunpack.c.h.b16 %v849
        %v945 = vunpack.c.l.b16 %v850
        %v946 = vunpack.c.h.b16 %v850
        %v947 = vunpack.c.l.b16 %v851
        %v948 = vunpack.c.h.b16 %v851
        %v949 = vunpack.c.l.b16 %v852
        %v950 = vunpack.c.h.b16 %v852
        %v951 = vunpack.c.l.b16 %v853
        %v952 = vunpack.c.h.b16 %v853
        %v953 = vunpack.c.l.b16 %v854
        %v954 = vunpack.c.h.b16 %v854
        %v955 = vunpack.c.l.b16 %v855
        %v956 = vunpack.c.h.b16 %v855
        %v957 = vunpack.c.l.b16 %v856
        %v958 = vunpack.c.h.b16 %v856
        %v959 = vunpack.c.l.b16 %v857
        %v960 = vunpack.c.h.b16 %v857
        %v961 = vunpack.c.l.b16 %v858
        %v962 = vunpack.c.h.b16 %v858
        %v963 = vunpack.c.l.b16 %v859
        %v964 = vunpack.c.h.b16 %v859
        %v965 = vunpack.c.l.b16 %v860
        %v966 = vunpack.c.h.b16 %v860
        %v967 = vunpack.c.l.b16 %v861
        %v968 = vunpack.c.h.b16 %v861
        %v969 = vunpack.c.l.b16 %v862
        %v970 = vunpack.c.h.b16 %v862
        %v971 = vunpack.c.l.b16 %v863
        %v972 = vunpack.c.h.b16 %v863
        %v973 = vunpack.c.l.b16 %v864
        %v974 = vunpack.c.h.b16 %v864
        %v975 = vunpack.c.l.b16 %v865
        %v976 = vunpack.c.h.b16 %v865
        %v977 = vunpack.c.l.b16 %v866
        %v978 = vunpack.c.h.b16 %v866
        %v979 = vunpack.c.l.b16 %v867
        %v980 = vunpack.c.h.b16 %v867
        %v981 = vunpack.c.l.b16 %v868
        %v982 = vunpack.c.h.b16 %v868
        %v983 = vunpack.c.l.b16 %v869
        %v984 = vunpack.c.h.b16 %v869
        %v985 = vunpack.c.l.b16 %v870
        %v986 = vunpack.c.h.b16 %v870
        %v987 = vpack.c.b16 %v925, %v923
        %v988 = vpack.c.b16 %v926, %v924
        %v989 = vpack.c.b16 %v929, %v927
        %v990 = vpack.c.b16 %v930, %v928
        %v991 = vpack.c.b16 %v933, %v931
        %v992 = vpack.c.b16 %v934, %v932
        %v993 = vpack.c.b16 %v937, %v935
        %v994 = vpack.c.b16 %v938, %v936
        %v995 = vpack.c.b16 %v941, %v939
        %v996 = vpack.c.b16 %v942, %v940
        %v997 = vpack.c.b16 %v945, %v943
        %v998 = vpack.c.b16 %v946, %v944
        %v999 = vpack.c.b16 %v949, %v947
        %v1000 = vpack.c.b16 %v950, %v948
        %v1001 = vpack.c.b16 %v953, %v951
        %v1002 = vpack.c.b16 %v954, %v952
        %v1003 = vpack.c.b16 %v957, %v955
        %v1004 = vpack.c.b16 %v958, %v956
        %v1005 = vpack.c.b16 %v961, %v959
        %v1006 = vpack.c.b16 %v962, %v960
        %v1007 = vpack.c.b16 %v965, %v963
        %v1008 = vpack.c.b16 %v966, %v964
        %v1009 = vpack.c.b16 %v969, %v967
        %v1010 = vpack.c.b16 %v970, %v968
        %v1011 = vpack.c.b16 %v973, %v971
        %v1012 = vpack.c.b16 %v974, %v972
        %v1013 = vpack.c.b16 %v977, %v975
        %v1014 = vpack.c.b16 %v978, %v976
        %v1015 = vpack.c.b16 %v981, %v979
        %v1016 = vpack.c.b16 %v982, %v980
        %v1017 = vpack.c.b16 %v985, %v983
        %v1018 = vpack.c.b16 %v986, %v984
        %1051 = vmatprep.subr.bf16.mxu0 %v988
        %1052 = vmatpush1.bf16.msra.mxu0 %v987
        %1053 = vmatprep.subr.bf16.mxu0 %v990
        %1054 = vmatpush1.bf16.msra.mxu0 %v989
        %1055 = vmatprep.subr.bf16.mxu0 %v992
        %1056 = vmatpush1.bf16.msra.mxu0 %v991
        %1057 = vmatprep.subr.bf16.mxu0 %v994
        %1058 = vmatpush1.bf16.msra.mxu0 %v993
        %1059 = vmatprep.subr.bf16.mxu0 %v996
        %1060 = vmatpush1.bf16.msra.mxu0 %v995
        %1061 = vmatprep.subr.bf16.mxu0 %v998
        %1062 = vmatpush1.bf16.msra.mxu0 %v997
        %1063 = vmatprep.subr.bf16.mxu0 %v1000
        %1064 = vmatpush1.bf16.msra.mxu0 %v999
        %1065 = vmatprep.subr.bf16.mxu0 %v1002
        %1066 = vmatpush1.bf16.msra.mxu0 %v1001
        %1067 = vmatprep.subr.bf16.mxu0 %v1004
        %1068 = vmatpush1.bf16.msra.mxu0 %v1003
        %1069 = vmatprep.subr.bf16.mxu0 %v1006
        %1070 = vmatpush1.bf16.msra.mxu0 %v1005
        %1071 = vmatprep.subr.bf16.mxu0 %v1008
        %1072 = vmatpush1.bf16.msra.mxu0 %v1007
        %1073 = vmatprep.subr.bf16.mxu0 %v1010
        %1074 = vmatpush1.bf16.msra.mxu0 %v1009
        %1075 = vmatprep.subr.bf16.mxu0 %v1012
        %1076 = vmatpush1.bf16.msra.mxu0 %v1011
        %1077 = vmatprep.subr.bf16.mxu0 %v1014
        %1078 = vmatpush1.bf16.msra.mxu0 %v1013
        %1079 = vmatprep.subr.bf16.mxu0 %v1016
        %1080 = vmatpush1.bf16.msra.mxu0 %v1015
        %1081 = vmatprep.subr.bf16.mxu0 %v1018
        %1082 = vmatpush1.bf16.msra.mxu0 %v1017
        %1083 = vmatprep.mubr.bf16.mxu0 %v884
        %1084 = vmatmul.mubr.bf16.gmra.mrb[0].mxu0 %v883
        %v1085 = vpop.f32.mrb[0].mxu0
        %v1086 = vadd.f32 0.0, %v1085
        %v1087 = vpop.f32.mrb[0].mxu0
        %v1088 = vadd.f32 0.0, %v1087
        %v1089 = vpop.f32.mrb[0].mxu0
        %v1090 = vadd.f32 0.0, %v1089
        %v1091 = vpop.f32.mrb[0].mxu0
        %v1092 = vadd.f32 0.0, %v1091
        %1093 = vmatprep.mubr.bf16.mxu0 %v886
        %1094 = vmatmul.mubr.bf16.gmra.mrb[0].mxu0 %v885
        %v1095 = vpop.f32.mrb[0].mxu0
        %v1096 = vadd.f32 0.0, %v1095
        %v1097 = vpop.f32.mrb[0].mxu0
        %v1098 = vadd.f32 0.0, %v1097
        %v1099 = vpop.f32.mrb[0].mxu0
        %v1100 = vadd.f32 0.0, %v1099
        %v1101 = vpop.f32.mrb[0].mxu0
        %v1102 = vadd.f32 0.0, %v1101
        %1103 = vdwg.mxu0
        %v1108 = vunpack.c.l.b16 %v798
        %v1109 = vunpack.c.h.b16 %v798
        %v1110 = vunpack.c.l.b16 %v799
        %v1111 = vunpack.c.h.b16 %v799
        %v1112 = vunpack.c.l.b16 %v800
        %v1113 = vunpack.c.h.b16 %v800
        %v1114 = vunpack.c.l.b16 %v801
        %v1115 = vunpack.c.h.b16 %v801
        %v1116 = vpack.c.b16 %v1110, %v1108
        %v1117 = vpack.c.b16 %v1111, %v1109
        %v1118 = vpack.c.b16 %v1114, %v1112
        %v1119 = vpack.c.b16 %v1115, %v1113
        %v1156 = vunpack.c.l.b16 %v802
        %v1157 = vunpack.c.h.b16 %v802
        %v1158 = vunpack.c.l.b16 %v803
        %v1159 = vunpack.c.h.b16 %v803
        %v1160 = vunpack.c.l.b16 %v804
        %v1161 = vunpack.c.h.b16 %v804
        %v1162 = vunpack.c.l.b16 %v805
        %v1163 = vunpack.c.h.b16 %v805
        %v1164 = vunpack.c.l.b16 %v806
        %v1165 = vunpack.c.h.b16 %v806
        %v1166 = vunpack.c.l.b16 %v807
        %v1167 = vunpack.c.h.b16 %v807
        %v1168 = vunpack.c.l.b16 %v808
        %v1169 = vunpack.c.h.b16 %v808
        %v1170 = vunpack.c.l.b16 %v809
        %v1171 = vunpack.c.h.b16 %v809
        %v1172 = vunpack.c.l.b16 %v810
        %v1173 = vunpack.c.h.b16 %v810
        %v1174 = vunpack.c.l.b16 %v811
        %v1175 = vunpack.c.h.b16 %v811
        %v1176 = vunpack.c.l.b16 %v812
        %v1177 = vunpack.c.h.b16 %v812
        %v1178 = vunpack.c.l.b16 %v813
        %v1179 = vunpack.c.h.b16 %v813
        %v1180 = vunpack.c.l.b16 %v814
        %v1181 = vunpack.c.h.b16 %v814
        %v1182 = vunpack.c.l.b16 %v815
        %v1183 = vunpack.c.h.b16 %v815
        %v1184 = vunpack.c.l.b16 %v816
        %v1185 = vunpack.c.h.b16 %v816
        %v1186 = vunpack.c.l.b16 %v817
        %v1187 = vunpack.c.h.b16 %v817
        %v1188 = vunpack.c.l.b16 %v818
        %v1189 = vunpack.c.h.b16 %v818
        %v1190 = vunpack.c.l.b16 %v819
        %v1191 = vunpack.c.h.b16 %v819
        %v1192 = vunpack.c.l.b16 %v820
        %v1193 = vunpack.c.h.b16 %v820
        %v1194 = vunpack.c.l.b16 %v821
        %v1195 = vunpack.c.h.b16 %v821
        %v1196 = vunpack.c.l.b16 %v822
        %v1197 = vunpack.c.h.b16 %v822
        %v1198 = vunpack.c.l.b16 %v823
        %v1199 = vunpack.c.h.b16 %v823
        %v1200 = vunpack.c.l.b16 %v824
        %v1201 = vunpack.c.h.b16 %v824
        %v1202 = vunpack.c.l.b16 %v825
        %v1203 = vunpack.c.h.b16 %v825
        %v1204 = vunpack.c.l.b16 %v826
        %v1205 = vunpack.c.h.b16 %v826
        %v1206 = vunpack.c.l.b16 %v827
        %v1207 = vunpack.c.h.b16 %v827
        %v1208 = vunpack.c.l.b16 %v828
        %v1209 = vunpack.c.h.b16 %v828
        %v1210 = vunpack.c.l.b16 %v829
        %v1211 = vunpack.c.h.b16 %v829
        %v1212 = vunpack.c.l.b16 %v830
        %v1213 = vunpack.c.h.b16 %v830
        %v1214 = vunpack.c.l.b16 %v831
        %v1215 = vunpack.c.h.b16 %v831
        %v1216 = vunpack.c.l.b16 %v832
        %v1217 = vunpack.c.h.b16 %v832
        %v1218 = vunpack.c.l.b16 %v833
        %v1219 = vunpack.c.h.b16 %v833
        %v1220 = vpack.c.b16 %v1158, %v1156
        %v1221 = vpack.c.b16 %v1159, %v1157
        %v1222 = vpack.c.b16 %v1162, %v1160
        %v1223 = vpack.c.b16 %v1163, %v1161
        %v1224 = vpack.c.b16 %v1166, %v1164
        %v1225 = vpack.c.b16 %v1167, %v1165
        %v1226 = vpack.c.b16 %v1170, %v1168
        %v1227 = vpack.c.b16 %v1171, %v1169
        %v1228 = vpack.c.b16 %v1174, %v1172
        %v1229 = vpack.c.b16 %v1175, %v1173
        %v1230 = vpack.c.b16 %v1178, %v1176
        %v1231 = vpack.c.b16 %v1179, %v1177
        %v1232 = vpack.c.b16 %v1182, %v1180
        %v1233 = vpack.c.b16 %v1183, %v1181
        %v1234 = vpack.c.b16 %v1186, %v1184
        %v1235 = vpack.c.b16 %v1187, %v1185
        %v1236 = vpack.c.b16 %v1190, %v1188
        %v1237 = vpack.c.b16 %v1191, %v1189
        %v1238 = vpack.c.b16 %v1194, %v1192
        %v1239 = vpack.c.b16 %v1195, %v1193
        %v1240 = vpack.c.b16 %v1198, %v1196
        %v1241 = vpack.c.b16 %v1199, %v1197
        %v1242 = vpack.c.b16 %v1202, %v1200
        %v1243 = vpack.c.b16 %v1203, %v1201
        %v1244 = vpack.c.b16 %v1206, %v1204
        %v1245 = vpack.c.b16 %v1207, %v1205
        %v1246 = vpack.c.b16 %v1210, %v1208
        %v1247 = vpack.c.b16 %v1211, %v1209
        %v1248 = vpack.c.b16 %v1214, %v1212
        %v1249 = vpack.c.b16 %v1215, %v1213
        %v1250 = vpack.c.b16 %v1218, %v1216
        %v1251 = vpack.c.b16 %v1219, %v1217
        %1284 = vmatprep.subr.bf16.mxu0 %v1221
        %1285 = vmatpush1.bf16.msra.mxu0 %v1220
        %1286 = vmatprep.subr.bf16.mxu0 %v1223
        %1287 = vmatpush1.bf16.msra.mxu0 %v1222
        %1288 = vmatprep.subr.bf16.mxu0 %v1225
        %1289 = vmatpush1.bf16.msra.mxu0 %v1224
        %1290 = vmatprep.subr.bf16.mxu0 %v1227
        %1291 = vmatpush1.bf16.msra.mxu0 %v1226
        %1292 = vmatprep.subr.bf16.mxu0 %v1229
        %1293 = vmatpush1.bf16.msra.mxu0 %v1228
        %1294 = vmatprep.subr.bf16.mxu0 %v1231
        %1295 = vmatpush1.bf16.msra.mxu0 %v1230
        %1296 = vmatprep.subr.bf16.mxu0 %v1233
        %1297 = vmatpush1.bf16.msra.mxu0 %v1232
        %1298 = vmatprep.subr.bf16.mxu0 %v1235
        %1299 = vmatpush1.bf16.msra.mxu0 %v1234
        %1300 = vmatprep.subr.bf16.mxu0 %v1237
        %1301 = vmatpush1.bf16.msra.mxu0 %v1236
        %1302 = vmatprep.subr.bf16.mxu0 %v1239
        %1303 = vmatpush1.bf16.msra.mxu0 %v1238
        %1304 = vmatprep.subr.bf16.mxu0 %v1241
        %1305 = vmatpush1.bf16.msra.mxu0 %v1240
        %1306 = vmatprep.subr.bf16.mxu0 %v1243
        %1307 = vmatpush1.bf16.msra.mxu0 %v1242
        %1308 = vmatprep.subr.bf16.mxu0 %v1245
        %1309 = vmatpush1.bf16.msra.mxu0 %v1244
        %1310 = vmatprep.subr.bf16.mxu0 %v1247
        %1311 = vmatpush1.bf16.msra.mxu0 %v1246
        %1312 = vmatprep.subr.bf16.mxu0 %v1249
        %1313 = vmatpush1.bf16.msra.mxu0 %v1248
        %1314 = vmatprep.subr.bf16.mxu0 %v1251
        %1315 = vmatpush1.bf16.msra.mxu0 %v1250
        %1316 = vmatprep.mubr.bf16.mxu0 %v1117
        %1317 = vmatmul.mubr.bf16.gmra.mrb[0].mxu0 %v1116
        %v1318 = vpop.f32.mrb[0].mxu0
        %v1319 = vadd.f32 %v1086, %v1318
        %v1320 = vpop.f32.mrb[0].mxu0
        %v1321 = vadd.f32 %v1088, %v1320
        %v1322 = vpop.f32.mrb[0].mxu0
        %v1323 = vadd.f32 %v1090, %v1322
        %v1324 = vpop.f32.mrb[0].mxu0
        %v1325 = vadd.f32 %v1092, %v1324
        %1326 = vmatprep.mubr.bf16.mxu0 %v1119
        %1327 = vmatmul.mubr.bf16.gmra.mrb[0].mxu0 %v1118
        %v1328 = vpop.f32.mrb[0].mxu0
        %v1329 = vadd.f32 %v1096, %v1328
        %v1330 = vpop.f32.mrb[0].mxu0
        %v1331 = vadd.f32 %v1098, %v1330
        %v1332 = vpop.f32.mrb[0].mxu0
        %v1333 = vadd.f32 %v1100, %v1332
        %v1334 = vpop.f32.mrb[0].mxu0
        %v1335 = vadd.f32 %v1102, %v1334
        %1336 = vdwg.mxu0
        %v1337 = vld [vmem:[#allocation2] sm:$0xff]
        %v1338 = vld [vmem:[#allocation2 + $0x8] sm:$0xff]
        %v1339 = vld [vmem:[#allocation2 + $0x10] sm:$0xff]
        %v1340 = vld [vmem:[#allocation2 + $0x18] sm:$0xff]
        %v1341 = vld [vmem:[#allocation2 + $0x20] sm:$0x11]
        %s1342 = scalar_lea.vmem %s5, 512
        %v1343 = vld [vmem:[%s1342] sm:$0xff]
        %v1344 = vld [vmem:[%s1342 + $0x8] sm:$0xff]
        %v1345 = vld [vmem:[%s1342 + $0x10] sm:$0xff]
        %v1346 = vld [vmem:[%s1342 + $0x18] sm:$0xff]
        %v1347 = vld [vmem:[%s1342 + $0x20] sm:$0xff]
        %v1348 = vld [vmem:[%s1342 + $0x28] sm:$0xff]
        %v1349 = vld [vmem:[%s1342 + $0x30] sm:$0xff]
        %v1350 = vld [vmem:[%s1342 + $0x38] sm:$0xff]
        %v1351 = vld [vmem:[%s1342 + $0x40] sm:$0xff]
        %v1352 = vld [vmem:[%s1342 + $0x48] sm:$0xff]
        %v1353 = vld [vmem:[%s1342 + $0x50] sm:$0xff]
        %v1354 = vld [vmem:[%s1342 + $0x58] sm:$0xff]
        %v1355 = vld [vmem:[%s1342 + $0x60] sm:$0xff]
        %v1356 = vld [vmem:[%s1342 + $0x68] sm:$0xff]
        %v1357 = vld [vmem:[%s1342 + $0x70] sm:$0xff]
        %v1358 = vld [vmem:[%s1342 + $0x78] sm:$0xff]
        %v1359 = vld [vmem:[%s1342 + $0x80] sm:$0xff]
        %v1360 = vld [vmem:[%s1342 + $0x88] sm:$0xff]
        %v1361 = vld [vmem:[%s1342 + $0x90] sm:$0xff]
        %v1362 = vld [vmem:[%s1342 + $0x98] sm:$0xff]
        %v1363 = vld [vmem:[%s1342 + $0xa0] sm:$0xff]
        %v1364 = vld [vmem:[%s1342 + $0xa8] sm:$0xff]
        %v1365 = vld [vmem:[%s1342 + $0xb0] sm:$0xff]
        %v1366 = vld [vmem:[%s1342 + $0xb8] sm:$0xff]
        %v1367 = vld [vmem:[%s1342 + $0xc0] sm:$0xff]
        %v1368 = vld [vmem:[%s1342 + $0xc8] sm:$0xff]
        %v1369 = vld [vmem:[%s1342 + $0xd0] sm:$0xff]
        %v1370 = vld [vmem:[%s1342 + $0xd8] sm:$0xff]
        %v1371 = vld [vmem:[%s1342 + $0xe0] sm:$0xff]
        %v1372 = vld [vmem:[%s1342 + $0xe8] sm:$0xff]
        %v1373 = vld [vmem:[%s1342 + $0xf0] sm:$0xff]
        %v1374 = vld [vmem:[%s1342 + $0xf8] sm:$0xff]
        %v1380 = vunpack.c.l.b16 %v1337
        %v1381 = vunpack.c.h.b16 %v1337
        %v1382 = vunpack.c.l.b16 %v1338
        %v1383 = vunpack.c.h.b16 %v1338
        %v1384 = vunpack.c.l.b16 %v1339
        %v1385 = vunpack.c.h.b16 %v1339
        %v1386 = vunpack.c.l.b16 %v1340
        %v1387 = vunpack.c.h.b16 %v1340
        %v1388 = vunpack.c.l.b16 %v1341
        %v1389 = vunpack.c.h.b16 %v1341
        %v1390 = vpack.c.b16 %v1382, %v1380
        %v1391 = vpack.c.b16 %v1383, %v1381
        %v1392 = vpack.c.b16 %v1386, %v1384
        %v1393 = vpack.c.b16 %v1387, %v1385
        %v1394 = vpack.c.b16 %v1388, %v1388
        %v1395 = vpack.c.b16 %v1389, %v1389
        %vm1396 = vsmask.f32 7424
        %v1398 = vshrl.u32 %v1390, 16
        %v1400 = vshll.u32 %v1390, 16
        %v1402 = vrot.slane %v1400, 1
        %v1403 = vor.u32 %v1398, %v1402
        %v1405 = vshll.u32 %v1392, 16
        %v1407 = vrot.slane %v1405, 1
        %v1408 = vsel %vm1396, %v1403, %v1407
        %v1410 = vshrl.u32 %v1391, 16
        %v1412 = vshll.u32 %v1391, 16
        %v1414 = vrot.slane %v1412, 1
        %v1415 = vor.u32 %v1410, %v1414
        %v1417 = vshll.u32 %v1393, 16
        %v1419 = vrot.slane %v1417, 1
        %v1420 = vsel %vm1396, %v1415, %v1419
        %v1421 = vshrl.u32 %v1392, 16
        %v1423 = vor.u32 %v1421, %v1407
        %v1425 = vshll.u32 %v1394, 16
        %v1427 = vrot.slane %v1425, 1
        %v1428 = vsel %vm1396, %v1423, %v1427
        %v1429 = vshrl.u32 %v1393, 16
        %v1431 = vor.u32 %v1429, %v1419
        %v1433 = vshll.u32 %v1395, 16
        %v1435 = vrot.slane %v1433, 1
        %v1436 = vsel %vm1396, %v1431, %v1435
        %v1473 = vunpack.c.l.b16 %v1343
        %v1474 = vunpack.c.h.b16 %v1343
        %v1475 = vunpack.c.l.b16 %v1344
        %v1476 = vunpack.c.h.b16 %v1344
        %v1477 = vunpack.c.l.b16 %v1345
        %v1478 = vunpack.c.h.b16 %v1345
        %v1479 = vunpack.c.l.b16 %v1346
        %v1480 = vunpack.c.h.b16 %v1346
        %v1481 = vunpack.c.l.b16 %v1347
        %v1482 = vunpack.c.h.b16 %v1347
        %v1483 = vunpack.c.l.b16 %v1348
        %v1484 = vunpack.c.h.b16 %v1348
        %v1485 = vunpack.c.l.b16 %v1349
        %v1486 = vunpack.c.h.b16 %v1349
        %v1487 = vunpack.c.l.b16 %v1350
        %v1488 = vunpack.c.h.b16 %v1350
        %v1489 = vunpack.c.l.b16 %v1351
        %v1490 = vunpack.c.h.b16 %v1351
        %v1491 = vunpack.c.l.b16 %v1352
        %v1492 = vunpack.c.h.b16 %v1352
        %v1493 = vunpack.c.l.b16 %v1353
        %v1494 = vunpack.c.h.b16 %v1353
        %v1495 = vunpack.c.l.b16 %v1354
        %v1496 = vunpack.c.h.b16 %v1354
        %v1497 = vunpack.c.l.b16 %v1355
        %v1498 = vunpack.c.h.b16 %v1355
        %v1499 = vunpack.c.l.b16 %v1356
        %v1500 = vunpack.c.h.b16 %v1356
        %v1501 = vunpack.c.l.b16 %v1357
        %v1502 = vunpack.c.h.b16 %v1357
        %v1503 = vunpack.c.l.b16 %v1358
        %v1504 = vunpack.c.h.b16 %v1358
        %v1505 = vunpack.c.l.b16 %v1359
        %v1506 = vunpack.c.h.b16 %v1359
        %v1507 = vunpack.c.l.b16 %v1360
        %v1508 = vunpack.c.h.b16 %v1360
        %v1509 = vunpack.c.l.b16 %v1361
        %v1510 = vunpack.c.h.b16 %v1361
        %v1511 = vunpack.c.l.b16 %v1362
        %v1512 = vunpack.c.h.b16 %v1362
        %v1513 = vunpack.c.l.b16 %v1363
        %v1514 = vunpack.c.h.b16 %v1363
        %v1515 = vunpack.c.l.b16 %v1364
        %v1516 = vunpack.c.h.b16 %v1364
        %v1517 = vunpack.c.l.b16 %v1365
        %v1518 = vunpack.c.h.b16 %v1365
        %v1519 = vunpack.c.l.b16 %v1366
        %v1520 = vunpack.c.h.b16 %v1366
        %v1521 = vunpack.c.l.b16 %v1367
        %v1522 = vunpack.c.h.b16 %v1367
        %v1523 = vunpack.c.l.b16 %v1368
        %v1524 = vunpack.c.h.b16 %v1368
        %v1525 = vunpack.c.l.b16 %v1369
        %v1526 = vunpack.c.h.b16 %v1369
        %v1527 = vunpack.c.l.b16 %v1370
        %v1528 = vunpack.c.h.b16 %v1370
        %v1529 = vunpack.c.l.b16 %v1371
        %v1530 = vunpack.c.h.b16 %v1371
        %v1531 = vunpack.c.l.b16 %v1372
        %v1532 = vunpack.c.h.b16 %v1372
        %v1533 = vunpack.c.l.b16 %v1373
        %v1534 = vunpack.c.h.b16 %v1373
        %v1535 = vunpack.c.l.b16 %v1374
        %v1536 = vunpack.c.h.b16 %v1374
        %v1537 = vpack.c.b16 %v1475, %v1473
        %v1538 = vpack.c.b16 %v1476, %v1474
        %v1539 = vpack.c.b16 %v1479, %v1477
        %v1540 = vpack.c.b16 %v1480, %v1478
        %v1541 = vpack.c.b16 %v1483, %v1481
        %v1542 = vpack.c.b16 %v1484, %v1482
        %v1543 = vpack.c.b16 %v1487, %v1485
        %v1544 = vpack.c.b16 %v1488, %v1486
        %v1545 = vpack.c.b16 %v1491, %v1489
        %v1546 = vpack.c.b16 %v1492, %v1490
        %v1547 = vpack.c.b16 %v1495, %v1493
        %v1548 = vpack.c.b16 %v1496, %v1494
        %v1549 = vpack.c.b16 %v1499, %v1497
        %v1550 = vpack.c.b16 %v1500, %v1498
        %v1551 = vpack.c.b16 %v1503, %v1501
        %v1552 = vpack.c.b16 %v1504, %v1502
        %v1553 = vpack.c.b16 %v1507, %v1505
        %v1554 = vpack.c.b16 %v1508, %v1506
        %v1555 = vpack.c.b16 %v1511, %v1509
        %v1556 = vpack.c.b16 %v1512, %v1510
        %v1557 = vpack.c.b16 %v1515, %v1513
        %v1558 = vpack.c.b16 %v1516, %v1514
        %v1559 = vpack.c.b16 %v1519, %v1517
        %v1560 = vpack.c.b16 %v1520, %v1518
        %v1561 = vpack.c.b16 %v1523, %v1521
        %v1562 = vpack.c.b16 %v1524, %v1522
        %v1563 = vpack.c.b16 %v1527, %v1525
        %v1564 = vpack.c.b16 %v1528, %v1526
        %v1565 = vpack.c.b16 %v1531, %v1529
        %v1566 = vpack.c.b16 %v1532, %v1530
        %v1567 = vpack.c.b16 %v1535, %v1533
        %v1568 = vpack.c.b16 %v1536, %v1534
        %1601 = vmatprep.subr.bf16.mxu0 %v1538
        %1602 = vmatpush1.bf16.msra.mxu0 %v1537
        %1603 = vmatprep.subr.bf16.mxu0 %v1540
        %1604 = vmatpush1.bf16.msra.mxu0 %v1539
        %1605 = vmatprep.subr.bf16.mxu0 %v1542
        %1606 = vmatpush1.bf16.msra.mxu0 %v1541
        %1607 = vmatprep.subr.bf16.mxu0 %v1544
        %1608 = vmatpush1.bf16.msra.mxu0 %v1543
        %1609 = vmatprep.subr.bf16.mxu0 %v1546
        %1610 = vmatpush1.bf16.msra.mxu0 %v1545
        %1611 = vmatprep.subr.bf16.mxu0 %v1548
        %1612 = vmatpush1.bf16.msra.mxu0 %v1547
        %1613 = vmatprep.subr.bf16.mxu0 %v1550
        %1614 = vmatpush1.bf16.msra.mxu0 %v1549
        %1615 = vmatprep.subr.bf16.mxu0 %v1552
        %1616 = vmatpush1.bf16.msra.mxu0 %v1551
        %1617 = vmatprep.subr.bf16.mxu0 %v1554
        %1618 = vmatpush1.bf16.msra.mxu0 %v1553
        %1619 = vmatprep.subr.bf16.mxu0 %v1556
        %1620 = vmatpush1.bf16.msra.mxu0 %v1555
        %1621 = vmatprep.subr.bf16.mxu0 %v1558
        %1622 = vmatpush1.bf16.msra.mxu0 %v1557
        %1623 = vmatprep.subr.bf16.mxu0 %v1560
        %1624 = vmatpush1.bf16.msra.mxu0 %v1559
        %1625 = vmatprep.subr.bf16.mxu0 %v1562
        %1626 = vmatpush1.bf16.msra.mxu0 %v1561
        %1627 = vmatprep.subr.bf16.mxu0 %v1564
        %1628 = vmatpush1.bf16.msra.mxu0 %v1563
        %1629 = vmatprep.subr.bf16.mxu0 %v1566
        %1630 = vmatpush1.bf16.msra.mxu0 %v1565
        %1631 = vmatprep.subr.bf16.mxu0 %v1568
        %1632 = vmatpush1.bf16.msra.mxu0 %v1567
        %1633 = vmatprep.mubr.bf16.mxu0 %v1420
        %1634 = vmatmul.mubr.bf16.gmra.mrb[0].mxu0 %v1408
        %v1635 = vpop.f32.mrb[0].mxu0
        %v1636 = vadd.f32 0.0, %v1635
        %v1637 = vpop.f32.mrb[0].mxu0
        %v1638 = vadd.f32 0.0, %v1637
        %v1639 = vpop.f32.mrb[0].mxu0
        %v1640 = vadd.f32 0.0, %v1639
        %v1641 = vpop.f32.mrb[0].mxu0
        %v1642 = vadd.f32 0.0, %v1641
        %1643 = vmatprep.mubr.bf16.mxu0 %v1436
        %1644 = vmatmul.mubr.bf16.gmra.mrb[0].mxu0 %v1428
        %v1645 = vpop.f32.mrb[0].mxu0
        %v1646 = vadd.f32 0.0, %v1645
        %v1647 = vpop.f32.mrb[0].mxu0
        %v1648 = vadd.f32 0.0, %v1647
        %v1649 = vpop.f32.mrb[0].mxu0
        %v1650 = vadd.f32 0.0, %v1649
        %v1651 = vpop.f32.mrb[0].mxu0
        %v1652 = vadd.f32 0.0, %v1651
        %1653 = vdwg.mxu0
        %v1654 = vadd.f32 %v1319, %v1636
        %v1655 = vadd.f32 %v1321, %v1638
        %v1656 = vadd.f32 %v1323, %v1640
        %v1657 = vadd.f32 %v1325, %v1642
        %v1658 = vadd.f32 %v1329, %v1646
        %v1659 = vadd.f32 %v1331, %v1648
        %v1660 = vadd.f32 %v1333, %v1650
        %v1661 = vadd.f32 %v1335, %v1652
        %v1662 = vld [vmem:[%s706] sm:$0xff]
        %v1663 = vld [vmem:[%s706 + $0x8] sm:$0xff]
        %v1664 = vld [vmem:[%s706 + $0x10] sm:$0xff]
        %v1665 = vld [vmem:[%s706 + $0x18] sm:$0xff]
        %v1666 = vld [vmem:[%s706 + $0x20] sm:$0x11]
        %s1667 = scalar_lea.vmem %s5, 768
        %v1668 = vld [vmem:[%s1667] sm:$0xff]
        %v1669 = vld [vmem:[%s1667 + $0x8] sm:$0xff]
        %v1670 = vld [vmem:[%s1667 + $0x10] sm:$0xff]
        %v1671 = vld [vmem:[%s1667 + $0x18] sm:$0xff]
        %v1672 = vld [vmem:[%s1667 + $0x20] sm:$0xff]
        %v1673 = vld [vmem:[%s1667 + $0x28] sm:$0xff]
        %v1674 = vld [vmem:[%s1667 + $0x30] sm:$0xff]
        %v1675 = vld [vmem:[%s1667 + $0x38] sm:$0xff]
        %v1676 = vld [vmem:[%s1667 + $0x40] sm:$0xff]
        %v1677 = vld [vmem:[%s1667 + $0x48] sm:$0xff]
        %v1678 = vld [vmem:[%s1667 + $0x50] sm:$0xff]
        %v1679 = vld [vmem:[%s1667 + $0x58] sm:$0xff]
        %v1680 = vld [vmem:[%s1667 + $0x60] sm:$0xff]
        %v1681 = vld [vmem:[%s1667 + $0x68] sm:$0xff]
        %v1682 = vld [vmem:[%s1667 + $0x70] sm:$0xff]
        %v1683 = vld [vmem:[%s1667 + $0x78] sm:$0xff]
        %v1684 = vld [vmem:[%s1667 + $0x80] sm:$0xff]
        %v1685 = vld [vmem:[%s1667 + $0x88] sm:$0xff]
        %v1686 = vld [vmem:[%s1667 + $0x90] sm:$0xff]
        %v1687 = vld [vmem:[%s1667 + $0x98] sm:$0xff]
        %v1688 = vld [vmem:[%s1667 + $0xa0] sm:$0xff]
        %v1689 = vld [vmem:[%s1667 + $0xa8] sm:$0xff]
        %v1690 = vld [vmem:[%s1667 + $0xb0] sm:$0xff]
        %v1691 = vld [vmem:[%s1667 + $0xb8] sm:$0xff]
        %v1692 = vld [vmem:[%s1667 + $0xc0] sm:$0xff]
        %v1693 = vld [vmem:[%s1667 + $0xc8] sm:$0xff]
        %v1694 = vld [vmem:[%s1667 + $0xd0] sm:$0xff]
        %v1695 = vld [vmem:[%s1667 + $0xd8] sm:$0xff]
        %v1696 = vld [vmem:[%s1667 + $0xe0] sm:$0xff]
        %v1697 = vld [vmem:[%s1667 + $0xe8] sm:$0xff]
        %v1698 = vld [vmem:[%s1667 + $0xf0] sm:$0xff]
        %v1699 = vld [vmem:[%s1667 + $0xf8] sm:$0xff]
        %v1705 = vunpack.c.l.b16 %v1662
        %v1706 = vunpack.c.h.b16 %v1662
        %v1707 = vunpack.c.l.b16 %v1663
        %v1708 = vunpack.c.h.b16 %v1663
        %v1709 = vunpack.c.l.b16 %v1664
        %v1710 = vunpack.c.h.b16 %v1664
        %v1711 = vunpack.c.l.b16 %v1665
        %v1712 = vunpack.c.h.b16 %v1665
        %v1713 = vunpack.c.l.b16 %v1666
        %v1714 = vunpack.c.h.b16 %v1666
        %v1715 = vpack.c.b16 %v1707, %v1705
        %v1716 = vpack.c.b16 %v1708, %v1706
        %v1717 = vpack.c.b16 %v1711, %v1709
        %v1718 = vpack.c.b16 %v1712, %v1710
        %v1719 = vpack.c.b16 %v1713, %v1713
        %v1720 = vpack.c.b16 %v1714, %v1714
        %v1722 = vshrl.u32 %v1715, 16
        %v1724 = vshll.u32 %v1715, 16
        %v1726 = vrot.slane %v1724, 1
        %v1727 = vor.u32 %v1722, %v1726
        %v1729 = vshll.u32 %v1717, 16
        %v1731 = vrot.slane %v1729, 1
        %v1732 = vsel %vm1396, %v1727, %v1731
        %v1734 = vshrl.u32 %v1716, 16
        %v1736 = vshll.u32 %v1716, 16
        %v1738 = vrot.slane %v1736, 1
        %v1739 = vor.u32 %v1734, %v1738
        %v1741 = vshll.u32 %v1718, 16
        %v1743 = vrot.slane %v1741, 1
        %v1744 = vsel %vm1396, %v1739, %v1743
        %v1745 = vshrl.u32 %v1717, 16
        %v1747 = vor.u32 %v1745, %v1731
        %v1749 = vshll.u32 %v1719, 16
        %v1751 = vrot.slane %v1749, 1
        %v1752 = vsel %vm1396, %v1747, %v1751
        %v1753 = vshrl.u32 %v1718, 16
        %v1755 = vor.u32 %v1753, %v1743
        %v1757 = vshll.u32 %v1720, 16
        %v1759 = vrot.slane %v1757, 1
        %v1760 = vsel %vm1396, %v1755, %v1759
        %v1797 = vunpack.c.l.b16 %v1668
        %v1798 = vunpack.c.h.b16 %v1668
        %v1799 = vunpack.c.l.b16 %v1669
        %v1800 = vunpack.c.h.b16 %v1669
        %v1801 = vunpack.c.l.b16 %v1670
        %v1802 = vunpack.c.h.b16 %v1670
        %v1803 = vunpack.c.l.b16 %v1671
        %v1804 = vunpack.c.h.b16 %v1671
        %v1805 = vunpack.c.l.b16 %v1672
        %v1806 = vunpack.c.h.b16 %v1672
        %v1807 = vunpack.c.l.b16 %v1673
        %v1808 = vunpack.c.h.b16 %v1673
        %v1809 = vunpack.c.l.b16 %v1674
        %v1810 = vunpack.c.h.b16 %v1674
        %v1811 = vunpack.c.l.b16 %v1675
        %v1812 = vunpack.c.h.b16 %v1675
        %v1813 = vunpack.c.l.b16 %v1676
        %v1814 = vunpack.c.h.b16 %v1676
        %v1815 = vunpack.c.l.b16 %v1677
        %v1816 = vunpack.c.h.b16 %v1677
        %v1817 = vunpack.c.l.b16 %v1678
        %v1818 = vunpack.c.h.b16 %v1678
        %v1819 = vunpack.c.l.b16 %v1679
        %v1820 = vunpack.c.h.b16 %v1679
        %v1821 = vunpack.c.l.b16 %v1680
        %v1822 = vunpack.c.h.b16 %v1680
        %v1823 = vunpack.c.l.b16 %v1681
        %v1824 = vunpack.c.h.b16 %v1681
        %v1825 = vunpack.c.l.b16 %v1682
        %v1826 = vunpack.c.h.b16 %v1682
        %v1827 = vunpack.c.l.b16 %v1683
        %v1828 = vunpack.c.h.b16 %v1683
        %v1829 = vunpack.c.l.b16 %v1684
        %v1830 = vunpack.c.h.b16 %v1684
        %v1831 = vunpack.c.l.b16 %v1685
        %v1832 = vunpack.c.h.b16 %v1685
        %v1833 = vunpack.c.l.b16 %v1686
        %v1834 = vunpack.c.h.b16 %v1686
        %v1835 = vunpack.c.l.b16 %v1687
        %v1836 = vunpack.c.h.b16 %v1687
        %v1837 = vunpack.c.l.b16 %v1688
        %v1838 = vunpack.c.h.b16 %v1688
        %v1839 = vunpack.c.l.b16 %v1689
        %v1840 = vunpack.c.h.b16 %v1689
        %v1841 = vunpack.c.l.b16 %v1690
        %v1842 = vunpack.c.h.b16 %v1690
        %v1843 = vunpack.c.l.b16 %v1691
        %v1844 = vunpack.c.h.b16 %v1691
        %v1845 = vunpack.c.l.b16 %v1692
        %v1846 = vunpack.c.h.b16 %v1692
        %v1847 = vunpack.c.l.b16 %v1693
        %v1848 = vunpack.c.h.b16 %v1693
        %v1849 = vunpack.c.l.b16 %v1694
        %v1850 = vunpack.c.h.b16 %v1694
        %v1851 = vunpack.c.l.b16 %v1695
        %v1852 = vunpack.c.h.b16 %v1695
        %v1853 = vunpack.c.l.b16 %v1696
        %v1854 = vunpack.c.h.b16 %v1696
        %v1855 = vunpack.c.l.b16 %v1697
        %v1856 = vunpack.c.h.b16 %v1697
        %v1857 = vunpack.c.l.b16 %v1698
        %v1858 = vunpack.c.h.b16 %v1698
        %v1859 = vunpack.c.l.b16 %v1699
        %v1860 = vunpack.c.h.b16 %v1699
        %v1861 = vpack.c.b16 %v1799, %v1797
        %v1862 = vpack.c.b16 %v1800, %v1798
        %v1863 = vpack.c.b16 %v1803, %v1801
        %v1864 = vpack.c.b16 %v1804, %v1802
        %v1865 = vpack.c.b16 %v1807, %v1805
        %v1866 = vpack.c.b16 %v1808, %v1806
        %v1867 = vpack.c.b16 %v1811, %v1809
        %v1868 = vpack.c.b16 %v1812, %v1810
        %v1869 = vpack.c.b16 %v1815, %v1813
        %v1870 = vpack.c.b16 %v1816, %v1814
        %v1871 = vpack.c.b16 %v1819, %v1817
        %v1872 = vpack.c.b16 %v1820, %v1818
        %v1873 = vpack.c.b16 %v1823, %v1821
        %v1874 = vpack.c.b16 %v1824, %v1822
        %v1875 = vpack.c.b16 %v1827, %v1825
        %v1876 = vpack.c.b16 %v1828, %v1826
        %v1877 = vpack.c.b16 %v1831, %v1829
        %v1878 = vpack.c.b16 %v1832, %v1830
        %v1879 = vpack.c.b16 %v1835, %v1833
        %v1880 = vpack.c.b16 %v1836, %v1834
        %v1881 = vpack.c.b16 %v1839, %v1837
        %v1882 = vpack.c.b16 %v1840, %v1838
        %v1883 = vpack.c.b16 %v1843, %v1841
        %v1884 = vpack.c.b16 %v1844, %v1842
        %v1885 = vpack.c.b16 %v1847, %v1845
        %v1886 = vpack.c.b16 %v1848, %v1846
        %v1887 = vpack.c.b16 %v1851, %v1849
        %v1888 = vpack.c.b16 %v1852, %v1850
        %v1889 = vpack.c.b16 %v1855, %v1853
        %v1890 = vpack.c.b16 %v1856, %v1854
        %v1891 = vpack.c.b16 %v1859, %v1857
        %v1892 = vpack.c.b16 %v1860, %v1858
        %1925 = vmatprep.subr.bf16.mxu0 %v1862
        %1926 = vmatpush1.bf16.msra.mxu0 %v1861
        %1927 = vmatprep.subr.bf16.mxu0 %v1864
        %1928 = vmatpush1.bf16.msra.mxu0 %v1863
        %1929 = vmatprep.subr.bf16.mxu0 %v1866
        %1930 = vmatpush1.bf16.msra.mxu0 %v1865
        %1931 = vmatprep.subr.bf16.mxu0 %v1868
        %1932 = vmatpush1.bf16.msra.mxu0 %v1867
        %1933 = vmatprep.subr.bf16.mxu0 %v1870
        %1934 = vmatpush1.bf16.msra.mxu0 %v1869
        %1935 = vmatprep.subr.bf16.mxu0 %v1872
        %1936 = vmatpush1.bf16.msra.mxu0 %v1871
        %1937 = vmatprep.subr.bf16.mxu0 %v1874
        %1938 = vmatpush1.bf16.msra.mxu0 %v1873
        %1939 = vmatprep.subr.bf16.mxu0 %v1876
        %1940 = vmatpush1.bf16.msra.mxu0 %v1875
        %1941 = vmatprep.subr.bf16.mxu0 %v1878
        %1942 = vmatpush1.bf16.msra.mxu0 %v1877
        %1943 = vmatprep.subr.bf16.mxu0 %v1880
        %1944 = vmatpush1.bf16.msra.mxu0 %v1879
        %1945 = vmatprep.subr.bf16.mxu0 %v1882
        %1946 = vmatpush1.bf16.msra.mxu0 %v1881
        %1947 = vmatprep.subr.bf16.mxu0 %v1884
        %1948 = vmatpush1.bf16.msra.mxu0 %v1883
        %1949 = vmatprep.subr.bf16.mxu0 %v1886
        %1950 = vmatpush1.bf16.msra.mxu0 %v1885
        %1951 = vmatprep.subr.bf16.mxu0 %v1888
        %1952 = vmatpush1.bf16.msra.mxu0 %v1887
        %1953 = vmatprep.subr.bf16.mxu0 %v1890
        %1954 = vmatpush1.bf16.msra.mxu0 %v1889
        %1955 = vmatprep.subr.bf16.mxu0 %v1892
        %1956 = vmatpush1.bf16.msra.mxu0 %v1891
        %1957 = vmatprep.mubr.bf16.mxu0 %v1744
        %1958 = vmatmul.mubr.bf16.gmra.mrb[0].mxu0 %v1732
        %v1959 = vpop.f32.mrb[0].mxu0
        %v1960 = vadd.f32 0.0, %v1959
        %v1961 = vpop.f32.mrb[0].mxu0
        %v1962 = vadd.f32 0.0, %v1961
        %v1963 = vpop.f32.mrb[0].mxu0
        %v1964 = vadd.f32 0.0, %v1963
        %v1965 = vpop.f32.mrb[0].mxu0
        %v1966 = vadd.f32 0.0, %v1965
        %1967 = vmatprep.mubr.bf16.mxu0 %v1760
        %1968 = vmatmul.mubr.bf16.gmra.mrb[0].mxu0 %v1752
        %v1969 = vpop.f32.mrb[0].mxu0
        %v1970 = vadd.f32 0.0, %v1969
        %v1971 = vpop.f32.mrb[0].mxu0
        %v1972 = vadd.f32 0.0, %v1971
        %v1973 = vpop.f32.mrb[0].mxu0
        %v1974 = vadd.f32 0.0, %v1973
        %v1975 = vpop.f32.mrb[0].mxu0
        %v1976 = vadd.f32 0.0, %v1975
        %1977 = vdwg.mxu0
        %v1978 = vadd.f32 %v1654, %v1960
        %v1979 = vadd.f32 %v1655, %v1962
        %v1980 = vadd.f32 %v1656, %v1964
        %v1981 = vadd.f32 %v1657, %v1966
        %v1982 = vadd.f32 %v1658, %v1970
        %v1983 = vadd.f32 %v1659, %v1972
        %v1984 = vadd.f32 %v1660, %v1974
        %v1985 = vadd.f32 %v1661, %v1976
        %v1986 = vmax.f32 %v1978, 0.0
        %v1987 = vmax.f32 %v1979, 0.0
        %v1988 = vmax.f32 %v1980, 0.0
        %v1989 = vmax.f32 %v1981, 0.0
        %v1990 = vmax.f32 %v1982, 0.0
        %v1991 = vmax.f32 %v1983, 0.0
        %v1992 = vmax.f32 %v1984, 0.0
        %v1993 = vmax.f32 %v1985, 0.0
        %v1994 = vpack.c.bf16 %v1988, %v1986
        %v1995 = vpack.c.bf16 %v1989, %v1987
        %v1996 = vpack.c.bf16 %v1992, %v1990
        %v1997 = vpack.c.bf16 %v1993, %v1991
        %v1998 = vld [vmem:[%s2] sm:$0xf]
        %v1999 = vld [vmem:[%s2 + $0x4] sm:$0xf]
        %v2002 = vunpack.c.l.b16 %v1998
        %v2003 = vunpack.c.l.b16 %v1999
        %v2004 = vpack.c.b16 %v2003, %v2002
        %vm2005 = vcmask 261120
        %v2007 = vsel %vm2005, %v2004, 0
        %2009 = vmatprep.subr.bf16.mxu0 %v1995
        %2010 = vmatpush1.bf16.msra.mxu0 %v1994
        %2011 = vmatprep.subr.bf16.mxu0 %v1997
        %2012 = vmatpush1.bf16.msra.mxu0 %v1996
        %2013 = vmatprep.subr.bf16.mxu0 0
        %2014 = vmatpush1.bf16.msra.mxu0 0
        %2015 = vmatprep.subr.bf16.mxu0 0
        %2016 = vmatpush1.bf16.msra.mxu0 0
        %2017 = vmatprep.subr.bf16.mxu0 0
        %2018 = vmatpush1.bf16.msra.mxu0 0
        %2019 = vmatprep.subr.bf16.mxu0 0
        %2020 = vmatpush1.bf16.msra.mxu0 0
        %2021 = vmatprep.subr.bf16.mxu0 0
        %2022 = vmatpush1.bf16.msra.mxu0 0
        %2023 = vmatprep.subr.bf16.mxu0 0
        %2024 = vmatpush1.bf16.msra.mxu0 0
        %2025 = vmatprep.subr.bf16.mxu0 0
        %2026 = vmatpush1.bf16.msra.mxu0 0
        %2027 = vmatprep.subr.bf16.mxu0 0
        %2028 = vmatpush1.bf16.msra.mxu0 0
        %2029 = vmatprep.subr.bf16.mxu0 0
        %2030 = vmatpush1.bf16.msra.mxu0 0
        %2031 = vmatprep.subr.bf16.mxu0 0
        %2032 = vmatpush1.bf16.msra.mxu0 0
        %2033 = vmatprep.subr.bf16.mxu0 0
        %2034 = vmatpush1.bf16.msra.mxu0 0
        %2035 = vmatprep.subr.bf16.mxu0 0
        %2036 = vmatpush1.bf16.msra.mxu0 0
        %2037 = vmatprep.subr.bf16.mxu0 0
        %2038 = vmatpush1.bf16.msra.mxu0 0
        %2039 = vmatprep.subr.bf16.mxu0 0
        %2040 = vmatpush1.bf16.msra.mxu0 0
        %2041 = vmatprep.mubr.bf16.mxu0 0
        %2042 = vmatmul.mubr.bf16.gmra.mrb[0].mxu0 %v2007
        %v2043 = vpop.f32.mrb[0].mxu0
        %v2044 = vadd.f32 0.0, %v2043
        %v2045 = vpop.f32.mrb[0].mxu0
        %v2046 = vadd.f32 0.0, %v2045
        %v2047 = vpop.f32.mrb[0].mxu0
        %v2048 = vadd.f32 0.0, %v2047
        %v2049 = vpop.f32.mrb[0].mxu0
        %v2050 = vadd.f32 0.0, %v2049
        %2051 = vdwg.mxu0
        %v2052 = vpack.c.bf16 %v2048, %v2044
        %v2053 = vpack.c.bf16 %v2050, %v2046
        %s2054 = scalar_lea.vmem %s2, 8
        %v2055 = vld [vmem:[%s2054] sm:$0xf]
        %v2056 = vld [vmem:[%s2054 + $0x4] sm:$0xf]
        %v2059 = vunpack.c.l.b16 %v2055
        %v2060 = vunpack.c.l.b16 %v2056
        %v2061 = vpack.c.b16 %v2060, %v2059
        %v2063 = vsel %vm2005, %v2061, 0
        %2065 = vmatprep.subr.bf16.mxu0 %v1995
        %2066 = vmatpush1.bf16.msra.mxu0 %v1994
        %2067 = vmatprep.subr.bf16.mxu0 %v1997
        %2068 = vmatpush1.bf16.msra.mxu0 %v1996
        %2069 = vmatprep.subr.bf16.mxu0 0
        %2070 = vmatpush1.bf16.msra.mxu0 0
        %2071 = vmatprep.subr.bf16.mxu0 0
        %2072 = vmatpush1.bf16.msra.mxu0 0
        %2073 = vmatprep.subr.bf16.mxu0 0
        %2074 = vmatpush1.bf16.msra.mxu0 0
        %2075 = vmatprep.subr.bf16.mxu0 0
        %2076 = vmatpush1.bf16.msra.mxu0 0
        %2077 = vmatprep.subr.bf16.mxu0 0
        %2078 = vmatpush1.bf16.msra.mxu0 0
        %2079 = vmatprep.subr.bf16.mxu0 0
        %2080 = vmatpush1.bf16.msra.mxu0 0
        %2081 = vmatprep.subr.bf16.mxu0 0
        %2082 = vmatpush1.bf16.msra.mxu0 0
        %2083 = vmatprep.subr.bf16.mxu0 0
        %2084 = vmatpush1.bf16.msra.mxu0 0
        %2085 = vmatprep.subr.bf16.mxu0 0
        %2086 = vmatpush1.bf16.msra.mxu0 0
        %2087 = vmatprep.subr.bf16.mxu0 0
        %2088 = vmatpush1.bf16.msra.mxu0 0
        %2089 = vmatprep.subr.bf16.mxu0 0
        %2090 = vmatpush1.bf16.msra.mxu0 0
        %2091 = vmatprep.subr.bf16.mxu0 0
        %2092 = vmatpush1.bf16.msra.mxu0 0
        %2093 = vmatprep.subr.bf16.mxu0 0
        %2094 = vmatpush1.bf16.msra.mxu0 0
        %2095 = vmatprep.subr.bf16.mxu0 0
        %2096 = vmatpush1.bf16.msra.mxu0 0
        %2097 = vmatprep.mubr.bf16.mxu0 0
        %2098 = vmatmul.mubr.bf16.gmra.mrb[0].mxu0 %v2063
        %v2099 = vpop.f32.mrb[0].mxu0
        %v2100 = vadd.f32 0.0, %v2099
        %v2101 = vpop.f32.mrb[0].mxu0
        %v2102 = vadd.f32 0.0, %v2101
        %v2103 = vpop.f32.mrb[0].mxu0
        %v2104 = vadd.f32 0.0, %v2103
        %v2105 = vpop.f32.mrb[0].mxu0
        %v2106 = vadd.f32 0.0, %v2105
        %2107 = vdwg.mxu0
        %v2108 = vpack.c.bf16 %v2104, %v2100
        %v2109 = vpack.c.bf16 %v2106, %v2102
        %v2112 = vunpack.c.l.b16 %v2052
        %v2113 = vunpack.c.l.b16 %v2053
        %v2114 = vunpack.c.h.b16 %v2052
        %v2115 = vunpack.c.h.b16 %v2053
        %v2116 = vpack.c.b16 %v2113, %v2112
        %v2117 = vpack.c.b16 %v2115, %v2114
        %s2120 = scalar_lea.vmem [#allocation3], 24
        %2121 = vst [vmem:[%s2120] sm:$0xff] %v2116
        %2122 = vst [vmem:[%s2120 + $0x8] sm:$0xff] %v2117
        %v2123 = vld [vmem:[%s2120 + $0x10] sm:$0x11]
        %v2124 = vsel %vm717, 0, %v2123
        %2125 = vst [vmem:[%s2120 + $0x10] sm:$0x11] %v2124
        %v2126 = vld [vmem:[#allocation3] sm:$0x11]
        %v2127 = vsel %vm717, 0, %v2126
        %2128 = vst [vmem:[#allocation3] sm:$0x11] %v2127
        %v2131 = vunpack.c.l.b16 %v2108
        %v2132 = vunpack.c.l.b16 %v2109
        %v2133 = vunpack.c.h.b16 %v2108
        %v2134 = vunpack.c.h.b16 %v2109
        %v2135 = vpack.c.b16 %v2132, %v2131
        %v2136 = vpack.c.b16 %v2134, %v2133
        %v2138 = vshrl.u32 %v2135, 16
        %v2140 = vrot.slane %v2138, 7
        %v2141 = vshll.u32 %v2135, 16
        %v2143 = vor.u32 %v2140, %v2141
        %v2144 = vrot.slane %v2140, 4
        %v2146 = vshrl.u32 %v2136, 16
        %v2148 = vrot.slane %v2146, 7
        %v2149 = vshll.u32 %v2136, 16
        %v2151 = vor.u32 %v2148, %v2149
        %v2152 = vsel %vm741, %v2144, %v2151
        %v2153 = vrot.slane %v2148, 4
        %v2157 = vld [vmem:[#allocation3] sm:$0xff]
        %v2158 = vsel %vm788, %v2143, %v2157
        %2159 = vst [vmem:[#allocation3] sm:$0xff] %v2158
        %2160 = vst [vmem:[#allocation3 + $0x8] sm:$0xff] %v2152
        %v2161 = vld [vmem:[#allocation3 + $0x10] sm:$0x11]
        %v2162 = vsel %vm717, %v2153, %v2161
        %2163 = vst [vmem:[#allocation3 + $0x10] sm:$0x11] %v2162
        %v2164 = vld [vmem:[#allocation3] sm:$0xff]
        %v2165 = vld [vmem:[#allocation3 + $0x8] sm:$0xff]
        %v2166 = vld [vmem:[#allocation6] sm:$0xff]
        %v2167 = vld [vmem:[#allocation6 + $0x8] sm:$0xff]
        %v2168 = vld [vmem:[#allocation6 + $0x10] sm:$0xff]
        %v2169 = vld [vmem:[#allocation6 + $0x18] sm:$0xff]
        %v2170 = vld [vmem:[#allocation6 + $0x20] sm:$0xff]
        %v2171 = vld [vmem:[#allocation6 + $0x28] sm:$0xff]
        %v2172 = vld [vmem:[#allocation6 + $0x30] sm:$0xff]
        %v2173 = vld [vmem:[#allocation6 + $0x38] sm:$0xff]
        %v2174 = vld [vmem:[#allocation6 + $0x40] sm:$0xff]
        %v2175 = vld [vmem:[#allocation6 + $0x48] sm:$0xff]
        %v2176 = vld [vmem:[#allocation6 + $0x50] sm:$0xff]
        %v2177 = vld [vmem:[#allocation6 + $0x58] sm:$0xff]
        %v2178 = vld [vmem:[#allocation6 + $0x60] sm:$0xff]
        %v2179 = vld [vmem:[#allocation6 + $0x68] sm:$0xff]
        %v2180 = vld [vmem:[#allocation6 + $0x70] sm:$0xff]
        %v2181 = vld [vmem:[#allocation6 + $0x78] sm:$0xff]
        %v2182 = vld [vmem:[#allocation6 + $0x80] sm:$0xff]
        %v2183 = vld [vmem:[#allocation6 + $0x88] sm:$0xff]
        %v2184 = vld [vmem:[#allocation6 + $0x90] sm:$0xff]
        %v2185 = vld [vmem:[#allocation6 + $0x98] sm:$0xff]
        %v2186 = vld [vmem:[#allocation6 + $0xa0] sm:$0xff]
        %v2187 = vld [vmem:[#allocation6 + $0xa8] sm:$0xff]
        %v2188 = vld [vmem:[#allocation6 + $0xb0] sm:$0xff]
        %v2189 = vld [vmem:[#allocation6 + $0xb8] sm:$0xff]
        %v2190 = vld [vmem:[#allocation6 + $0xc0] sm:$0xff]
        %v2191 = vld [vmem:[#allocation6 + $0xc8] sm:$0xff]
        %v2192 = vld [vmem:[#allocation6 + $0xd0] sm:$0xff]
        %v2193 = vld [vmem:[#allocation6 + $0xd8] sm:$0xff]
        %v2194 = vld [vmem:[#allocation6 + $0xe0] sm:$0xff]
        %v2195 = vld [vmem:[#allocation6 + $0xe8] sm:$0xff]
        %v2196 = vld [vmem:[#allocation6 + $0xf0] sm:$0xff]
        %v2197 = vld [vmem:[#allocation6 + $0xf8] sm:$0xff]
        %v2198 = vld [vmem:[%s2120] sm:$0xff]
        %v2199 = vld [vmem:[%s2120 + $0x8] sm:$0xff]
        %s2200 = scalar_lea.vmem [#allocation6], 256
        %v2201 = vld [vmem:[%s2200] sm:$0xff]
        %v2202 = vld [vmem:[%s2200 + $0x8] sm:$0xff]
        %v2203 = vld [vmem:[%s2200 + $0x10] sm:$0xff]
        %v2204 = vld [vmem:[%s2200 + $0x18] sm:$0xff]
        %v2205 = vld [vmem:[%s2200 + $0x20] sm:$0xff]
        %v2206 = vld [vmem:[%s2200 + $0x28] sm:$0xff]
        %v2207 = vld [vmem:[%s2200 + $0x30] sm:$0xff]
        %v2208 = vld [vmem:[%s2200 + $0x38] sm:$0xff]
        %v2209 = vld [vmem:[%s2200 + $0x40] sm:$0xff]
        %v2210 = vld [vmem:[%s2200 + $0x48] sm:$0xff]
        %v2211 = vld [vmem:[%s2200 + $0x50] sm:$0xff]
        %v2212 = vld [vmem:[%s2200 + $0x58] sm:$0xff]
        %v2213 = vld [vmem:[%s2200 + $0x60] sm:$0xff]
        %v2214 = vld [vmem:[%s2200 + $0x68] sm:$0xff]
        %v2215 = vld [vmem:[%s2200 + $0x70] sm:$0xff]
        %v2216 = vld [vmem:[%s2200 + $0x78] sm:$0xff]
        %v2217 = vld [vmem:[%s2200 + $0x80] sm:$0xff]
        %v2218 = vld [vmem:[%s2200 + $0x88] sm:$0xff]
        %v2219 = vld [vmem:[%s2200 + $0x90] sm:$0xff]
        %v2220 = vld [vmem:[%s2200 + $0x98] sm:$0xff]
        %v2221 = vld [vmem:[%s2200 + $0xa0] sm:$0xff]
        %v2222 = vld [vmem:[%s2200 + $0xa8] sm:$0xff]
        %v2223 = vld [vmem:[%s2200 + $0xb0] sm:$0xff]
        %v2224 = vld [vmem:[%s2200 + $0xb8] sm:$0xff]
        %v2225 = vld [vmem:[%s2200 + $0xc0] sm:$0xff]
        %v2226 = vld [vmem:[%s2200 + $0xc8] sm:$0xff]
        %v2227 = vld [vmem:[%s2200 + $0xd0] sm:$0xff]
        %v2228 = vld [vmem:[%s2200 + $0xd8] sm:$0xff]
        %v2229 = vld [vmem:[%s2200 + $0xe0] sm:$0xff]
        %v2230 = vld [vmem:[%s2200 + $0xe8] sm:$0xff]
        %v2231 = vld [vmem:[%s2200 + $0xf0] sm:$0xff]
        %v2232 = vld [vmem:[%s2200 + $0xf8] sm:$0xff]
        %v2235 = vunpack.c.l.b16 %v2198
        %v2236 = vunpack.c.h.b16 %v2198
        %v2237 = vunpack.c.l.b16 %v2199
        %v2238 = vunpack.c.h.b16 %v2199
        %v2239 = vpack.c.b16 %v2237, %v2235
        %v2240 = vpack.c.b16 %v2238, %v2236
        %v2275 = vunpack.c.l.b16 %v2201
        %v2276 = vunpack.c.h.b16 %v2201
        %v2277 = vunpack.c.l.b16 %v2202
        %v2278 = vunpack.c.h.b16 %v2202
        %v2279 = vunpack.c.l.b16 %v2203
        %v2280 = vunpack.c.h.b16 %v2203
        %v2281 = vunpack.c.l.b16 %v2204
        %v2282 = vunpack.c.h.b16 %v2204
        %v2283 = vunpack.c.l.b16 %v2205
        %v2284 = vunpack.c.h.b16 %v2205
        %v2285 = vunpack.c.l.b16 %v2206
        %v2286 = vunpack.c.h.b16 %v2206
        %v2287 = vunpack.c.l.b16 %v2207
        %v2288 = vunpack.c.h.b16 %v2207
        %v2289 = vunpack.c.l.b16 %v2208
        %v2290 = vunpack.c.h.b16 %v2208
        %v2291 = vunpack.c.l.b16 %v2209
        %v2292 = vunpack.c.h.b16 %v2209
        %v2293 = vunpack.c.l.b16 %v2210
        %v2294 = vunpack.c.h.b16 %v2210
        %v2295 = vunpack.c.l.b16 %v2211
        %v2296 = vunpack.c.h.b16 %v2211
        %v2297 = vunpack.c.l.b16 %v2212
        %v2298 = vunpack.c.h.b16 %v2212
        %v2299 = vunpack.c.l.b16 %v2213
        %v2300 = vunpack.c.h.b16 %v2213
        %v2301 = vunpack.c.l.b16 %v2214
        %v2302 = vunpack.c.h.b16 %v2214
        %v2303 = vunpack.c.l.b16 %v2215
        %v2304 = vunpack.c.h.b16 %v2215
        %v2305 = vunpack.c.l.b16 %v2216
        %v2306 = vunpack.c.h.b16 %v2216
        %v2307 = vunpack.c.l.b16 %v2217
        %v2308 = vunpack.c.h.b16 %v2217
        %v2309 = vunpack.c.l.b16 %v2218
        %v2310 = vunpack.c.h.b16 %v2218
        %v2311 = vunpack.c.l.b16 %v2219
        %v2312 = vunpack.c.h.b16 %v2219
        %v2313 = vunpack.c.l.b16 %v2220
        %v2314 = vunpack.c.h.b16 %v2220
        %v2315 = vunpack.c.l.b16 %v2221
        %v2316 = vunpack.c.h.b16 %v2221
        %v2317 = vunpack.c.l.b16 %v2222
        %v2318 = vunpack.c.h.b16 %v2222
        %v2319 = vunpack.c.l.b16 %v2223
        %v2320 = vunpack.c.h.b16 %v2223
        %v2321 = vunpack.c.l.b16 %v2224
        %v2322 = vunpack.c.h.b16 %v2224
        %v2323 = vunpack.c.l.b16 %v2225
        %v2324 = vunpack.c.h.b16 %v2225
        %v2325 = vunpack.c.l.b16 %v2226
        %v2326 = vunpack.c.h.b16 %v2226
        %v2327 = vunpack.c.l.b16 %v2227
        %v2328 = vunpack.c.h.b16 %v2227
        %v2329 = vunpack.c.l.b16 %v2228
        %v2330 = vunpack.c.h.b16 %v2228
        %v2331 = vunpack.c.l.b16 %v2229
        %v2332 = vunpack.c.h.b16 %v2229
        %v2333 = vunpack.c.l.b16 %v2230
        %v2334 = vunpack.c.h.b16 %v2230
        %v2335 = vunpack.c.l.b16 %v2231
        %v2336 = vunpack.c.h.b16 %v2231
        %v2337 = vunpack.c.l.b16 %v2232
        %v2338 = vunpack.c.h.b16 %v2232
        %v2339 = vpack.c.b16 %v2277, %v2275
        %v2340 = vpack.c.b16 %v2278, %v2276
        %v2341 = vpack.c.b16 %v2281, %v2279
        %v2342 = vpack.c.b16 %v2282, %v2280
        %v2343 = vpack.c.b16 %v2285, %v2283
        %v2344 = vpack.c.b16 %v2286, %v2284
        %v2345 = vpack.c.b16 %v2289, %v2287
        %v2346 = vpack.c.b16 %v2290, %v2288
        %v2347 = vpack.c.b16 %v2293, %v2291
        %v2348 = vpack.c.b16 %v2294, %v2292
        %v2349 = vpack.c.b16 %v2297, %v2295
        %v2350 = vpack.c.b16 %v2298, %v2296
        %v2351 = vpack.c.b16 %v2301, %v2299
        %v2352 = vpack.c.b16 %v2302, %v2300
        %v2353 = vpack.c.b16 %v2305, %v2303
        %v2354 = vpack.c.b16 %v2306, %v2304
        %v2355 = vpack.c.b16 %v2309, %v2307
        %v2356 = vpack.c.b16 %v2310, %v2308
        %v2357 = vpack.c.b16 %v2313, %v2311
        %v2358 = vpack.c.b16 %v2314, %v2312
        %v2359 = vpack.c.b16 %v2317, %v2315
        %v2360 = vpack.c.b16 %v2318, %v2316
        %v2361 = vpack.c.b16 %v2321, %v2319
        %v2362 = vpack.c.b16 %v2322, %v2320
        %v2363 = vpack.c.b16 %v2325, %v2323
        %v2364 = vpack.c.b16 %v2326, %v2324
        %v2365 = vpack.c.b16 %v2329, %v2327
        %v2366 = vpack.c.b16 %v2330, %v2328
        %v2367 = vpack.c.b16 %v2333, %v2331
        %v2368 = vpack.c.b16 %v2334, %v2332
        %v2369 = vpack.c.b16 %v2337, %v2335
        %v2370 = vpack.c.b16 %v2338, %v2336
        %2403 = vmatprep.subr.bf16.mxu0 %v2340
        %2404 = vmatpush1.bf16.msra.mxu0 %v2339
        %2405 = vmatprep.subr.bf16.mxu0 %v2342
        %2406 = vmatpush1.bf16.msra.mxu0 %v2341
        %2407 = vmatprep.subr.bf16.mxu0 %v2344
        %2408 = vmatpush1.bf16.msra.mxu0 %v2343
        %2409 = vmatprep.subr.bf16.mxu0 %v2346
        %2410 = vmatpush1.bf16.msra.mxu0 %v2345
        %2411 = vmatprep.subr.bf16.mxu0 %v2348
        %2412 = vmatpush1.bf16.msra.mxu0 %v2347
        %2413 = vmatprep.subr.bf16.mxu0 %v2350
        %2414 = vmatpush1.bf16.msra.mxu0 %v2349
        %2415 = vmatprep.subr.bf16.mxu0 %v2352
        %2416 = vmatpush1.bf16.msra.mxu0 %v2351
        %2417 = vmatprep.subr.bf16.mxu0 %v2354
        %2418 = vmatpush1.bf16.msra.mxu0 %v2353
        %2419 = vmatprep.subr.bf16.mxu0 %v2356
        %2420 = vmatpush1.bf16.msra.mxu0 %v2355
        %2421 = vmatprep.subr.bf16.mxu0 %v2358
        %2422 = vmatpush1.bf16.msra.mxu0 %v2357
        %2423 = vmatprep.subr.bf16.mxu0 %v2360
        %2424 = vmatpush1.bf16.msra.mxu0 %v2359
        %2425 = vmatprep.subr.bf16.mxu0 %v2362
        %2426 = vmatpush1.bf16.msra.mxu0 %v2361
        %2427 = vmatprep.subr.bf16.mxu0 %v2364
        %2428 = vmatpush1.bf16.msra.mxu0 %v2363
        %2429 = vmatprep.subr.bf16.mxu0 %v2366
        %2430 = vmatpush1.bf16.msra.mxu0 %v2365
        %2431 = vmatprep.subr.bf16.mxu0 %v2368
        %2432 = vmatpush1.bf16.msra.mxu0 %v2367
        %2433 = vmatprep.subr.bf16.mxu0 %v2370
        %2434 = vmatpush1.bf16.msra.mxu0 %v2369
        %2435 = vmatprep.mubr.bf16.mxu0 %v2240
        %2436 = vmatmul.mubr.bf16.gmra.mrb[0].mxu0 %v2239
        %v2437 = vpop.f32.mrb[0].mxu0
        %v2438 = vadd.f32 0.0, %v2437
        %v2439 = vpop.f32.mrb[0].mxu0
        %v2440 = vadd.f32 0.0, %v2439
        %v2441 = vpop.f32.mrb[0].mxu0
        %v2442 = vadd.f32 0.0, %v2441
        %v2443 = vpop.f32.mrb[0].mxu0
        %v2444 = vadd.f32 0.0, %v2443
        %2445 = vdwg.mxu0
        %v2448 = vunpack.c.l.b16 %v2164
        %v2449 = vunpack.c.h.b16 %v2164
        %v2450 = vunpack.c.l.b16 %v2165
        %v2451 = vunpack.c.h.b16 %v2165
        %v2452 = vpack.c.b16 %v2450, %v2448
        %v2453 = vpack.c.b16 %v2451, %v2449
        %v2488 = vunpack.c.l.b16 %v2166
        %v2489 = vunpack.c.h.b16 %v2166
        %v2490 = vunpack.c.l.b16 %v2167
        %v2491 = vunpack.c.h.b16 %v2167
        %v2492 = vunpack.c.l.b16 %v2168
        %v2493 = vunpack.c.h.b16 %v2168
        %v2494 = vunpack.c.l.b16 %v2169
        %v2495 = vunpack.c.h.b16 %v2169
        %v2496 = vunpack.c.l.b16 %v2170
        %v2497 = vunpack.c.h.b16 %v2170
        %v2498 = vunpack.c.l.b16 %v2171
        %v2499 = vunpack.c.h.b16 %v2171
        %v2500 = vunpack.c.l.b16 %v2172
        %v2501 = vunpack.c.h.b16 %v2172
        %v2502 = vunpack.c.l.b16 %v2173
        %v2503 = vunpack.c.h.b16 %v2173
        %v2504 = vunpack.c.l.b16 %v2174
        %v2505 = vunpack.c.h.b16 %v2174
        %v2506 = vunpack.c.l.b16 %v2175
        %v2507 = vunpack.c.h.b16 %v2175
        %v2508 = vunpack.c.l.b16 %v2176
        %v2509 = vunpack.c.h.b16 %v2176
        %v2510 = vunpack.c.l.b16 %v2177
        %v2511 = vunpack.c.h.b16 %v2177
        %v2512 = vunpack.c.l.b16 %v2178
        %v2513 = vunpack.c.h.b16 %v2178
        %v2514 = vunpack.c.l.b16 %v2179
        %v2515 = vunpack.c.h.b16 %v2179
        %v2516 = vunpack.c.l.b16 %v2180
        %v2517 = vunpack.c.h.b16 %v2180
        %v2518 = vunpack.c.l.b16 %v2181
        %v2519 = vunpack.c.h.b16 %v2181
        %v2520 = vunpack.c.l.b16 %v2182
        %v2521 = vunpack.c.h.b16 %v2182
        %v2522 = vunpack.c.l.b16 %v2183
        %v2523 = vunpack.c.h.b16 %v2183
        %v2524 = vunpack.c.l.b16 %v2184
        %v2525 = vunpack.c.h.b16 %v2184
        %v2526 = vunpack.c.l.b16 %v2185
        %v2527 = vunpack.c.h.b16 %v2185
        %v2528 = vunpack.c.l.b16 %v2186
        %v2529 = vunpack.c.h.b16 %v2186
        %v2530 = vunpack.c.l.b16 %v2187
        %v2531 = vunpack.c.h.b16 %v2187
        %v2532 = vunpack.c.l.b16 %v2188
        %v2533 = vunpack.c.h.b16 %v2188
        %v2534 = vunpack.c.l.b16 %v2189
        %v2535 = vunpack.c.h.b16 %v2189
        %v2536 = vunpack.c.l.b16 %v2190
        %v2537 = vunpack.c.h.b16 %v2190
        %v2538 = vunpack.c.l.b16 %v2191
        %v2539 = vunpack.c.h.b16 %v2191
        %v2540 = vunpack.c.l.b16 %v2192
        %v2541 = vunpack.c.h.b16 %v2192
        %v2542 = vunpack.c.l.b16 %v2193
        %v2543 = vunpack.c.h.b16 %v2193
        %v2544 = vunpack.c.l.b16 %v2194
        %v2545 = vunpack.c.h.b16 %v2194
        %v2546 = vunpack.c.l.b16 %v2195
        %v2547 = vunpack.c.h.b16 %v2195
        %v2548 = vunpack.c.l.b16 %v2196
        %v2549 = vunpack.c.h.b16 %v2196
        %v2550 = vunpack.c.l.b16 %v2197
        %v2551 = vunpack.c.h.b16 %v2197
        %v2552 = vpack.c.b16 %v2490, %v2488
        %v2553 = vpack.c.b16 %v2491, %v2489
        %v2554 = vpack.c.b16 %v2494, %v2492
        %v2555 = vpack.c.b16 %v2495, %v2493
        %v2556 = vpack.c.b16 %v2498, %v2496
        %v2557 = vpack.c.b16 %v2499, %v2497
        %v2558 = vpack.c.b16 %v2502, %v2500
        %v2559 = vpack.c.b16 %v2503, %v2501
        %v2560 = vpack.c.b16 %v2506, %v2504
        %v2561 = vpack.c.b16 %v2507, %v2505
        %v2562 = vpack.c.b16 %v2510, %v2508
        %v2563 = vpack.c.b16 %v2511, %v2509
        %v2564 = vpack.c.b16 %v2514, %v2512
        %v2565 = vpack.c.b16 %v2515, %v2513
        %v2566 = vpack.c.b16 %v2518, %v2516
        %v2567 = vpack.c.b16 %v2519, %v2517
        %v2568 = vpack.c.b16 %v2522, %v2520
        %v2569 = vpack.c.b16 %v2523, %v2521
        %v2570 = vpack.c.b16 %v2526, %v2524
        %v2571 = vpack.c.b16 %v2527, %v2525
        %v2572 = vpack.c.b16 %v2530, %v2528
        %v2573 = vpack.c.b16 %v2531, %v2529
        %v2574 = vpack.c.b16 %v2534, %v2532
        %v2575 = vpack.c.b16 %v2535, %v2533
        %v2576 = vpack.c.b16 %v2538, %v2536
        %v2577 = vpack.c.b16 %v2539, %v2537
        %v2578 = vpack.c.b16 %v2542, %v2540
        %v2579 = vpack.c.b16 %v2543, %v2541
        %v2580 = vpack.c.b16 %v2546, %v2544
        %v2581 = vpack.c.b16 %v2547, %v2545
        %v2582 = vpack.c.b16 %v2550, %v2548
        %v2583 = vpack.c.b16 %v2551, %v2549
        %2616 = vmatprep.subr.bf16.mxu0 %v2553
        %2617 = vmatpush1.bf16.msra.mxu0 %v2552
        %2618 = vmatprep.subr.bf16.mxu0 %v2555
        %2619 = vmatpush1.bf16.msra.mxu0 %v2554
        %2620 = vmatprep.subr.bf16.mxu0 %v2557
        %2621 = vmatpush1.bf16.msra.mxu0 %v2556
        %2622 = vmatprep.subr.bf16.mxu0 %v2559
        %2623 = vmatpush1.bf16.msra.mxu0 %v2558
        %2624 = vmatprep.subr.bf16.mxu0 %v2561
        %2625 = vmatpush1.bf16.msra.mxu0 %v2560
        %2626 = vmatprep.subr.bf16.mxu0 %v2563
        %2627 = vmatpush1.bf16.msra.mxu0 %v2562
        %2628 = vmatprep.subr.bf16.mxu0 %v2565
        %2629 = vmatpush1.bf16.msra.mxu0 %v2564
        %2630 = vmatprep.subr.bf16.mxu0 %v2567
        %2631 = vmatpush1.bf16.msra.mxu0 %v2566
        %2632 = vmatprep.subr.bf16.mxu0 %v2569
        %2633 = vmatpush1.bf16.msra.mxu0 %v2568
        %2634 = vmatprep.subr.bf16.mxu0 %v2571
        %2635 = vmatpush1.bf16.msra.mxu0 %v2570
        %2636 = vmatprep.subr.bf16.mxu0 %v2573
        %2637 = vmatpush1.bf16.msra.mxu0 %v2572
        %2638 = vmatprep.subr.bf16.mxu0 %v2575
        %2639 = vmatpush1.bf16.msra.mxu0 %v2574
        %2640 = vmatprep.subr.bf16.mxu0 %v2577
        %2641 = vmatpush1.bf16.msra.mxu0 %v2576
        %2642 = vmatprep.subr.bf16.mxu0 %v2579
        %2643 = vmatpush1.bf16.msra.mxu0 %v2578
        %2644 = vmatprep.subr.bf16.mxu0 %v2581
        %2645 = vmatpush1.bf16.msra.mxu0 %v2580
        %2646 = vmatprep.subr.bf16.mxu0 %v2583
        %2647 = vmatpush1.bf16.msra.mxu0 %v2582
        %2648 = vmatprep.mubr.bf16.mxu0 %v2453
        %2649 = vmatmul.mubr.bf16.gmra.mrb[0].mxu0 %v2452
        %v2650 = vpop.f32.mrb[0].mxu0
        %v2651 = vadd.f32 %v2438, %v2650
        %v2652 = vpop.f32.mrb[0].mxu0
        %v2653 = vadd.f32 %v2440, %v2652
        %v2654 = vpop.f32.mrb[0].mxu0
        %v2655 = vadd.f32 %v2442, %v2654
        %v2656 = vpop.f32.mrb[0].mxu0
        %v2657 = vadd.f32 %v2444, %v2656
        %2658 = vdwg.mxu0
        %v2659 = vld [vmem:[#allocation3] sm:$0xff]
        %v2660 = vld [vmem:[#allocation3 + $0x8] sm:$0xff]
        %v2661 = vld [vmem:[#allocation3 + $0x10] sm:$0x11]
        %s2662 = scalar_lea.vmem [#allocation6], 512
        %v2663 = vld [vmem:[%s2662] sm:$0xff]
        %v2664 = vld [vmem:[%s2662 + $0x8] sm:$0xff]
        %v2665 = vld [vmem:[%s2662 + $0x10] sm:$0xff]
        %v2666 = vld [vmem:[%s2662 + $0x18] sm:$0xff]
        %v2667 = vld [vmem:[%s2662 + $0x20] sm:$0xff]
        %v2668 = vld [vmem:[%s2662 + $0x28] sm:$0xff]
        %v2669 = vld [vmem:[%s2662 + $0x30] sm:$0xff]
        %v2670 = vld [vmem:[%s2662 + $0x38] sm:$0xff]
        %v2671 = vld [vmem:[%s2662 + $0x40] sm:$0xff]
        %v2672 = vld [vmem:[%s2662 + $0x48] sm:$0xff]
        %v2673 = vld [vmem:[%s2662 + $0x50] sm:$0xff]
        %v2674 = vld [vmem:[%s2662 + $0x58] sm:$0xff]
        %v2675 = vld [vmem:[%s2662 + $0x60] sm:$0xff]
        %v2676 = vld [vmem:[%s2662 + $0x68] sm:$0xff]
        %v2677 = vld [vmem:[%s2662 + $0x70] sm:$0xff]
        %v2678 = vld [vmem:[%s2662 + $0x78] sm:$0xff]
        %v2679 = vld [vmem:[%s2662 + $0x80] sm:$0xff]
        %v2680 = vld [vmem:[%s2662 + $0x88] sm:$0xff]
        %v2681 = vld [vmem:[%s2662 + $0x90] sm:$0xff]
        %v2682 = vld [vmem:[%s2662 + $0x98] sm:$0xff]
        %v2683 = vld [vmem:[%s2662 + $0xa0] sm:$0xff]
        %v2684 = vld [vmem:[%s2662 + $0xa8] sm:$0xff]
        %v2685 = vld [vmem:[%s2662 + $0xb0] sm:$0xff]
        %v2686 = vld [vmem:[%s2662 + $0xb8] sm:$0xff]
        %v2687 = vld [vmem:[%s2662 + $0xc0] sm:$0xff]
        %v2688 = vld [vmem:[%s2662 + $0xc8] sm:$0xff]
        %v2689 = vld [vmem:[%s2662 + $0xd0] sm:$0xff]
        %v2690 = vld [vmem:[%s2662 + $0xd8] sm:$0xff]
        %v2691 = vld [vmem:[%s2662 + $0xe0] sm:$0xff]
        %v2692 = vld [vmem:[%s2662 + $0xe8] sm:$0xff]
        %v2693 = vld [vmem:[%s2662 + $0xf0] sm:$0xff]
        %v2694 = vld [vmem:[%s2662 + $0xf8] sm:$0xff]
        %v2698 = vunpack.c.l.b16 %v2659
        %v2699 = vunpack.c.h.b16 %v2659
        %v2700 = vunpack.c.l.b16 %v2660
        %v2701 = vunpack.c.h.b16 %v2660
        %v2702 = vunpack.c.l.b16 %v2661
        %v2703 = vunpack.c.h.b16 %v2661
        %v2704 = vpack.c.b16 %v2700, %v2698
        %v2705 = vpack.c.b16 %v2701, %v2699
        %v2706 = vpack.c.b16 %v2702, %v2702
        %v2707 = vpack.c.b16 %v2703, %v2703
        %v2709 = vshrl.u32 %v2704, 16
        %v2711 = vshll.u32 %v2704, 16
        %v2713 = vrot.slane %v2711, 1
        %v2714 = vor.u32 %v2709, %v2713
        %v2716 = vshll.u32 %v2706, 16
        %v2718 = vrot.slane %v2716, 1
        %v2719 = vsel %vm1396, %v2714, %v2718
        %v2721 = vshrl.u32 %v2705, 16
        %v2723 = vshll.u32 %v2705, 16
        %v2725 = vrot.slane %v2723, 1
        %v2726 = vor.u32 %v2721, %v2725
        %v2728 = vshll.u32 %v2707, 16
        %v2730 = vrot.slane %v2728, 1
        %v2731 = vsel %vm1396, %v2726, %v2730
        %v2766 = vunpack.c.l.b16 %v2663
        %v2767 = vunpack.c.h.b16 %v2663
        %v2768 = vunpack.c.l.b16 %v2664
        %v2769 = vunpack.c.h.b16 %v2664
        %v2770 = vunpack.c.l.b16 %v2665
        %v2771 = vunpack.c.h.b16 %v2665
        %v2772 = vunpack.c.l.b16 %v2666
        %v2773 = vunpack.c.h.b16 %v2666
        %v2774 = vunpack.c.l.b16 %v2667
        %v2775 = vunpack.c.h.b16 %v2667
        %v2776 = vunpack.c.l.b16 %v2668
        %v2777 = vunpack.c.h.b16 %v2668
        %v2778 = vunpack.c.l.b16 %v2669
        %v2779 = vunpack.c.h.b16 %v2669
        %v2780 = vunpack.c.l.b16 %v2670
        %v2781 = vunpack.c.h.b16 %v2670
        %v2782 = vunpack.c.l.b16 %v2671
        %v2783 = vunpack.c.h.b16 %v2671
        %v2784 = vunpack.c.l.b16 %v2672
        %v2785 = vunpack.c.h.b16 %v2672
        %v2786 = vunpack.c.l.b16 %v2673
        %v2787 = vunpack.c.h.b16 %v2673
        %v2788 = vunpack.c.l.b16 %v2674
        %v2789 = vunpack.c.h.b16 %v2674
        %v2790 = vunpack.c.l.b16 %v2675
        %v2791 = vunpack.c.h.b16 %v2675
        %v2792 = vunpack.c.l.b16 %v2676
        %v2793 = vunpack.c.h.b16 %v2676
        %v2794 = vunpack.c.l.b16 %v2677
        %v2795 = vunpack.c.h.b16 %v2677
        %v2796 = vunpack.c.l.b16 %v2678
        %v2797 = vunpack.c.h.b16 %v2678
        %v2798 = vunpack.c.l.b16 %v2679
        %v2799 = vunpack.c.h.b16 %v2679
        %v2800 = vunpack.c.l.b16 %v2680
        %v2801 = vunpack.c.h.b16 %v2680
        %v2802 = vunpack.c.l.b16 %v2681
        %v2803 = vunpack.c.h.b16 %v2681
        %v2804 = vunpack.c.l.b16 %v2682
        %v2805 = vunpack.c.h.b16 %v2682
        %v2806 = vunpack.c.l.b16 %v2683
        %v2807 = vunpack.c.h.b16 %v2683
        %v2808 = vunpack.c.l.b16 %v2684
        %v2809 = vunpack.c.h.b16 %v2684
        %v2810 = vunpack.c.l.b16 %v2685
        %v2811 = vunpack.c.h.b16 %v2685
        %v2812 = vunpack.c.l.b16 %v2686
        %v2813 = vunpack.c.h.b16 %v2686
        %v2814 = vunpack.c.l.b16 %v2687
        %v2815 = vunpack.c.h.b16 %v2687
        %v2816 = vunpack.c.l.b16 %v2688
        %v2817 = vunpack.c.h.b16 %v2688
        %v2818 = vunpack.c.l.b16 %v2689
        %v2819 = vunpack.c.h.b16 %v2689
        %v2820 = vunpack.c.l.b16 %v2690
        %v2821 = vunpack.c.h.b16 %v2690
        %v2822 = vunpack.c.l.b16 %v2691
        %v2823 = vunpack.c.h.b16 %v2691
        %v2824 = vunpack.c.l.b16 %v2692
        %v2825 = vunpack.c.h.b16 %v2692
        %v2826 = vunpack.c.l.b16 %v2693
        %v2827 = vunpack.c.h.b16 %v2693
        %v2828 = vunpack.c.l.b16 %v2694
        %v2829 = vunpack.c.h.b16 %v2694
        %v2830 = vpack.c.b16 %v2768, %v2766
        %v2831 = vpack.c.b16 %v2769, %v2767
        %v2832 = vpack.c.b16 %v2772, %v2770
        %v2833 = vpack.c.b16 %v2773, %v2771
        %v2834 = vpack.c.b16 %v2776, %v2774
        %v2835 = vpack.c.b16 %v2777, %v2775
        %v2836 = vpack.c.b16 %v2780, %v2778
        %v2837 = vpack.c.b16 %v2781, %v2779
        %v2838 = vpack.c.b16 %v2784, %v2782
        %v2839 = vpack.c.b16 %v2785, %v2783
        %v2840 = vpack.c.b16 %v2788, %v2786
        %v2841 = vpack.c.b16 %v2789, %v2787
        %v2842 = vpack.c.b16 %v2792, %v2790
        %v2843 = vpack.c.b16 %v2793, %v2791
        %v2844 = vpack.c.b16 %v2796, %v2794
        %v2845 = vpack.c.b16 %v2797, %v2795
        %v2846 = vpack.c.b16 %v2800, %v2798
        %v2847 = vpack.c.b16 %v2801, %v2799
        %v2848 = vpack.c.b16 %v2804, %v2802
        %v2849 = vpack.c.b16 %v2805, %v2803
        %v2850 = vpack.c.b16 %v2808, %v2806
        %v2851 = vpack.c.b16 %v2809, %v2807
        %v2852 = vpack.c.b16 %v2812, %v2810
        %v2853 = vpack.c.b16 %v2813, %v2811
        %v2854 = vpack.c.b16 %v2816, %v2814
        %v2855 = vpack.c.b16 %v2817, %v2815
        %v2856 = vpack.c.b16 %v2820, %v2818
        %v2857 = vpack.c.b16 %v2821, %v2819
        %v2858 = vpack.c.b16 %v2824, %v2822
        %v2859 = vpack.c.b16 %v2825, %v2823
        %v2860 = vpack.c.b16 %v2828, %v2826
        %v2861 = vpack.c.b16 %v2829, %v2827
        %2894 = vmatprep.subr.bf16.mxu0 %v2831
        %2895 = vmatpush1.bf16.msra.mxu0 %v2830
        %2896 = vmatprep.subr.bf16.mxu0 %v2833
        %2897 = vmatpush1.bf16.msra.mxu0 %v2832
        %2898 = vmatprep.subr.bf16.mxu0 %v2835
        %2899 = vmatpush1.bf16.msra.mxu0 %v2834
        %2900 = vmatprep.subr.bf16.mxu0 %v2837
        %2901 = vmatpush1.bf16.msra.mxu0 %v2836
        %2902 = vmatprep.subr.bf16.mxu0 %v2839
        %2903 = vmatpush1.bf16.msra.mxu0 %v2838
        %2904 = vmatprep.subr.bf16.mxu0 %v2841
        %2905 = vmatpush1.bf16.msra.mxu0 %v2840
        %2906 = vmatprep.subr.bf16.mxu0 %v2843
        %2907 = vmatpush1.bf16.msra.mxu0 %v2842
        %2908 = vmatprep.subr.bf16.mxu0 %v2845
        %2909 = vmatpush1.bf16.msra.mxu0 %v2844
        %2910 = vmatprep.subr.bf16.mxu0 %v2847
        %2911 = vmatpush1.bf16.msra.mxu0 %v2846
        %2912 = vmatprep.subr.bf16.mxu0 %v2849
        %2913 = vmatpush1.bf16.msra.mxu0 %v2848
        %2914 = vmatprep.subr.bf16.mxu0 %v2851
        %2915 = vmatpush1.bf16.msra.mxu0 %v2850
        %2916 = vmatprep.subr.bf16.mxu0 %v2853
        %2917 = vmatpush1.bf16.msra.mxu0 %v2852
        %2918 = vmatprep.subr.bf16.mxu0 %v2855
        %2919 = vmatpush1.bf16.msra.mxu0 %v2854
        %2920 = vmatprep.subr.bf16.mxu0 %v2857
        %2921 = vmatpush1.bf16.msra.mxu0 %v2856
        %2922 = vmatprep.subr.bf16.mxu0 %v2859
        %2923 = vmatpush1.bf16.msra.mxu0 %v2858
        %2924 = vmatprep.subr.bf16.mxu0 %v2861
        %2925 = vmatpush1.bf16.msra.mxu0 %v2860
        %2926 = vmatprep.mubr.bf16.mxu0 %v2731
        %2927 = vmatmul.mubr.bf16.gmra.mrb[0].mxu0 %v2719
        %v2928 = vpop.f32.mrb[0].mxu0
        %v2929 = vadd.f32 0.0, %v2928
        %v2930 = vpop.f32.mrb[0].mxu0
        %v2931 = vadd.f32 0.0, %v2930
        %v2932 = vpop.f32.mrb[0].mxu0
        %v2933 = vadd.f32 0.0, %v2932
        %v2934 = vpop.f32.mrb[0].mxu0
        %v2935 = vadd.f32 0.0, %v2934
        %2936 = vdwg.mxu0
        %v2937 = vadd.f32 %v2651, %v2929
        %v2938 = vadd.f32 %v2653, %v2931
        %v2939 = vadd.f32 %v2655, %v2933
        %v2940 = vadd.f32 %v2657, %v2935
        %v2941 = vld [vmem:[%s2120] sm:$0xff]
        %v2942 = vld [vmem:[%s2120 + $0x8] sm:$0xff]
        %v2943 = vld [vmem:[%s2120 + $0x10] sm:$0x11]
        %s2944 = scalar_lea.vmem [#allocation6], 768
        %v2945 = vld [vmem:[%s2944] sm:$0xff]
        %v2946 = vld [vmem:[%s2944 + $0x8] sm:$0xff]
        %v2947 = vld [vmem:[%s2944 + $0x10] sm:$0xff]
        %v2948 = vld [vmem:[%s2944 + $0x18] sm:$0xff]
        %v2949 = vld [vmem:[%s2944 + $0x20] sm:$0xff]
        %v2950 = vld [vmem:[%s2944 + $0x28] sm:$0xff]
        %v2951 = vld [vmem:[%s2944 + $0x30] sm:$0xff]
        %v2952 = vld [vmem:[%s2944 + $0x38] sm:$0xff]
        %v2953 = vld [vmem:[%s2944 + $0x40] sm:$0xff]
        %v2954 = vld [vmem:[%s2944 + $0x48] sm:$0xff]
        %v2955 = vld [vmem:[%s2944 + $0x50] sm:$0xff]
        %v2956 = vld [vmem:[%s2944 + $0x58] sm:$0xff]
        %v2957 = vld [vmem:[%s2944 + $0x60] sm:$0xff]
        %v2958 = vld [vmem:[%s2944 + $0x68] sm:$0xff]
        %v2959 = vld [vmem:[%s2944 + $0x70] sm:$0xff]
        %v2960 = vld [vmem:[%s2944 + $0x78] sm:$0xff]
        %v2961 = vld [vmem:[%s2944 + $0x80] sm:$0xff]
        %v2962 = vld [vmem:[%s2944 + $0x88] sm:$0xff]
        %v2963 = vld [vmem:[%s2944 + $0x90] sm:$0xff]
        %v2964 = vld [vmem:[%s2944 + $0x98] sm:$0xff]
        %v2965 = vld [vmem:[%s2944 + $0xa0] sm:$0xff]
        %v2966 = vld [vmem:[%s2944 + $0xa8] sm:$0xff]
        %v2967 = vld [vmem:[%s2944 + $0xb0] sm:$0xff]
        %v2968 = vld [vmem:[%s2944 + $0xb8] sm:$0xff]
        %v2969 = vld [vmem:[%s2944 + $0xc0] sm:$0xff]
        %v2970 = vld [vmem:[%s2944 + $0xc8] sm:$0xff]
        %v2971 = vld [vmem:[%s2944 + $0xd0] sm:$0xff]
        %v2972 = vld [vmem:[%s2944 + $0xd8] sm:$0xff]
        %v2973 = vld [vmem:[%s2944 + $0xe0] sm:$0xff]
        %v2974 = vld [vmem:[%s2944 + $0xe8] sm:$0xff]
        %v2975 = vld [vmem:[%s2944 + $0xf0] sm:$0xff]
        %v2976 = vld [vmem:[%s2944 + $0xf8] sm:$0xff]
        %v2980 = vunpack.c.l.b16 %v2941
        %v2981 = vunpack.c.h.b16 %v2941
        %v2982 = vunpack.c.l.b16 %v2942
        %v2983 = vunpack.c.h.b16 %v2942
        %v2984 = vunpack.c.l.b16 %v2943
        %v2985 = vunpack.c.h.b16 %v2943
        %v2986 = vpack.c.b16 %v2982, %v2980
        %v2987 = vpack.c.b16 %v2983, %v2981
        %v2988 = vpack.c.b16 %v2984, %v2984
        %v2989 = vpack.c.b16 %v2985, %v2985
        %v2991 = vshrl.u32 %v2986, 16
        %v2993 = vshll.u32 %v2986, 16
        %v2995 = vrot.slane %v2993, 1
        %v2996 = vor.u32 %v2991, %v2995
        %v2998 = vshll.u32 %v2988, 16
        %v3000 = vrot.slane %v2998, 1
        %v3001 = vsel %vm1396, %v2996, %v3000
        %v3003 = vshrl.u32 %v2987, 16
        %v3005 = vshll.u32 %v2987, 16
        %v3007 = vrot.slane %v3005, 1
        %v3008 = vor.u32 %v3003, %v3007
        %v3010 = vshll.u32 %v2989, 16
        %v3012 = vrot.slane %v3010, 1
        %v3013 = vsel %vm1396, %v3008, %v3012
        %v3048 = vunpack.c.l.b16 %v2945
        %v3049 = vunpack.c.h.b16 %v2945
        %v3050 = vunpack.c.l.b16 %v2946
        %v3051 = vunpack.c.h.b16 %v2946
        %v3052 = vunpack.c.l.b16 %v2947
        %v3053 = vunpack.c.h.b16 %v2947
        %v3054 = vunpack.c.l.b16 %v2948
        %v3055 = vunpack.c.h.b16 %v2948
        %v3056 = vunpack.c.l.b16 %v2949
        %v3057 = vunpack.c.h.b16 %v2949
        %v3058 = vunpack.c.l.b16 %v2950
        %v3059 = vunpack.c.h.b16 %v2950
        %v3060 = vunpack.c.l.b16 %v2951
        %v3061 = vunpack.c.h.b16 %v2951
        %v3062 = vunpack.c.l.b16 %v2952
        %v3063 = vunpack.c.h.b16 %v2952
        %v3064 = vunpack.c.l.b16 %v2953
        %v3065 = vunpack.c.h.b16 %v2953
        %v3066 = vunpack.c.l.b16 %v2954
        %v3067 = vunpack.c.h.b16 %v2954
        %v3068 = vunpack.c.l.b16 %v2955
        %v3069 = vunpack.c.h.b16 %v2955
        %v3070 = vunpack.c.l.b16 %v2956
        %v3071 = vunpack.c.h.b16 %v2956
        %v3072 = vunpack.c.l.b16 %v2957
        %v3073 = vunpack.c.h.b16 %v2957
        %v3074 = vunpack.c.l.b16 %v2958
        %v3075 = vunpack.c.h.b16 %v2958
        %v3076 = vunpack.c.l.b16 %v2959
        %v3077 = vunpack.c.h.b16 %v2959
        %v3078 = vunpack.c.l.b16 %v2960
        %v3079 = vunpack.c.h.b16 %v2960
        %v3080 = vunpack.c.l.b16 %v2961
        %v3081 = vunpack.c.h.b16 %v2961
        %v3082 = vunpack.c.l.b16 %v2962
        %v3083 = vunpack.c.h.b16 %v2962
        %v3084 = vunpack.c.l.b16 %v2963
        %v3085 = vunpack.c.h.b16 %v2963
        %v3086 = vunpack.c.l.b16 %v2964
        %v3087 = vunpack.c.h.b16 %v2964
        %v3088 = vunpack.c.l.b16 %v2965
        %v3089 = vunpack.c.h.b16 %v2965
        %v3090 = vunpack.c.l.b16 %v2966
        %v3091 = vunpack.c.h.b16 %v2966
        %v3092 = vunpack.c.l.b16 %v2967
        %v3093 = vunpack.c.h.b16 %v2967
        %v3094 = vunpack.c.l.b16 %v2968
        %v3095 = vunpack.c.h.b16 %v2968
        %v3096 = vunpack.c.l.b16 %v2969
        %v3097 = vunpack.c.h.b16 %v2969
        %v3098 = vunpack.c.l.b16 %v2970
        %v3099 = vunpack.c.h.b16 %v2970
        %v3100 = vunpack.c.l.b16 %v2971
        %v3101 = vunpack.c.h.b16 %v2971
        %v3102 = vunpack.c.l.b16 %v2972
        %v3103 = vunpack.c.h.b16 %v2972
        %v3104 = vunpack.c.l.b16 %v2973
        %v3105 = vunpack.c.h.b16 %v2973
        %v3106 = vunpack.c.l.b16 %v2974
        %v3107 = vunpack.c.h.b16 %v2974
        %v3108 = vunpack.c.l.b16 %v2975
        %v3109 = vunpack.c.h.b16 %v2975
        %v3110 = vunpack.c.l.b16 %v2976
        %v3111 = vunpack.c.h.b16 %v2976
        %v3112 = vpack.c.b16 %v3050, %v3048
        %v3113 = vpack.c.b16 %v3051, %v3049
        %v3114 = vpack.c.b16 %v3054, %v3052
        %v3115 = vpack.c.b16 %v3055, %v3053
        %v3116 = vpack.c.b16 %v3058, %v3056
        %v3117 = vpack.c.b16 %v3059, %v3057
        %v3118 = vpack.c.b16 %v3062, %v3060
        %v3119 = vpack.c.b16 %v3063, %v3061
        %v3120 = vpack.c.b16 %v3066, %v3064
        %v3121 = vpack.c.b16 %v3067, %v3065
        %v3122 = vpack.c.b16 %v3070, %v3068
        %v3123 = vpack.c.b16 %v3071, %v3069
        %v3124 = vpack.c.b16 %v3074, %v3072
        %v3125 = vpack.c.b16 %v3075, %v3073
        %v3126 = vpack.c.b16 %v3078, %v3076
        %v3127 = vpack.c.b16 %v3079, %v3077
        %v3128 = vpack.c.b16 %v3082, %v3080
        %v3129 = vpack.c.b16 %v3083, %v3081
        %v3130 = vpack.c.b16 %v3086, %v3084
        %v3131 = vpack.c.b16 %v3087, %v3085
        %v3132 = vpack.c.b16 %v3090, %v3088
        %v3133 = vpack.c.b16 %v3091, %v3089
        %v3134 = vpack.c.b16 %v3094, %v3092
        %v3135 = vpack.c.b16 %v3095, %v3093
        %v3136 = vpack.c.b16 %v3098, %v3096
        %v3137 = vpack.c.b16 %v3099, %v3097
        %v3138 = vpack.c.b16 %v3102, %v3100
        %v3139 = vpack.c.b16 %v3103, %v3101
        %v3140 = vpack.c.b16 %v3106, %v3104
        %v3141 = vpack.c.b16 %v3107, %v3105
        %v3142 = vpack.c.b16 %v3110, %v3108
        %v3143 = vpack.c.b16 %v3111, %v3109
        %3176 = vmatprep.subr.bf16.mxu0 %v3113
        %3177 = vmatpush1.bf16.msra.mxu0 %v3112
        %3178 = vmatprep.subr.bf16.mxu0 %v3115
        %3179 = vmatpush1.bf16.msra.mxu0 %v3114
        %3180 = vmatprep.subr.bf16.mxu0 %v3117
        %3181 = vmatpush1.bf16.msra.mxu0 %v3116
        %3182 = vmatprep.subr.bf16.mxu0 %v3119
        %3183 = vmatpush1.bf16.msra.mxu0 %v3118
        %3184 = vmatprep.subr.bf16.mxu0 %v3121
        %3185 = vmatpush1.bf16.msra.mxu0 %v3120
        %3186 = vmatprep.subr.bf16.mxu0 %v3123
        %3187 = vmatpush1.bf16.msra.mxu0 %v3122
        %3188 = vmatprep.subr.bf16.mxu0 %v3125
        %3189 = vmatpush1.bf16.msra.mxu0 %v3124
        %3190 = vmatprep.subr.bf16.mxu0 %v3127
        %3191 = vmatpush1.bf16.msra.mxu0 %v3126
        %3192 = vmatprep.subr.bf16.mxu0 %v3129
        %3193 = vmatpush1.bf16.msra.mxu0 %v3128
        %3194 = vmatprep.subr.bf16.mxu0 %v3131
        %3195 = vmatpush1.bf16.msra.mxu0 %v3130
        %3196 = vmatprep.subr.bf16.mxu0 %v3133
        %3197 = vmatpush1.bf16.msra.mxu0 %v3132
        %3198 = vmatprep.subr.bf16.mxu0 %v3135
        %3199 = vmatpush1.bf16.msra.mxu0 %v3134
        %3200 = vmatprep.subr.bf16.mxu0 %v3137
        %3201 = vmatpush1.bf16.msra.mxu0 %v3136
        %3202 = vmatprep.subr.bf16.mxu0 %v3139
        %3203 = vmatpush1.bf16.msra.mxu0 %v3138
        %3204 = vmatprep.subr.bf16.mxu0 %v3141
        %3205 = vmatpush1.bf16.msra.mxu0 %v3140
        %3206 = vmatprep.subr.bf16.mxu0 %v3143
        %3207 = vmatpush1.bf16.msra.mxu0 %v3142
        %3208 = vmatprep.mubr.bf16.mxu0 %v3013
        %3209 = vmatmul.mubr.bf16.gmra.mrb[0].mxu0 %v3001
        %v3210 = vpop.f32.mrb[0].mxu0
        %v3211 = vadd.f32 0.0, %v3210
        %v3212 = vpop.f32.mrb[0].mxu0
        %v3213 = vadd.f32 0.0, %v3212
        %v3214 = vpop.f32.mrb[0].mxu0
        %v3215 = vadd.f32 0.0, %v3214
        %v3216 = vpop.f32.mrb[0].mxu0
        %v3217 = vadd.f32 0.0, %v3216
        %3218 = vdwg.mxu0
        %v3219 = vadd.f32 %v2937, %v3211
        %v3220 = vadd.f32 %v2938, %v3213
        %v3221 = vadd.f32 %v2939, %v3215
        %v3222 = vadd.f32 %v2940, %v3217
        %v3223 = vmax.f32 %v3219, 0.0
        %v3224 = vmax.f32 %v3220, 0.0
        %v3225 = vmax.f32 %v3221, 0.0
        %v3226 = vmax.f32 %v3222, 0.0
        %v3227 = vpack.c.bf16 %v3225, %v3223
        %v3228 = vpack.c.bf16 %v3226, %v3224
        %v3229 = vld [vmem:[%s3] sm:$0xf]
        %vm3230 = vcmask 130048
        %v3232 = vsel %vm3230, %v3229, 0
        %3234 = vmatprep.subr.bf16.mxu0 %v3228
        %3235 = vmatpush1.bf16.msra.mxu0 %v3227
        %3236 = vmatprep.subr.bf16.mxu0 0
        %3237 = vmatpush1.bf16.msra.mxu0 0
        %3238 = vmatprep.subr.bf16.mxu0 0
        %3239 = vmatpush1.bf16.msra.mxu0 0
        %3240 = vmatprep.subr.bf16.mxu0 0
        %3241 = vmatpush1.bf16.msra.mxu0 0
        %3242 = vmatprep.subr.bf16.mxu0 0
        %3243 = vmatpush1.bf16.msra.mxu0 0
        %3244 = vmatprep.subr.bf16.mxu0 0
        %3245 = vmatpush1.bf16.msra.mxu0 0
        %3246 = vmatprep.subr.bf16.mxu0 0
        %3247 = vmatpush1.bf16.msra.mxu0 0
        %3248 = vmatprep.subr.bf16.mxu0 0
        %3249 = vmatpush1.bf16.msra.mxu0 0
        %3250 = vmatprep.subr.bf16.mxu0 0
        %3251 = vmatpush1.bf16.msra.mxu0 0
        %3252 = vmatprep.subr.bf16.mxu0 0
        %3253 = vmatpush1.bf16.msra.mxu0 0
        %3254 = vmatprep.subr.bf16.mxu0 0
        %3255 = vmatpush1.bf16.msra.mxu0 0
        %3256 = vmatprep.subr.bf16.mxu0 0
        %3257 = vmatpush1.bf16.msra.mxu0 0
        %3258 = vmatprep.subr.bf16.mxu0 0
        %3259 = vmatpush1.bf16.msra.mxu0 0
        %3260 = vmatprep.subr.bf16.mxu0 0
        %3261 = vmatpush1.bf16.msra.mxu0 0
        %3262 = vmatprep.subr.bf16.mxu0 0
        %3263 = vmatpush1.bf16.msra.mxu0 0
        %3264 = vmatprep.subr.bf16.mxu0 0
        %3265 = vmatpush1.bf16.msra.mxu0 0
        %3266 = vmatprep.mubr.bf16.mxu0 0
        %3267 = vmatmul.mubr.bf16.gmra.mrb[0].mxu0 %v3232
        %v3268 = vpop.f32.mrb[0].mxu0
        %v3269 = vadd.f32 0.0, %v3268
        %v3270 = vpop.f32.mrb[0].mxu0
        %v3271 = vadd.f32 0.0, %v3270
        %v3272 = vpop.f32.mrb[0].mxu0
        %v3273 = vpop.f32.mrb[0].mxu0
        %3274 = vdwg.mxu0
        %v3275 = vpack.c.bf16 %v3269, %v3269
        %v3276 = vpack.c.bf16 %v3271, %v3271
        %s3277 = scalar_lea.vmem %s3, 4
        %v3278 = vld [vmem:[%s3277] sm:$0xf]
        %v3280 = vsel %vm3230, %v3278, 0
        %3282 = vmatprep.subr.bf16.mxu0 %v3228
        %3283 = vmatpush1.bf16.msra.mxu0 %v3227
        %3284 = vmatprep.subr.bf16.mxu0 0
        %3285 = vmatpush1.bf16.msra.mxu0 0
        %3286 = vmatprep.subr.bf16.mxu0 0
        %3287 = vmatpush1.bf16.msra.mxu0 0
        %3288 = vmatprep.subr.bf16.mxu0 0
        %3289 = vmatpush1.bf16.msra.mxu0 0
        %3290 = vmatprep.subr.bf16.mxu0 0
        %3291 = vmatpush1.bf16.msra.mxu0 0
        %3292 = vmatprep.subr.bf16.mxu0 0
        %3293 = vmatpush1.bf16.msra.mxu0 0
        %3294 = vmatprep.subr.bf16.mxu0 0
        %3295 = vmatpush1.bf16.msra.mxu0 0
        %3296 = vmatprep.subr.bf16.mxu0 0
        %3297 = vmatpush1.bf16.msra.mxu0 0
        %3298 = vmatprep.subr.bf16.mxu0 0
        %3299 = vmatpush1.bf16.msra.mxu0 0
        %3300 = vmatprep.subr.bf16.mxu0 0
        %3301 = vmatpush1.bf16.msra.mxu0 0
        %3302 = vmatprep.subr.bf16.mxu0 0
        %3303 = vmatpush1.bf16.msra.mxu0 0
        %3304 = vmatprep.subr.bf16.mxu0 0
        %3305 = vmatpush1.bf16.msra.mxu0 0
        %3306 = vmatprep.subr.bf16.mxu0 0
        %3307 = vmatpush1.bf16.msra.mxu0 0
        %3308 = vmatprep.subr.bf16.mxu0 0
        %3309 = vmatpush1.bf16.msra.mxu0 0
        %3310 = vmatprep.subr.bf16.mxu0 0
        %3311 = vmatpush1.bf16.msra.mxu0 0
        %3312 = vmatprep.subr.bf16.mxu0 0
        %3313 = vmatpush1.bf16.msra.mxu0 0
        %3314 = vmatprep.mubr.bf16.mxu0 0
        %3315 = vmatmul.mubr.bf16.gmra.mrb[0].mxu0 %v3280
        %v3316 = vpop.f32.mrb[0].mxu0
        %v3317 = vadd.f32 0.0, %v3316
        %v3318 = vpop.f32.mrb[0].mxu0
        %v3319 = vadd.f32 0.0, %v3318
        %v3320 = vpop.f32.mrb[0].mxu0
        %v3321 = vpop.f32.mrb[0].mxu0
        %3322 = vdwg.mxu0
        %v3323 = vpack.c.bf16 %v3317, %v3317
        %v3324 = vpack.c.bf16 %v3319, %v3319
        %v3327 = vunpack.c.l.b16 %v3275
        %v3328 = vunpack.c.l.b16 %v3276
        %v3329 = vpack.c.b16 %v3328, %v3327
        %s3331 = scalar_lea.vmem [#allocation4], 16
        %3332 = vst [vmem:[%s3331] sm:$0xff] %v3329
        %v3333 = vld [vmem:[%s3331 + $0x8] sm:$0x11]
        %v3334 = vsel %vm717, 0, %v3333
        %3335 = vst [vmem:[%s3331 + $0x8] sm:$0x11] %v3334
        %v3336 = vld [vmem:[#allocation4] sm:$0x11]
        %v3337 = vsel %vm717, 0, %v3336
        %3338 = vst [vmem:[#allocation4] sm:$0x11] %v3337
        %v3341 = vunpack.c.l.b16 %v3323
        %v3342 = vunpack.c.l.b16 %v3324
        %v3343 = vpack.c.b16 %v3342, %v3341
        %v3345 = vshrl.u32 %v3343, 16
        %v3347 = vrot.slane %v3345, 7
        %v3348 = vshll.u32 %v3343, 16
        %v3350 = vor.u32 %v3347, %v3348
        %v3351 = vrot.slane %v3347, 4
        %v3354 = vld [vmem:[#allocation4] sm:$0xff]
        %v3355 = vsel %vm788, %v3350, %v3354
        %3356 = vst [vmem:[#allocation4] sm:$0xff] %v3355
        %v3357 = vld [vmem:[#allocation4 + $0x8] sm:$0x11]
        %v3358 = vsel %vm717, %v3351, %v3357
        %3359 = vst [vmem:[#allocation4 + $0x8] sm:$0x11] %v3358
        %v3360 = vld [vmem:[#allocation4] sm:$0xff]
        %v3361 = vld [vmem:[#allocation8] sm:$0xff]
        %v3362 = vld [vmem:[#allocation8 + $0x8] sm:$0xff]
        %v3363 = vld [vmem:[#allocation8 + $0x10] sm:$0xff]
        %v3364 = vld [vmem:[#allocation8 + $0x18] sm:$0xff]
        %v3365 = vld [vmem:[#allocation8 + $0x20] sm:$0xff]
        %v3366 = vld [vmem:[#allocation8 + $0x28] sm:$0xff]
        %v3367 = vld [vmem:[#allocation8 + $0x30] sm:$0xff]
        %v3368 = vld [vmem:[#allocation8 + $0x38] sm:$0xff]
        %v3369 = vld [vmem:[#allocation8 + $0x40] sm:$0xff]
        %v3370 = vld [vmem:[#allocation8 + $0x48] sm:$0xff]
        %v3371 = vld [vmem:[#allocation8 + $0x50] sm:$0xff]
        %v3372 = vld [vmem:[#allocation8 + $0x58] sm:$0xff]
        %v3373 = vld [vmem:[#allocation8 + $0x60] sm:$0xff]
        %v3374 = vld [vmem:[#allocation8 + $0x68] sm:$0xff]
        %v3375 = vld [vmem:[#allocation8 + $0x70] sm:$0xff]
        %v3376 = vld [vmem:[#allocation8 + $0x78] sm:$0xff]
        %v3377 = vld [vmem:[#allocation8 + $0x80] sm:$0xff]
        %v3378 = vld [vmem:[#allocation8 + $0x88] sm:$0xff]
        %v3379 = vld [vmem:[#allocation8 + $0x90] sm:$0xff]
        %v3380 = vld [vmem:[#allocation8 + $0x98] sm:$0xff]
        %v3381 = vld [vmem:[#allocation8 + $0xa0] sm:$0xff]
        %v3382 = vld [vmem:[#allocation8 + $0xa8] sm:$0xff]
        %v3383 = vld [vmem:[#allocation8 + $0xb0] sm:$0xff]
        %v3384 = vld [vmem:[#allocation8 + $0xb8] sm:$0xff]
        %v3385 = vld [vmem:[#allocation8 + $0xc0] sm:$0xff]
        %v3386 = vld [vmem:[#allocation8 + $0xc8] sm:$0xff]
        %v3387 = vld [vmem:[#allocation8 + $0xd0] sm:$0xff]
        %v3388 = vld [vmem:[#allocation8 + $0xd8] sm:$0xff]
        %v3389 = vld [vmem:[#allocation8 + $0xe0] sm:$0xff]
        %v3390 = vld [vmem:[#allocation8 + $0xe8] sm:$0xff]
        %v3391 = vld [vmem:[#allocation8 + $0xf0] sm:$0xff]
        %v3392 = vld [vmem:[#allocation8 + $0xf8] sm:$0xff]
        %v3393 = vld [vmem:[%s3331] sm:$0xff]
        %s3394 = scalar_lea.vmem [#allocation8], 256
        %v3395 = vld [vmem:[%s3394] sm:$0xff]
        %v3396 = vld [vmem:[%s3394 + $0x8] sm:$0xff]
        %v3397 = vld [vmem:[%s3394 + $0x10] sm:$0xff]
        %v3398 = vld [vmem:[%s3394 + $0x18] sm:$0xff]
        %v3399 = vld [vmem:[%s3394 + $0x20] sm:$0xff]
        %v3400 = vld [vmem:[%s3394 + $0x28] sm:$0xff]
        %v3401 = vld [vmem:[%s3394 + $0x30] sm:$0xff]
        %v3402 = vld [vmem:[%s3394 + $0x38] sm:$0xff]
        %v3403 = vld [vmem:[%s3394 + $0x40] sm:$0xff]
        %v3404 = vld [vmem:[%s3394 + $0x48] sm:$0xff]
        %v3405 = vld [vmem:[%s3394 + $0x50] sm:$0xff]
        %v3406 = vld [vmem:[%s3394 + $0x58] sm:$0xff]
        %v3407 = vld [vmem:[%s3394 + $0x60] sm:$0xff]
        %v3408 = vld [vmem:[%s3394 + $0x68] sm:$0xff]
        %v3409 = vld [vmem:[%s3394 + $0x70] sm:$0xff]
        %v3410 = vld [vmem:[%s3394 + $0x78] sm:$0xff]
        %v3411 = vld [vmem:[%s3394 + $0x80] sm:$0xff]
        %v3412 = vld [vmem:[%s3394 + $0x88] sm:$0xff]
        %v3413 = vld [vmem:[%s3394 + $0x90] sm:$0xff]
        %v3414 = vld [vmem:[%s3394 + $0x98] sm:$0xff]
        %v3415 = vld [vmem:[%s3394 + $0xa0] sm:$0xff]
        %v3416 = vld [vmem:[%s3394 + $0xa8] sm:$0xff]
        %v3417 = vld [vmem:[%s3394 + $0xb0] sm:$0xff]
        %v3418 = vld [vmem:[%s3394 + $0xb8] sm:$0xff]
        %v3419 = vld [vmem:[%s3394 + $0xc0] sm:$0xff]
        %v3420 = vld [vmem:[%s3394 + $0xc8] sm:$0xff]
        %v3421 = vld [vmem:[%s3394 + $0xd0] sm:$0xff]
        %v3422 = vld [vmem:[%s3394 + $0xd8] sm:$0xff]
        %v3423 = vld [vmem:[%s3394 + $0xe0] sm:$0xff]
        %v3424 = vld [vmem:[%s3394 + $0xe8] sm:$0xff]
        %v3425 = vld [vmem:[%s3394 + $0xf0] sm:$0xff]
        %v3426 = vld [vmem:[%s3394 + $0xf8] sm:$0xff]
        %v3428 = vunpack.c.l.b16 %v3393
        %v3429 = vunpack.c.h.b16 %v3393
        %v3430 = vpack.c.b16 %v3428, %v3428
        %v3431 = vpack.c.b16 %v3429, %v3429
        %v3466 = vunpack.c.l.b16 %v3395
        %v3467 = vunpack.c.h.b16 %v3395
        %v3468 = vunpack.c.l.b16 %v3396
        %v3469 = vunpack.c.h.b16 %v3396
        %v3470 = vunpack.c.l.b16 %v3397
        %v3471 = vunpack.c.h.b16 %v3397
        %v3472 = vunpack.c.l.b16 %v3398
        %v3473 = vunpack.c.h.b16 %v3398
        %v3474 = vunpack.c.l.b16 %v3399
        %v3475 = vunpack.c.h.b16 %v3399
        %v3476 = vunpack.c.l.b16 %v3400
        %v3477 = vunpack.c.h.b16 %v3400
        %v3478 = vunpack.c.l.b16 %v3401
        %v3479 = vunpack.c.h.b16 %v3401
        %v3480 = vunpack.c.l.b16 %v3402
        %v3481 = vunpack.c.h.b16 %v3402
        %v3482 = vunpack.c.l.b16 %v3403
        %v3483 = vunpack.c.h.b16 %v3403
        %v3484 = vunpack.c.l.b16 %v3404
        %v3485 = vunpack.c.h.b16 %v3404
        %v3486 = vunpack.c.l.b16 %v3405
        %v3487 = vunpack.c.h.b16 %v3405
        %v3488 = vunpack.c.l.b16 %v3406
        %v3489 = vunpack.c.h.b16 %v3406
        %v3490 = vunpack.c.l.b16 %v3407
        %v3491 = vunpack.c.h.b16 %v3407
        %v3492 = vunpack.c.l.b16 %v3408
        %v3493 = vunpack.c.h.b16 %v3408
        %v3494 = vunpack.c.l.b16 %v3409
        %v3495 = vunpack.c.h.b16 %v3409
        %v3496 = vunpack.c.l.b16 %v3410
        %v3497 = vunpack.c.h.b16 %v3410
        %v3498 = vunpack.c.l.b16 %v3411
        %v3499 = vunpack.c.h.b16 %v3411
        %v3500 = vunpack.c.l.b16 %v3412
        %v3501 = vunpack.c.h.b16 %v3412
        %v3502 = vunpack.c.l.b16 %v3413
        %v3503 = vunpack.c.h.b16 %v3413
        %v3504 = vunpack.c.l.b16 %v3414
        %v3505 = vunpack.c.h.b16 %v3414
        %v3506 = vunpack.c.l.b16 %v3415
        %v3507 = vunpack.c.h.b16 %v3415
        %v3508 = vunpack.c.l.b16 %v3416
        %v3509 = vunpack.c.h.b16 %v3416
        %v3510 = vunpack.c.l.b16 %v3417
        %v3511 = vunpack.c.h.b16 %v3417
        %v3512 = vunpack.c.l.b16 %v3418
        %v3513 = vunpack.c.h.b16 %v3418
        %v3514 = vunpack.c.l.b16 %v3419
        %v3515 = vunpack.c.h.b16 %v3419
        %v3516 = vunpack.c.l.b16 %v3420
        %v3517 = vunpack.c.h.b16 %v3420
        %v3518 = vunpack.c.l.b16 %v3421
        %v3519 = vunpack.c.h.b16 %v3421
        %v3520 = vunpack.c.l.b16 %v3422
        %v3521 = vunpack.c.h.b16 %v3422
        %v3522 = vunpack.c.l.b16 %v3423
        %v3523 = vunpack.c.h.b16 %v3423
        %v3524 = vunpack.c.l.b16 %v3424
        %v3525 = vunpack.c.h.b16 %v3424
        %v3526 = vunpack.c.l.b16 %v3425
        %v3527 = vunpack.c.h.b16 %v3425
        %v3528 = vunpack.c.l.b16 %v3426
        %v3529 = vunpack.c.h.b16 %v3426
        %v3530 = vpack.c.b16 %v3468, %v3466
        %v3531 = vpack.c.b16 %v3469, %v3467
        %v3532 = vpack.c.b16 %v3472, %v3470
        %v3533 = vpack.c.b16 %v3473, %v3471
        %v3534 = vpack.c.b16 %v3476, %v3474
        %v3535 = vpack.c.b16 %v3477, %v3475
        %v3536 = vpack.c.b16 %v3480, %v3478
        %v3537 = vpack.c.b16 %v3481, %v3479
        %v3538 = vpack.c.b16 %v3484, %v3482
        %v3539 = vpack.c.b16 %v3485, %v3483
        %v3540 = vpack.c.b16 %v3488, %v3486
        %v3541 = vpack.c.b16 %v3489, %v3487
        %v3542 = vpack.c.b16 %v3492, %v3490
        %v3543 = vpack.c.b16 %v3493, %v3491
        %v3544 = vpack.c.b16 %v3496, %v3494
        %v3545 = vpack.c.b16 %v3497, %v3495
        %v3546 = vpack.c.b16 %v3500, %v3498
        %v3547 = vpack.c.b16 %v3501, %v3499
        %v3548 = vpack.c.b16 %v3504, %v3502
        %v3549 = vpack.c.b16 %v3505, %v3503
        %v3550 = vpack.c.b16 %v3508, %v3506
        %v3551 = vpack.c.b16 %v3509, %v3507
        %v3552 = vpack.c.b16 %v3512, %v3510
        %v3553 = vpack.c.b16 %v3513, %v3511
        %v3554 = vpack.c.b16 %v3516, %v3514
        %v3555 = vpack.c.b16 %v3517, %v3515
        %v3556 = vpack.c.b16 %v3520, %v3518
        %v3557 = vpack.c.b16 %v3521, %v3519
        %v3558 = vpack.c.b16 %v3524, %v3522
        %v3559 = vpack.c.b16 %v3525, %v3523
        %v3560 = vpack.c.b16 %v3528, %v3526
        %v3561 = vpack.c.b16 %v3529, %v3527
        %3594 = vmatprep.subr.bf16.mxu0 %v3531
        %3595 = vmatpush1.bf16.msra.mxu0 %v3530
        %3596 = vmatprep.subr.bf16.mxu0 %v3533
        %3597 = vmatpush1.bf16.msra.mxu0 %v3532
        %3598 = vmatprep.subr.bf16.mxu0 %v3535
        %3599 = vmatpush1.bf16.msra.mxu0 %v3534
        %3600 = vmatprep.subr.bf16.mxu0 %v3537
        %3601 = vmatpush1.bf16.msra.mxu0 %v3536
        %3602 = vmatprep.subr.bf16.mxu0 %v3539
        %3603 = vmatpush1.bf16.msra.mxu0 %v3538
        %3604 = vmatprep.subr.bf16.mxu0 %v3541
        %3605 = vmatpush1.bf16.msra.mxu0 %v3540
        %3606 = vmatprep.subr.bf16.mxu0 %v3543
        %3607 = vmatpush1.bf16.msra.mxu0 %v3542
        %3608 = vmatprep.subr.bf16.mxu0 %v3545
        %3609 = vmatpush1.bf16.msra.mxu0 %v3544
        %3610 = vmatprep.subr.bf16.mxu0 %v3547
        %3611 = vmatpush1.bf16.msra.mxu0 %v3546
        %3612 = vmatprep.subr.bf16.mxu0 %v3549
        %3613 = vmatpush1.bf16.msra.mxu0 %v3548
        %3614 = vmatprep.subr.bf16.mxu0 %v3551
        %3615 = vmatpush1.bf16.msra.mxu0 %v3550
        %3616 = vmatprep.subr.bf16.mxu0 %v3553
        %3617 = vmatpush1.bf16.msra.mxu0 %v3552
        %3618 = vmatprep.subr.bf16.mxu0 %v3555
        %3619 = vmatpush1.bf16.msra.mxu0 %v3554
        %3620 = vmatprep.subr.bf16.mxu0 %v3557
        %3621 = vmatpush1.bf16.msra.mxu0 %v3556
        %3622 = vmatprep.subr.bf16.mxu0 %v3559
        %3623 = vmatpush1.bf16.msra.mxu0 %v3558
        %3624 = vmatprep.subr.bf16.mxu0 %v3561
        %3625 = vmatpush1.bf16.msra.mxu0 %v3560
        %3626 = vmatprep.mubr.bf16.mxu0 %v3431
        %3627 = vmatmul.mubr.bf16.gmra.mrb[0].mxu0 %v3430
        %v3628 = vpop.f32.mrb[0].mxu0
        %v3629 = vadd.f32 0.0, %v3628
        %v3630 = vpop.f32.mrb[0].mxu0
        %v3631 = vadd.f32 0.0, %v3630
        %v3632 = vpop.f32.mrb[0].mxu0
        %v3633 = vpop.f32.mrb[0].mxu0
        %3634 = vdwg.mxu0
        %v3636 = vunpack.c.l.b16 %v3360
        %v3637 = vunpack.c.h.b16 %v3360
        %v3638 = vpack.c.b16 %v3636, %v3636
        %v3639 = vpack.c.b16 %v3637, %v3637
        %v3674 = vunpack.c.l.b16 %v3361
        %v3675 = vunpack.c.h.b16 %v3361
        %v3676 = vunpack.c.l.b16 %v3362
        %v3677 = vunpack.c.h.b16 %v3362
        %v3678 = vunpack.c.l.b16 %v3363
        %v3679 = vunpack.c.h.b16 %v3363
        %v3680 = vunpack.c.l.b16 %v3364
        %v3681 = vunpack.c.h.b16 %v3364
        %v3682 = vunpack.c.l.b16 %v3365
        %v3683 = vunpack.c.h.b16 %v3365
        %v3684 = vunpack.c.l.b16 %v3366
        %v3685 = vunpack.c.h.b16 %v3366
        %v3686 = vunpack.c.l.b16 %v3367
        %v3687 = vunpack.c.h.b16 %v3367
        %v3688 = vunpack.c.l.b16 %v3368
        %v3689 = vunpack.c.h.b16 %v3368
        %v3690 = vunpack.c.l.b16 %v3369
        %v3691 = vunpack.c.h.b16 %v3369
        %v3692 = vunpack.c.l.b16 %v3370
        %v3693 = vunpack.c.h.b16 %v3370
        %v3694 = vunpack.c.l.b16 %v3371
        %v3695 = vunpack.c.h.b16 %v3371
        %v3696 = vunpack.c.l.b16 %v3372
        %v3697 = vunpack.c.h.b16 %v3372
        %v3698 = vunpack.c.l.b16 %v3373
        %v3699 = vunpack.c.h.b16 %v3373
        %v3700 = vunpack.c.l.b16 %v3374
        %v3701 = vunpack.c.h.b16 %v3374
        %v3702 = vunpack.c.l.b16 %v3375
        %v3703 = vunpack.c.h.b16 %v3375
        %v3704 = vunpack.c.l.b16 %v3376
        %v3705 = vunpack.c.h.b16 %v3376
        %v3706 = vunpack.c.l.b16 %v3377
        %v3707 = vunpack.c.h.b16 %v3377
        %v3708 = vunpack.c.l.b16 %v3378
        %v3709 = vunpack.c.h.b16 %v3378
        %v3710 = vunpack.c.l.b16 %v3379
        %v3711 = vunpack.c.h.b16 %v3379
        %v3712 = vunpack.c.l.b16 %v3380
        %v3713 = vunpack.c.h.b16 %v3380
        %v3714 = vunpack.c.l.b16 %v3381
        %v3715 = vunpack.c.h.b16 %v3381
        %v3716 = vunpack.c.l.b16 %v3382
        %v3717 = vunpack.c.h.b16 %v3382
        %v3718 = vunpack.c.l.b16 %v3383
        %v3719 = vunpack.c.h.b16 %v3383
        %v3720 = vunpack.c.l.b16 %v3384
        %v3721 = vunpack.c.h.b16 %v3384
        %v3722 = vunpack.c.l.b16 %v3385
        %v3723 = vunpack.c.h.b16 %v3385
        %v3724 = vunpack.c.l.b16 %v3386
        %v3725 = vunpack.c.h.b16 %v3386
        %v3726 = vunpack.c.l.b16 %v3387
        %v3727 = vunpack.c.h.b16 %v3387
        %v3728 = vunpack.c.l.b16 %v3388
        %v3729 = vunpack.c.h.b16 %v3388
        %v3730 = vunpack.c.l.b16 %v3389
        %v3731 = vunpack.c.h.b16 %v3389
        %v3732 = vunpack.c.l.b16 %v3390
        %v3733 = vunpack.c.h.b16 %v3390
        %v3734 = vunpack.c.l.b16 %v3391
        %v3735 = vunpack.c.h.b16 %v3391
        %v3736 = vunpack.c.l.b16 %v3392
        %v3737 = vunpack.c.h.b16 %v3392
        %v3738 = vpack.c.b16 %v3676, %v3674
        %v3739 = vpack.c.b16 %v3677, %v3675
        %v3740 = vpack.c.b16 %v3680, %v3678
        %v3741 = vpack.c.b16 %v3681, %v3679
        %v3742 = vpack.c.b16 %v3684, %v3682
        %v3743 = vpack.c.b16 %v3685, %v3683
        %v3744 = vpack.c.b16 %v3688, %v3686
        %v3745 = vpack.c.b16 %v3689, %v3687
        %v3746 = vpack.c.b16 %v3692, %v3690
        %v3747 = vpack.c.b16 %v3693, %v3691
        %v3748 = vpack.c.b16 %v3696, %v3694
        %v3749 = vpack.c.b16 %v3697, %v3695
        %v3750 = vpack.c.b16 %v3700, %v3698
        %v3751 = vpack.c.b16 %v3701, %v3699
        %v3752 = vpack.c.b16 %v3704, %v3702
        %v3753 = vpack.c.b16 %v3705, %v3703
        %v3754 = vpack.c.b16 %v3708, %v3706
        %v3755 = vpack.c.b16 %v3709, %v3707
        %v3756 = vpack.c.b16 %v3712, %v3710
        %v3757 = vpack.c.b16 %v3713, %v3711
        %v3758 = vpack.c.b16 %v3716, %v3714
        %v3759 = vpack.c.b16 %v3717, %v3715
        %v3760 = vpack.c.b16 %v3720, %v3718
        %v3761 = vpack.c.b16 %v3721, %v3719
        %v3762 = vpack.c.b16 %v3724, %v3722
        %v3763 = vpack.c.b16 %v3725, %v3723
        %v3764 = vpack.c.b16 %v3728, %v3726
        %v3765 = vpack.c.b16 %v3729, %v3727
        %v3766 = vpack.c.b16 %v3732, %v3730
        %v3767 = vpack.c.b16 %v3733, %v3731
        %v3768 = vpack.c.b16 %v3736, %v3734
        %v3769 = vpack.c.b16 %v3737, %v3735
        %3802 = vmatprep.subr.bf16.mxu0 %v3739
        %3803 = vmatpush1.bf16.msra.mxu0 %v3738
        %3804 = vmatprep.subr.bf16.mxu0 %v3741
        %3805 = vmatpush1.bf16.msra.mxu0 %v3740
        %3806 = vmatprep.subr.bf16.mxu0 %v3743
        %3807 = vmatpush1.bf16.msra.mxu0 %v3742
        %3808 = vmatprep.subr.bf16.mxu0 %v3745
        %3809 = vmatpush1.bf16.msra.mxu0 %v3744
        %3810 = vmatprep.subr.bf16.mxu0 %v3747
        %3811 = vmatpush1.bf16.msra.mxu0 %v3746
        %3812 = vmatprep.subr.bf16.mxu0 %v3749
        %3813 = vmatpush1.bf16.msra.mxu0 %v3748
        %3814 = vmatprep.subr.bf16.mxu0 %v3751
        %3815 = vmatpush1.bf16.msra.mxu0 %v3750
        %3816 = vmatprep.subr.bf16.mxu0 %v3753
        %3817 = vmatpush1.bf16.msra.mxu0 %v3752
        %3818 = vmatprep.subr.bf16.mxu0 %v3755
        %3819 = vmatpush1.bf16.msra.mxu0 %v3754
        %3820 = vmatprep.subr.bf16.mxu0 %v3757
        %3821 = vmatpush1.bf16.msra.mxu0 %v3756
        %3822 = vmatprep.subr.bf16.mxu0 %v3759
        %3823 = vmatpush1.bf16.msra.mxu0 %v3758
        %3824 = vmatprep.subr.bf16.mxu0 %v3761
        %3825 = vmatpush1.bf16.msra.mxu0 %v3760
        %3826 = vmatprep.subr.bf16.mxu0 %v3763
        %3827 = vmatpush1.bf16.msra.mxu0 %v3762
        %3828 = vmatprep.subr.bf16.mxu0 %v3765
        %3829 = vmatpush1.bf16.msra.mxu0 %v3764
        %3830 = vmatprep.subr.bf16.mxu0 %v3767
        %3831 = vmatpush1.bf16.msra.mxu0 %v3766
        %3832 = vmatprep.subr.bf16.mxu0 %v3769
        %3833 = vmatpush1.bf16.msra.mxu0 %v3768
        %3834 = vmatprep.mubr.bf16.mxu0 %v3639
        %3835 = vmatmul.mubr.bf16.gmra.mrb[0].mxu0 %v3638
        %v3836 = vpop.f32.mrb[0].mxu0
        %v3837 = vadd.f32 %v3629, %v3836
        %v3838 = vpop.f32.mrb[0].mxu0
        %v3839 = vadd.f32 %v3631, %v3838
        %v3840 = vpop.f32.mrb[0].mxu0
        %v3841 = vpop.f32.mrb[0].mxu0
        %3842 = vdwg.mxu0
        %v3843 = vld [vmem:[#allocation4] sm:$0xff]
        %v3844 = vld [vmem:[#allocation4 + $0x8] sm:$0x11]
        %s3845 = scalar_lea.vmem [#allocation8], 512
        %v3846 = vld [vmem:[%s3845] sm:$0xff]
        %v3847 = vld [vmem:[%s3845 + $0x8] sm:$0xff]
        %v3848 = vld [vmem:[%s3845 + $0x10] sm:$0xff]
        %v3849 = vld [vmem:[%s3845 + $0x18] sm:$0xff]
        %v3850 = vld [vmem:[%s3845 + $0x20] sm:$0xff]
        %v3851 = vld [vmem:[%s3845 + $0x28] sm:$0xff]
        %v3852 = vld [vmem:[%s3845 + $0x30] sm:$0xff]
        %v3853 = vld [vmem:[%s3845 + $0x38] sm:$0xff]
        %v3854 = vld [vmem:[%s3845 + $0x40] sm:$0xff]
        %v3855 = vld [vmem:[%s3845 + $0x48] sm:$0xff]
        %v3856 = vld [vmem:[%s3845 + $0x50] sm:$0xff]
        %v3857 = vld [vmem:[%s3845 + $0x58] sm:$0xff]
        %v3858 = vld [vmem:[%s3845 + $0x60] sm:$0xff]
        %v3859 = vld [vmem:[%s3845 + $0x68] sm:$0xff]
        %v3860 = vld [vmem:[%s3845 + $0x70] sm:$0xff]
        %v3861 = vld [vmem:[%s3845 + $0x78] sm:$0xff]
        %v3862 = vld [vmem:[%s3845 + $0x80] sm:$0xff]
        %v3863 = vld [vmem:[%s3845 + $0x88] sm:$0xff]
        %v3864 = vld [vmem:[%s3845 + $0x90] sm:$0xff]
        %v3865 = vld [vmem:[%s3845 + $0x98] sm:$0xff]
        %v3866 = vld [vmem:[%s3845 + $0xa0] sm:$0xff]
        %v3867 = vld [vmem:[%s3845 + $0xa8] sm:$0xff]
        %v3868 = vld [vmem:[%s3845 + $0xb0] sm:$0xff]
        %v3869 = vld [vmem:[%s3845 + $0xb8] sm:$0xff]
        %v3870 = vld [vmem:[%s3845 + $0xc0] sm:$0xff]
        %v3871 = vld [vmem:[%s3845 + $0xc8] sm:$0xff]
        %v3872 = vld [vmem:[%s3845 + $0xd0] sm:$0xff]
        %v3873 = vld [vmem:[%s3845 + $0xd8] sm:$0xff]
        %v3874 = vld [vmem:[%s3845 + $0xe0] sm:$0xff]
        %v3875 = vld [vmem:[%s3845 + $0xe8] sm:$0xff]
        %v3876 = vld [vmem:[%s3845 + $0xf0] sm:$0xff]
        %v3877 = vld [vmem:[%s3845 + $0xf8] sm:$0xff]
        %v3880 = vunpack.c.l.b16 %v3843
        %v3881 = vunpack.c.h.b16 %v3843
        %v3882 = vunpack.c.l.b16 %v3844
        %v3883 = vunpack.c.h.b16 %v3844
        %v3884 = vpack.c.b16 %v3882, %v3880
        %v3885 = vpack.c.b16 %v3883, %v3881
        %v3887 = vshrl.u32 %v3884, 16
        %v3889 = vshll.u32 %v3884, 16
        %v3891 = vrot.slane %v3889, 1
        %v3892 = vor.u32 %v3887, %v3891
        %v3894 = vshrl.u32 %v3885, 16
        %v3896 = vshll.u32 %v3885, 16
        %v3898 = vrot.slane %v3896, 1
        %v3899 = vor.u32 %v3894, %v3898
        %v3934 = vunpack.c.l.b16 %v3846
        %v3935 = vunpack.c.h.b16 %v3846
        %v3936 = vunpack.c.l.b16 %v3847
        %v3937 = vunpack.c.h.b16 %v3847
        %v3938 = vunpack.c.l.b16 %v3848
        %v3939 = vunpack.c.h.b16 %v3848
        %v3940 = vunpack.c.l.b16 %v3849
        %v3941 = vunpack.c.h.b16 %v3849
        %v3942 = vunpack.c.l.b16 %v3850
        %v3943 = vunpack.c.h.b16 %v3850
        %v3944 = vunpack.c.l.b16 %v3851
        %v3945 = vunpack.c.h.b16 %v3851
        %v3946 = vunpack.c.l.b16 %v3852
        %v3947 = vunpack.c.h.b16 %v3852
        %v3948 = vunpack.c.l.b16 %v3853
        %v3949 = vunpack.c.h.b16 %v3853
        %v3950 = vunpack.c.l.b16 %v3854
        %v3951 = vunpack.c.h.b16 %v3854
        %v3952 = vunpack.c.l.b16 %v3855
        %v3953 = vunpack.c.h.b16 %v3855
        %v3954 = vunpack.c.l.b16 %v3856
        %v3955 = vunpack.c.h.b16 %v3856
        %v3956 = vunpack.c.l.b16 %v3857
        %v3957 = vunpack.c.h.b16 %v3857
        %v3958 = vunpack.c.l.b16 %v3858
        %v3959 = vunpack.c.h.b16 %v3858
        %v3960 = vunpack.c.l.b16 %v3859
        %v3961 = vunpack.c.h.b16 %v3859
        %v3962 = vunpack.c.l.b16 %v3860
        %v3963 = vunpack.c.h.b16 %v3860
        %v3964 = vunpack.c.l.b16 %v3861
        %v3965 = vunpack.c.h.b16 %v3861
        %v3966 = vunpack.c.l.b16 %v3862
        %v3967 = vunpack.c.h.b16 %v3862
        %v3968 = vunpack.c.l.b16 %v3863
        %v3969 = vunpack.c.h.b16 %v3863
        %v3970 = vunpack.c.l.b16 %v3864
        %v3971 = vunpack.c.h.b16 %v3864
        %v3972 = vunpack.c.l.b16 %v3865
        %v3973 = vunpack.c.h.b16 %v3865
        %v3974 = vunpack.c.l.b16 %v3866
        %v3975 = vunpack.c.h.b16 %v3866
        %v3976 = vunpack.c.l.b16 %v3867
        %v3977 = vunpack.c.h.b16 %v3867
        %v3978 = vunpack.c.l.b16 %v3868
        %v3979 = vunpack.c.h.b16 %v3868
        %v3980 = vunpack.c.l.b16 %v3869
        %v3981 = vunpack.c.h.b16 %v3869
        %v3982 = vunpack.c.l.b16 %v3870
        %v3983 = vunpack.c.h.b16 %v3870
        %v3984 = vunpack.c.l.b16 %v3871
        %v3985 = vunpack.c.h.b16 %v3871
        %v3986 = vunpack.c.l.b16 %v3872
        %v3987 = vunpack.c.h.b16 %v3872
        %v3988 = vunpack.c.l.b16 %v3873
        %v3989 = vunpack.c.h.b16 %v3873
        %v3990 = vunpack.c.l.b16 %v3874
        %v3991 = vunpack.c.h.b16 %v3874
        %v3992 = vunpack.c.l.b16 %v3875
        %v3993 = vunpack.c.h.b16 %v3875
        %v3994 = vunpack.c.l.b16 %v3876
        %v3995 = vunpack.c.h.b16 %v3876
        %v3996 = vunpack.c.l.b16 %v3877
        %v3997 = vunpack.c.h.b16 %v3877
        %v3998 = vpack.c.b16 %v3936, %v3934
        %v3999 = vpack.c.b16 %v3937, %v3935
        %v4000 = vpack.c.b16 %v3940, %v3938
        %v4001 = vpack.c.b16 %v3941, %v3939
        %v4002 = vpack.c.b16 %v3944, %v3942
        %v4003 = vpack.c.b16 %v3945, %v3943
        %v4004 = vpack.c.b16 %v3948, %v3946
        %v4005 = vpack.c.b16 %v3949, %v3947
        %v4006 = vpack.c.b16 %v3952, %v3950
        %v4007 = vpack.c.b16 %v3953, %v3951
        %v4008 = vpack.c.b16 %v3956, %v3954
        %v4009 = vpack.c.b16 %v3957, %v3955
        %v4010 = vpack.c.b16 %v3960, %v3958
        %v4011 = vpack.c.b16 %v3961, %v3959
        %v4012 = vpack.c.b16 %v3964, %v3962
        %v4013 = vpack.c.b16 %v3965, %v3963
        %v4014 = vpack.c.b16 %v3968, %v3966
        %v4015 = vpack.c.b16 %v3969, %v3967
        %v4016 = vpack.c.b16 %v3972, %v3970
        %v4017 = vpack.c.b16 %v3973, %v3971
        %v4018 = vpack.c.b16 %v3976, %v3974
        %v4019 = vpack.c.b16 %v3977, %v3975
        %v4020 = vpack.c.b16 %v3980, %v3978
        %v4021 = vpack.c.b16 %v3981, %v3979
        %v4022 = vpack.c.b16 %v3984, %v3982
        %v4023 = vpack.c.b16 %v3985, %v3983
        %v4024 = vpack.c.b16 %v3988, %v3986
        %v4025 = vpack.c.b16 %v3989, %v3987
        %v4026 = vpack.c.b16 %v3992, %v3990
        %v4027 = vpack.c.b16 %v3993, %v3991
        %v4028 = vpack.c.b16 %v3996, %v3994
        %v4029 = vpack.c.b16 %v3997, %v3995
        %4062 = vmatprep.subr.bf16.mxu0 %v3999
        %4063 = vmatpush1.bf16.msra.mxu0 %v3998
        %4064 = vmatprep.subr.bf16.mxu0 %v4001
        %4065 = vmatpush1.bf16.msra.mxu0 %v4000
        %4066 = vmatprep.subr.bf16.mxu0 %v4003
        %4067 = vmatpush1.bf16.msra.mxu0 %v4002
        %4068 = vmatprep.subr.bf16.mxu0 %v4005
        %4069 = vmatpush1.bf16.msra.mxu0 %v4004
        %4070 = vmatprep.subr.bf16.mxu0 %v4007
        %4071 = vmatpush1.bf16.msra.mxu0 %v4006
        %4072 = vmatprep.subr.bf16.mxu0 %v4009
        %4073 = vmatpush1.bf16.msra.mxu0 %v4008
        %4074 = vmatprep.subr.bf16.mxu0 %v4011
        %4075 = vmatpush1.bf16.msra.mxu0 %v4010
        %4076 = vmatprep.subr.bf16.mxu0 %v4013
        %4077 = vmatpush1.bf16.msra.mxu0 %v4012
        %4078 = vmatprep.subr.bf16.mxu0 %v4015
        %4079 = vmatpush1.bf16.msra.mxu0 %v4014
        %4080 = vmatprep.subr.bf16.mxu0 %v4017
        %4081 = vmatpush1.bf16.msra.mxu0 %v4016
        %4082 = vmatprep.subr.bf16.mxu0 %v4019
        %4083 = vmatpush1.bf16.msra.mxu0 %v4018
        %4084 = vmatprep.subr.bf16.mxu0 %v4021
        %4085 = vmatpush1.bf16.msra.mxu0 %v4020
        %4086 = vmatprep.subr.bf16.mxu0 %v4023
        %4087 = vmatpush1.bf16.msra.mxu0 %v4022
        %4088 = vmatprep.subr.bf16.mxu0 %v4025
        %4089 = vmatpush1.bf16.msra.mxu0 %v4024
        %4090 = vmatprep.subr.bf16.mxu0 %v4027
        %4091 = vmatpush1.bf16.msra.mxu0 %v4026
        %4092 = vmatprep.subr.bf16.mxu0 %v4029
        %4093 = vmatpush1.bf16.msra.mxu0 %v4028
        %4094 = vmatprep.mubr.bf16.mxu0 %v3899
        %4095 = vmatmul.mubr.bf16.gmra.mrb[0].mxu0 %v3892
        %v4096 = vpop.f32.mrb[0].mxu0
        %v4097 = vadd.f32 0.0, %v4096
        %v4098 = vpop.f32.mrb[0].mxu0
        %v4099 = vadd.f32 0.0, %v4098
        %v4100 = vpop.f32.mrb[0].mxu0
        %v4101 = vpop.f32.mrb[0].mxu0
        %4102 = vdwg.mxu0
        %v4103 = vadd.f32 %v3837, %v4097
        %v4104 = vadd.f32 %v3839, %v4099
        %v4105 = vld [vmem:[%s3331] sm:$0xff]
        %v4106 = vld [vmem:[%s3331 + $0x8] sm:$0x11]
        %s4107 = scalar_lea.vmem [#allocation8], 768
        %v4108 = vld [vmem:[%s4107] sm:$0xff]
        %v4109 = vld [vmem:[%s4107 + $0x8] sm:$0xff]
        %v4110 = vld [vmem:[%s4107 + $0x10] sm:$0xff]
        %v4111 = vld [vmem:[%s4107 + $0x18] sm:$0xff]
        %v4112 = vld [vmem:[%s4107 + $0x20] sm:$0xff]
        %v4113 = vld [vmem:[%s4107 + $0x28] sm:$0xff]
        %v4114 = vld [vmem:[%s4107 + $0x30] sm:$0xff]
        %v4115 = vld [vmem:[%s4107 + $0x38] sm:$0xff]
        %v4116 = vld [vmem:[%s4107 + $0x40] sm:$0xff]
        %v4117 = vld [vmem:[%s4107 + $0x48] sm:$0xff]
        %v4118 = vld [vmem:[%s4107 + $0x50] sm:$0xff]
        %v4119 = vld [vmem:[%s4107 + $0x58] sm:$0xff]
        %v4120 = vld [vmem:[%s4107 + $0x60] sm:$0xff]
        %v4121 = vld [vmem:[%s4107 + $0x68] sm:$0xff]
        %v4122 = vld [vmem:[%s4107 + $0x70] sm:$0xff]
        %v4123 = vld [vmem:[%s4107 + $0x78] sm:$0xff]
        %v4124 = vld [vmem:[%s4107 + $0x80] sm:$0xff]
        %v4125 = vld [vmem:[%s4107 + $0x88] sm:$0xff]
        %v4126 = vld [vmem:[%s4107 + $0x90] sm:$0xff]
        %v4127 = vld [vmem:[%s4107 + $0x98] sm:$0xff]
        %v4128 = vld [vmem:[%s4107 + $0xa0] sm:$0xff]
        %v4129 = vld [vmem:[%s4107 + $0xa8] sm:$0xff]
        %v4130 = vld [vmem:[%s4107 + $0xb0] sm:$0xff]
        %v4131 = vld [vmem:[%s4107 + $0xb8] sm:$0xff]
        %v4132 = vld [vmem:[%s4107 + $0xc0] sm:$0xff]
        %v4133 = vld [vmem:[%s4107 + $0xc8] sm:$0xff]
        %v4134 = vld [vmem:[%s4107 + $0xd0] sm:$0xff]
        %v4135 = vld [vmem:[%s4107 + $0xd8] sm:$0xff]
        %v4136 = vld [vmem:[%s4107 + $0xe0] sm:$0xff]
        %v4137 = vld [vmem:[%s4107 + $0xe8] sm:$0xff]
        %v4138 = vld [vmem:[%s4107 + $0xf0] sm:$0xff]
        %v4139 = vld [vmem:[%s4107 + $0xf8] sm:$0xff]
        %v4142 = vunpack.c.l.b16 %v4105
        %v4143 = vunpack.c.h.b16 %v4105
        %v4144 = vunpack.c.l.b16 %v4106
        %v4145 = vunpack.c.h.b16 %v4106
        %v4146 = vpack.c.b16 %v4144, %v4142
        %v4147 = vpack.c.b16 %v4145, %v4143
        %v4149 = vshrl.u32 %v4146, 16
        %v4151 = vshll.u32 %v4146, 16
        %v4153 = vrot.slane %v4151, 1
        %v4154 = vor.u32 %v4149, %v4153
        %v4156 = vshrl.u32 %v4147, 16
        %v4158 = vshll.u32 %v4147, 16
        %v4160 = vrot.slane %v4158, 1
        %v4161 = vor.u32 %v4156, %v4160
        %v4196 = vunpack.c.l.b16 %v4108
        %v4197 = vunpack.c.h.b16 %v4108
        %v4198 = vunpack.c.l.b16 %v4109
        %v4199 = vunpack.c.h.b16 %v4109
        %v4200 = vunpack.c.l.b16 %v4110
        %v4201 = vunpack.c.h.b16 %v4110
        %v4202 = vunpack.c.l.b16 %v4111
        %v4203 = vunpack.c.h.b16 %v4111
        %v4204 = vunpack.c.l.b16 %v4112
        %v4205 = vunpack.c.h.b16 %v4112
        %v4206 = vunpack.c.l.b16 %v4113
        %v4207 = vunpack.c.h.b16 %v4113
        %v4208 = vunpack.c.l.b16 %v4114
        %v4209 = vunpack.c.h.b16 %v4114
        %v4210 = vunpack.c.l.b16 %v4115
        %v4211 = vunpack.c.h.b16 %v4115
        %v4212 = vunpack.c.l.b16 %v4116
        %v4213 = vunpack.c.h.b16 %v4116
        %v4214 = vunpack.c.l.b16 %v4117
        %v4215 = vunpack.c.h.b16 %v4117
        %v4216 = vunpack.c.l.b16 %v4118
        %v4217 = vunpack.c.h.b16 %v4118
        %v4218 = vunpack.c.l.b16 %v4119
        %v4219 = vunpack.c.h.b16 %v4119
        %v4220 = vunpack.c.l.b16 %v4120
        %v4221 = vunpack.c.h.b16 %v4120
        %v4222 = vunpack.c.l.b16 %v4121
        %v4223 = vunpack.c.h.b16 %v4121
        %v4224 = vunpack.c.l.b16 %v4122
        %v4225 = vunpack.c.h.b16 %v4122
        %v4226 = vunpack.c.l.b16 %v4123
        %v4227 = vunpack.c.h.b16 %v4123
        %v4228 = vunpack.c.l.b16 %v4124
        %v4229 = vunpack.c.h.b16 %v4124
        %v4230 = vunpack.c.l.b16 %v4125
        %v4231 = vunpack.c.h.b16 %v4125
        %v4232 = vunpack.c.l.b16 %v4126
        %v4233 = vunpack.c.h.b16 %v4126
        %v4234 = vunpack.c.l.b16 %v4127
        %v4235 = vunpack.c.h.b16 %v4127
        %v4236 = vunpack.c.l.b16 %v4128
        %v4237 = vunpack.c.h.b16 %v4128
        %v4238 = vunpack.c.l.b16 %v4129
        %v4239 = vunpack.c.h.b16 %v4129
        %v4240 = vunpack.c.l.b16 %v4130
        %v4241 = vunpack.c.h.b16 %v4130
        %v4242 = vunpack.c.l.b16 %v4131
        %v4243 = vunpack.c.h.b16 %v4131
        %v4244 = vunpack.c.l.b16 %v4132
        %v4245 = vunpack.c.h.b16 %v4132
        %v4246 = vunpack.c.l.b16 %v4133
        %v4247 = vunpack.c.h.b16 %v4133
        %v4248 = vunpack.c.l.b16 %v4134
        %v4249 = vunpack.c.h.b16 %v4134
        %v4250 = vunpack.c.l.b16 %v4135
        %v4251 = vunpack.c.h.b16 %v4135
        %v4252 = vunpack.c.l.b16 %v4136
        %v4253 = vunpack.c.h.b16 %v4136
        %v4254 = vunpack.c.l.b16 %v4137
        %v4255 = vunpack.c.h.b16 %v4137
        %v4256 = vunpack.c.l.b16 %v4138
        %v4257 = vunpack.c.h.b16 %v4138
        %v4258 = vunpack.c.l.b16 %v4139
        %v4259 = vunpack.c.h.b16 %v4139
        %v4260 = vpack.c.b16 %v4198, %v4196
        %v4261 = vpack.c.b16 %v4199, %v4197
        %v4262 = vpack.c.b16 %v4202, %v4200
        %v4263 = vpack.c.b16 %v4203, %v4201
        %v4264 = vpack.c.b16 %v4206, %v4204
        %v4265 = vpack.c.b16 %v4207, %v4205
        %v4266 = vpack.c.b16 %v4210, %v4208
        %v4267 = vpack.c.b16 %v4211, %v4209
        %v4268 = vpack.c.b16 %v4214, %v4212
        %v4269 = vpack.c.b16 %v4215, %v4213
        %v4270 = vpack.c.b16 %v4218, %v4216
        %v4271 = vpack.c.b16 %v4219, %v4217
        %v4272 = vpack.c.b16 %v4222, %v4220
        %v4273 = vpack.c.b16 %v4223, %v4221
        %v4274 = vpack.c.b16 %v4226, %v4224
        %v4275 = vpack.c.b16 %v4227, %v4225
        %v4276 = vpack.c.b16 %v4230, %v4228
        %v4277 = vpack.c.b16 %v4231, %v4229
        %v4278 = vpack.c.b16 %v4234, %v4232
        %v4279 = vpack.c.b16 %v4235, %v4233
        %v4280 = vpack.c.b16 %v4238, %v4236
        %v4281 = vpack.c.b16 %v4239, %v4237
        %v4282 = vpack.c.b16 %v4242, %v4240
        %v4283 = vpack.c.b16 %v4243, %v4241
        %v4284 = vpack.c.b16 %v4246, %v4244
        %v4285 = vpack.c.b16 %v4247, %v4245
        %v4286 = vpack.c.b16 %v4250, %v4248
        %v4287 = vpack.c.b16 %v4251, %v4249
        %v4288 = vpack.c.b16 %v4254, %v4252
        %v4289 = vpack.c.b16 %v4255, %v4253
        %v4290 = vpack.c.b16 %v4258, %v4256
        %v4291 = vpack.c.b16 %v4259, %v4257
        %4324 = vmatprep.subr.bf16.mxu0 %v4261
        %4325 = vmatpush1.bf16.msra.mxu0 %v4260
        %4326 = vmatprep.subr.bf16.mxu0 %v4263
        %4327 = vmatpush1.bf16.msra.mxu0 %v4262
        %4328 = vmatprep.subr.bf16.mxu0 %v4265
        %4329 = vmatpush1.bf16.msra.mxu0 %v4264
        %4330 = vmatprep.subr.bf16.mxu0 %v4267
        %4331 = vmatpush1.bf16.msra.mxu0 %v4266
        %4332 = vmatprep.subr.bf16.mxu0 %v4269
        %4333 = vmatpush1.bf16.msra.mxu0 %v4268
        %4334 = vmatprep.subr.bf16.mxu0 %v4271
        %4335 = vmatpush1.bf16.msra.mxu0 %v4270
        %4336 = vmatprep.subr.bf16.mxu0 %v4273
        %4337 = vmatpush1.bf16.msra.mxu0 %v4272
        %4338 = vmatprep.subr.bf16.mxu0 %v4275
        %4339 = vmatpush1.bf16.msra.mxu0 %v4274
        %4340 = vmatprep.subr.bf16.mxu0 %v4277
        %4341 = vmatpush1.bf16.msra.mxu0 %v4276
        %4342 = vmatprep.subr.bf16.mxu0 %v4279
        %4343 = vmatpush1.bf16.msra.mxu0 %v4278
        %4344 = vmatprep.subr.bf16.mxu0 %v4281
        %4345 = vmatpush1.bf16.msra.mxu0 %v4280
        %4346 = vmatprep.subr.bf16.mxu0 %v4283
        %4347 = vmatpush1.bf16.msra.mxu0 %v4282
        %4348 = vmatprep.subr.bf16.mxu0 %v4285
        %4349 = vmatpush1.bf16.msra.mxu0 %v4284
        %4350 = vmatprep.subr.bf16.mxu0 %v4287
        %4351 = vmatpush1.bf16.msra.mxu0 %v4286
        %4352 = vmatprep.subr.bf16.mxu0 %v4289
        %4353 = vmatpush1.bf16.msra.mxu0 %v4288
        %4354 = vmatprep.subr.bf16.mxu0 %v4291
        %4355 = vmatpush1.bf16.msra.mxu0 %v4290
        %4356 = vmatprep.mubr.bf16.mxu0 %v4161
        %4357 = vmatmul.mubr.bf16.gmra.mrb[0].mxu0 %v4154
        %v4358 = vpop.f32.mrb[0].mxu0
        %v4359 = vadd.f32 0.0, %v4358
        %v4360 = vpop.f32.mrb[0].mxu0
        %v4361 = vadd.f32 0.0, %v4360
        %v4362 = vpop.f32.mrb[0].mxu0
        %v4363 = vpop.f32.mrb[0].mxu0
        %4364 = vdwg.mxu0
        %v4365 = vadd.f32 %v4103, %v4359
        %v4366 = vadd.f32 %v4104, %v4361
        %v4367 = vmax.f32 %v4365, 0.0
        %v4368 = vmax.f32 %v4366, 0.0
        %v4369 = vpack.c.bf16 %v4367, %v4367
        %v4370 = vpack.c.bf16 %v4368, %v4368
        %v4371 = vld [vmem:[%s4] sm:$0x3]
        %vm4372 = vcmask 64512
        %v4374 = vsel %vm4372, %v4371, 0
        %vm4376 = vcmask 1043456
        %v4378 = vsel %vm4376, %v4369, 0
        %v4381 = vsel %vm4376, %v4370, 0
        %4383 = vmatprep.subr.bf16.mxu0 %v4381
        %4384 = vmatpush1.bf16.msra.mxu0 %v4378
        %4385 = vmatprep.subr.bf16.mxu0 0
        %4386 = vmatpush1.bf16.msra.mxu0 0
        %4387 = vmatprep.subr.bf16.mxu0 0
        %4388 = vmatpush1.bf16.msra.mxu0 0
        %4389 = vmatprep.subr.bf16.mxu0 0
        %4390 = vmatpush1.bf16.msra.mxu0 0
        %4391 = vmatprep.subr.bf16.mxu0 0
        %4392 = vmatpush1.bf16.msra.mxu0 0
        %4393 = vmatprep.subr.bf16.mxu0 0
        %4394 = vmatpush1.bf16.msra.mxu0 0
        %4395 = vmatprep.subr.bf16.mxu0 0
        %4396 = vmatpush1.bf16.msra.mxu0 0
        %4397 = vmatprep.subr.bf16.mxu0 0
        %4398 = vmatpush1.bf16.msra.mxu0 0
        %4399 = vmatprep.subr.bf16.mxu0 0
        %4400 = vmatpush1.bf16.msra.mxu0 0
        %4401 = vmatprep.subr.bf16.mxu0 0
        %4402 = vmatpush1.bf16.msra.mxu0 0
        %4403 = vmatprep.subr.bf16.mxu0 0
        %4404 = vmatpush1.bf16.msra.mxu0 0
        %4405 = vmatprep.subr.bf16.mxu0 0
        %4406 = vmatpush1.bf16.msra.mxu0 0
        %4407 = vmatprep.subr.bf16.mxu0 0
        %4408 = vmatpush1.bf16.msra.mxu0 0
        %4409 = vmatprep.subr.bf16.mxu0 0
        %4410 = vmatpush1.bf16.msra.mxu0 0
        %4411 = vmatprep.subr.bf16.mxu0 0
        %4412 = vmatpush1.bf16.msra.mxu0 0
        %4413 = vmatprep.subr.bf16.mxu0 0
        %4414 = vmatpush1.bf16.msra.mxu0 0
        %4415 = vmatprep.mubr.bf16.mxu0 0
        %4416 = vmatmul.mubr.bf16.gmra.mrb[0].mxu0 %v4374
        %v4417 = vpop.f32.mrb[0].mxu0
        %v4418 = vadd.f32 0.0, %v4417
        %v4419 = vpop.f32.mrb[0].mxu0
        %v4420 = vadd.f32 0.0, %v4419
        %v4421 = vpop.f32.mrb[0].mxu0
        %v4422 = vpop.f32.mrb[0].mxu0
        %4423 = vdwg.mxu0
        %v4424 = vpack.c.bf16 %v4418, %v4418
        %v4425 = vpack.c.bf16 %v4420, %v4420
        %s4426 = scalar_lea.vmem %s4, 2
        %v4427 = vld [vmem:[%s4426] sm:$0x3]
        %v4429 = vsel %vm4372, %v4427, 0
        %4431 = vmatprep.subr.bf16.mxu0 %v4381
        %4432 = vmatpush1.bf16.msra.mxu0 %v4378
        %4433 = vmatprep.subr.bf16.mxu0 0
        %4434 = vmatpush1.bf16.msra.mxu0 0
        %4435 = vmatprep.subr.bf16.mxu0 0
        %4436 = vmatpush1.bf16.msra.mxu0 0
        %4437 = vmatprep.subr.bf16.mxu0 0
        %4438 = vmatpush1.bf16.msra.mxu0 0
        %4439 = vmatprep.subr.bf16.mxu0 0
        %4440 = vmatpush1.bf16.msra.mxu0 0
        %4441 = vmatprep.subr.bf16.mxu0 0
        %4442 = vmatpush1.bf16.msra.mxu0 0
        %4443 = vmatprep.subr.bf16.mxu0 0
        %4444 = vmatpush1.bf16.msra.mxu0 0
        %4445 = vmatprep.subr.bf16.mxu0 0
        %4446 = vmatpush1.bf16.msra.mxu0 0
        %4447 = vmatprep.subr.bf16.mxu0 0
        %4448 = vmatpush1.bf16.msra.mxu0 0
        %4449 = vmatprep.subr.bf16.mxu0 0
        %4450 = vmatpush1.bf16.msra.mxu0 0
        %4451 = vmatprep.subr.bf16.mxu0 0
        %4452 = vmatpush1.bf16.msra.mxu0 0
        %4453 = vmatprep.subr.bf16.mxu0 0
        %4454 = vmatpush1.bf16.msra.mxu0 0
        %4455 = vmatprep.subr.bf16.mxu0 0
        %4456 = vmatpush1.bf16.msra.mxu0 0
        %4457 = vmatprep.subr.bf16.mxu0 0
        %4458 = vmatpush1.bf16.msra.mxu0 0
        %4459 = vmatprep.subr.bf16.mxu0 0
        %4460 = vmatpush1.bf16.msra.mxu0 0
        %4461 = vmatprep.subr.bf16.mxu0 0
        %4462 = vmatpush1.bf16.msra.mxu0 0
        %4463 = vmatprep.mubr.bf16.mxu0 0
        %4464 = vmatmul.mubr.bf16.gmra.mrb[0].mxu0 %v4429
        %v4465 = vpop.f32.mrb[0].mxu0
        %v4466 = vadd.f32 0.0, %v4465
        %v4467 = vpop.f32.mrb[0].mxu0
        %v4468 = vadd.f32 0.0, %v4467
        %v4469 = vpop.f32.mrb[0].mxu0
        %v4470 = vpop.f32.mrb[0].mxu0
        %4471 = vdwg.mxu0
        %v4472 = vpack.c.bf16 %v4466, %v4466
        %v4473 = vpack.c.bf16 %v4468, %v4468
        %v4476 = vunpack.c.l.b16 %v4424
        %v4477 = vunpack.c.l.b16 %v4425
        %v4478 = vpack.c.b16 %v4477, %v4476
        %s4480 = scalar_lea.vmem [#allocation5], 8
        %4481 = vst [vmem:[%s4480] sm:$0x33] %v4478
        %vm4482 = vcmask 1042434
        %vm4483 = vsmask.f32 2304
        %vm4484 = vmand %vm4482, %vm4483
        %vm4485 = vcmask 1046534
        %vm4486 = vsmask.f32 6400
        %vm4487 = vmand %vm4485, %vm4486
        %vm4488 = vmor %vm4487, %vm4484
        %v4489 = vld [vmem:[%s4480] sm:$0x44]
        %v4490 = vsel %vm4488, 0, %v4489
        %4491 = vst [vmem:[%s4480] sm:$0x44] %v4490
        %v4492 = vld [vmem:[#allocation5] sm:$0x11]
        %v4493 = vsel %vm717, 0, %v4492
        %4494 = vst [vmem:[#allocation5] sm:$0x11] %v4493
        %v4497 = vunpack.c.l.b16 %v4472
        %v4498 = vunpack.c.l.b16 %v4473
        %v4499 = vpack.c.b16 %v4498, %v4497
        %v4501 = vshrl.u32 %v4499, 16
        %v4503 = vrot.slane %v4501, 7
        %v4504 = vshll.u32 %v4499, 16
        %v4506 = vor.u32 %v4503, %v4504
        %vm4508 = vcmask 1042432
        %vm4509 = vsmask.f32 2306
        %vm4510 = vmand %vm4508, %vm4509
        %vm4511 = vcmask 1046532
        %vm4512 = vsmask.f32 6418
        %vm4513 = vmand %vm4511, %vm4512
        %vm4514 = vmor %vm4513, %vm4510
        %v4515 = vld [vmem:[#allocation5] sm:$0x77]
        %v4516 = vsel %vm4514, %v4506, %v4515
        %4517 = vst [vmem:[#allocation5] sm:$0x77] %v4516
        %v4518 = vld [vmem:[#allocation5] sm:$0x33]
        %v4519 = vld [vmem:[#allocation10] sm:$0xff]
        %v4520 = vld [vmem:[#allocation10 + $0x8] sm:$0xff]
        %v4521 = vld [vmem:[#allocation10 + $0x10] sm:$0xff]
        %v4522 = vld [vmem:[#allocation10 + $0x18] sm:$0xff]
        %v4523 = vld [vmem:[#allocation10 + $0x20] sm:$0xff]
        %v4524 = vld [vmem:[#allocation10 + $0x28] sm:$0xff]
        %v4525 = vld [vmem:[#allocation10 + $0x30] sm:$0xff]
        %v4526 = vld [vmem:[#allocation10 + $0x38] sm:$0xff]
        %v4527 = vld [vmem:[#allocation10 + $0x40] sm:$0xff]
        %v4528 = vld [vmem:[#allocation10 + $0x48] sm:$0xff]
        %v4529 = vld [vmem:[#allocation10 + $0x50] sm:$0xff]
        %v4530 = vld [vmem:[#allocation10 + $0x58] sm:$0xff]
        %v4531 = vld [vmem:[#allocation10 + $0x60] sm:$0xff]
        %v4532 = vld [vmem:[#allocation10 + $0x68] sm:$0xff]
        %v4533 = vld [vmem:[#allocation10 + $0x70] sm:$0xff]
        %v4534 = vld [vmem:[#allocation10 + $0x78] sm:$0xff]
        %v4535 = vld [vmem:[#allocation10 + $0x80] sm:$0xff]
        %v4536 = vld [vmem:[#allocation10 + $0x88] sm:$0xff]
        %v4537 = vld [vmem:[#allocation10 + $0x90] sm:$0xff]
        %v4538 = vld [vmem:[#allocation10 + $0x98] sm:$0xff]
        %v4539 = vld [vmem:[#allocation10 + $0xa0] sm:$0xff]
        %v4540 = vld [vmem:[#allocation10 + $0xa8] sm:$0xff]
        %v4541 = vld [vmem:[#allocation10 + $0xb0] sm:$0xff]
        %v4542 = vld [vmem:[#allocation10 + $0xb8] sm:$0xff]
        %v4543 = vld [vmem:[#allocation10 + $0xc0] sm:$0xff]
        %v4544 = vld [vmem:[#allocation10 + $0xc8] sm:$0xff]
        %v4545 = vld [vmem:[#allocation10 + $0xd0] sm:$0xff]
        %v4546 = vld [vmem:[#allocation10 + $0xd8] sm:$0xff]
        %v4547 = vld [vmem:[#allocation10 + $0xe0] sm:$0xff]
        %v4548 = vld [vmem:[#allocation10 + $0xe8] sm:$0xff]
        %v4549 = vld [vmem:[#allocation10 + $0xf0] sm:$0xff]
        %v4550 = vld [vmem:[#allocation10 + $0xf8] sm:$0xff]
        %v4551 = vld [vmem:[%s4480] sm:$0x33]
        %s4552 = scalar_lea.vmem [#allocation10], 256
        %v4553 = vld [vmem:[%s4552] sm:$0xff]
        %v4554 = vld [vmem:[%s4552 + $0x8] sm:$0xff]
        %v4555 = vld [vmem:[%s4552 + $0x10] sm:$0xff]
        %v4556 = vld [vmem:[%s4552 + $0x18] sm:$0xff]
        %v4557 = vld [vmem:[%s4552 + $0x20] sm:$0xff]
        %v4558 = vld [vmem:[%s4552 + $0x28] sm:$0xff]
        %v4559 = vld [vmem:[%s4552 + $0x30] sm:$0xff]
        %v4560 = vld [vmem:[%s4552 + $0x38] sm:$0xff]
        %v4561 = vld [vmem:[%s4552 + $0x40] sm:$0xff]
        %v4562 = vld [vmem:[%s4552 + $0x48] sm:$0xff]
        %v4563 = vld [vmem:[%s4552 + $0x50] sm:$0xff]
        %v4564 = vld [vmem:[%s4552 + $0x58] sm:$0xff]
        %v4565 = vld [vmem:[%s4552 + $0x60] sm:$0xff]
        %v4566 = vld [vmem:[%s4552 + $0x68] sm:$0xff]
        %v4567 = vld [vmem:[%s4552 + $0x70] sm:$0xff]
        %v4568 = vld [vmem:[%s4552 + $0x78] sm:$0xff]
        %v4569 = vld [vmem:[%s4552 + $0x80] sm:$0xff]
        %v4570 = vld [vmem:[%s4552 + $0x88] sm:$0xff]
        %v4571 = vld [vmem:[%s4552 + $0x90] sm:$0xff]
        %v4572 = vld [vmem:[%s4552 + $0x98] sm:$0xff]
        %v4573 = vld [vmem:[%s4552 + $0xa0] sm:$0xff]
        %v4574 = vld [vmem:[%s4552 + $0xa8] sm:$0xff]
        %v4575 = vld [vmem:[%s4552 + $0xb0] sm:$0xff]
        %v4576 = vld [vmem:[%s4552 + $0xb8] sm:$0xff]
        %v4577 = vld [vmem:[%s4552 + $0xc0] sm:$0xff]
        %v4578 = vld [vmem:[%s4552 + $0xc8] sm:$0xff]
        %v4579 = vld [vmem:[%s4552 + $0xd0] sm:$0xff]
        %v4580 = vld [vmem:[%s4552 + $0xd8] sm:$0xff]
        %v4581 = vld [vmem:[%s4552 + $0xe0] sm:$0xff]
        %v4582 = vld [vmem:[%s4552 + $0xe8] sm:$0xff]
        %v4583 = vld [vmem:[%s4552 + $0xf0] sm:$0xff]
        %v4584 = vld [vmem:[%s4552 + $0xf8] sm:$0xff]
        %v4586 = vunpack.c.l.b16 %v4551
        %v4587 = vunpack.c.h.b16 %v4551
        %v4588 = vpack.c.b16 %v4586, %v4586
        %v4589 = vpack.c.b16 %v4587, %v4587
        %v4624 = vunpack.c.l.b16 %v4553
        %v4625 = vunpack.c.h.b16 %v4553
        %v4626 = vunpack.c.l.b16 %v4554
        %v4627 = vunpack.c.h.b16 %v4554
        %v4628 = vunpack.c.l.b16 %v4555
        %v4629 = vunpack.c.h.b16 %v4555
        %v4630 = vunpack.c.l.b16 %v4556
        %v4631 = vunpack.c.h.b16 %v4556
        %v4632 = vunpack.c.l.b16 %v4557
        %v4633 = vunpack.c.h.b16 %v4557
        %v4634 = vunpack.c.l.b16 %v4558
        %v4635 = vunpack.c.h.b16 %v4558
        %v4636 = vunpack.c.l.b16 %v4559
        %v4637 = vunpack.c.h.b16 %v4559
        %v4638 = vunpack.c.l.b16 %v4560
        %v4639 = vunpack.c.h.b16 %v4560
        %v4640 = vunpack.c.l.b16 %v4561
        %v4641 = vunpack.c.h.b16 %v4561
        %v4642 = vunpack.c.l.b16 %v4562
        %v4643 = vunpack.c.h.b16 %v4562
        %v4644 = vunpack.c.l.b16 %v4563
        %v4645 = vunpack.c.h.b16 %v4563
        %v4646 = vunpack.c.l.b16 %v4564
        %v4647 = vunpack.c.h.b16 %v4564
        %v4648 = vunpack.c.l.b16 %v4565
        %v4649 = vunpack.c.h.b16 %v4565
        %v4650 = vunpack.c.l.b16 %v4566
        %v4651 = vunpack.c.h.b16 %v4566
        %v4652 = vunpack.c.l.b16 %v4567
        %v4653 = vunpack.c.h.b16 %v4567
        %v4654 = vunpack.c.l.b16 %v4568
        %v4655 = vunpack.c.h.b16 %v4568
        %v4656 = vunpack.c.l.b16 %v4569
        %v4657 = vunpack.c.h.b16 %v4569
        %v4658 = vunpack.c.l.b16 %v4570
        %v4659 = vunpack.c.h.b16 %v4570
        %v4660 = vunpack.c.l.b16 %v4571
        %v4661 = vunpack.c.h.b16 %v4571
        %v4662 = vunpack.c.l.b16 %v4572
        %v4663 = vunpack.c.h.b16 %v4572
        %v4664 = vunpack.c.l.b16 %v4573
        %v4665 = vunpack.c.h.b16 %v4573
        %v4666 = vunpack.c.l.b16 %v4574
        %v4667 = vunpack.c.h.b16 %v4574
        %v4668 = vunpack.c.l.b16 %v4575
        %v4669 = vunpack.c.h.b16 %v4575
        %v4670 = vunpack.c.l.b16 %v4576
        %v4671 = vunpack.c.h.b16 %v4576
        %v4672 = vunpack.c.l.b16 %v4577
        %v4673 = vunpack.c.h.b16 %v4577
        %v4674 = vunpack.c.l.b16 %v4578
        %v4675 = vunpack.c.h.b16 %v4578
        %v4676 = vunpack.c.l.b16 %v4579
        %v4677 = vunpack.c.h.b16 %v4579
        %v4678 = vunpack.c.l.b16 %v4580
        %v4679 = vunpack.c.h.b16 %v4580
        %v4680 = vunpack.c.l.b16 %v4581
        %v4681 = vunpack.c.h.b16 %v4581
        %v4682 = vunpack.c.l.b16 %v4582
        %v4683 = vunpack.c.h.b16 %v4582
        %v4684 = vunpack.c.l.b16 %v4583
        %v4685 = vunpack.c.h.b16 %v4583
        %v4686 = vunpack.c.l.b16 %v4584
        %v4687 = vunpack.c.h.b16 %v4584
        %v4688 = vpack.c.b16 %v4626, %v4624
        %v4689 = vpack.c.b16 %v4627, %v4625
        %v4690 = vpack.c.b16 %v4630, %v4628
        %v4691 = vpack.c.b16 %v4631, %v4629
        %v4692 = vpack.c.b16 %v4634, %v4632
        %v4693 = vpack.c.b16 %v4635, %v4633
        %v4694 = vpack.c.b16 %v4638, %v4636
        %v4695 = vpack.c.b16 %v4639, %v4637
        %v4696 = vpack.c.b16 %v4642, %v4640
        %v4697 = vpack.c.b16 %v4643, %v4641
        %v4698 = vpack.c.b16 %v4646, %v4644
        %v4699 = vpack.c.b16 %v4647, %v4645
        %v4700 = vpack.c.b16 %v4650, %v4648
        %v4701 = vpack.c.b16 %v4651, %v4649
        %v4702 = vpack.c.b16 %v4654, %v4652
        %v4703 = vpack.c.b16 %v4655, %v4653
        %v4704 = vpack.c.b16 %v4658, %v4656
        %v4705 = vpack.c.b16 %v4659, %v4657
        %v4706 = vpack.c.b16 %v4662, %v4660
        %v4707 = vpack.c.b16 %v4663, %v4661
        %v4708 = vpack.c.b16 %v4666, %v4664
        %v4709 = vpack.c.b16 %v4667, %v4665
        %v4710 = vpack.c.b16 %v4670, %v4668
        %v4711 = vpack.c.b16 %v4671, %v4669
        %v4712 = vpack.c.b16 %v4674, %v4672
        %v4713 = vpack.c.b16 %v4675, %v4673
        %v4714 = vpack.c.b16 %v4678, %v4676
        %v4715 = vpack.c.b16 %v4679, %v4677
        %v4716 = vpack.c.b16 %v4682, %v4680
        %v4717 = vpack.c.b16 %v4683, %v4681
        %v4718 = vpack.c.b16 %v4686, %v4684
        %v4719 = vpack.c.b16 %v4687, %v4685
        %4752 = vmatprep.subr.bf16.mxu0 %v4689
        %4753 = vmatpush1.bf16.msra.mxu0 %v4688
        %4754 = vmatprep.subr.bf16.mxu0 %v4691
        %4755 = vmatpush1.bf16.msra.mxu0 %v4690
        %4756 = vmatprep.subr.bf16.mxu0 %v4693
        %4757 = vmatpush1.bf16.msra.mxu0 %v4692
        %4758 = vmatprep.subr.bf16.mxu0 %v4695
        %4759 = vmatpush1.bf16.msra.mxu0 %v4694
        %4760 = vmatprep.subr.bf16.mxu0 %v4697
        %4761 = vmatpush1.bf16.msra.mxu0 %v4696
        %4762 = vmatprep.subr.bf16.mxu0 %v4699
        %4763 = vmatpush1.bf16.msra.mxu0 %v4698
        %4764 = vmatprep.subr.bf16.mxu0 %v4701
        %4765 = vmatpush1.bf16.msra.mxu0 %v4700
        %4766 = vmatprep.subr.bf16.mxu0 %v4703
        %4767 = vmatpush1.bf16.msra.mxu0 %v4702
        %4768 = vmatprep.subr.bf16.mxu0 %v4705
        %4769 = vmatpush1.bf16.msra.mxu0 %v4704
        %4770 = vmatprep.subr.bf16.mxu0 %v4707
        %4771 = vmatpush1.bf16.msra.mxu0 %v4706
        %4772 = vmatprep.subr.bf16.mxu0 %v4709
        %4773 = vmatpush1.bf16.msra.mxu0 %v4708
        %4774 = vmatprep.subr.bf16.mxu0 %v4711
        %4775 = vmatpush1.bf16.msra.mxu0 %v4710
        %4776 = vmatprep.subr.bf16.mxu0 %v4713
        %4777 = vmatpush1.bf16.msra.mxu0 %v4712
        %4778 = vmatprep.subr.bf16.mxu0 %v4715
        %4779 = vmatpush1.bf16.msra.mxu0 %v4714
        %4780 = vmatprep.subr.bf16.mxu0 %v4717
        %4781 = vmatpush1.bf16.msra.mxu0 %v4716
        %4782 = vmatprep.subr.bf16.mxu0 %v4719
        %4783 = vmatpush1.bf16.msra.mxu0 %v4718
        %4784 = vmatprep.mubr.bf16.mxu0 %v4589
        %4785 = vmatmul.mubr.bf16.gmra.mrb[0].mxu0 %v4588
        %v4786 = vpop.f32.mrb[0].mxu0
        %v4787 = vadd.f32 0.0, %v4786
        %v4788 = vpop.f32.mrb[0].mxu0
        %v4789 = vadd.f32 0.0, %v4788
        %v4790 = vpop.f32.mrb[0].mxu0
        %v4791 = vpop.f32.mrb[0].mxu0
        %4792 = vdwg.mxu0
        %v4794 = vunpack.c.l.b16 %v4518
        %v4795 = vunpack.c.h.b16 %v4518
        %v4796 = vpack.c.b16 %v4794, %v4794
        %v4797 = vpack.c.b16 %v4795, %v4795
        %v4832 = vunpack.c.l.b16 %v4519
        %v4833 = vunpack.c.h.b16 %v4519
        %v4834 = vunpack.c.l.b16 %v4520
        %v4835 = vunpack.c.h.b16 %v4520
        %v4836 = vunpack.c.l.b16 %v4521
        %v4837 = vunpack.c.h.b16 %v4521
        %v4838 = vunpack.c.l.b16 %v4522
        %v4839 = vunpack.c.h.b16 %v4522
        %v4840 = vunpack.c.l.b16 %v4523
        %v4841 = vunpack.c.h.b16 %v4523
        %v4842 = vunpack.c.l.b16 %v4524
        %v4843 = vunpack.c.h.b16 %v4524
        %v4844 = vunpack.c.l.b16 %v4525
        %v4845 = vunpack.c.h.b16 %v4525
        %v4846 = vunpack.c.l.b16 %v4526
        %v4847 = vunpack.c.h.b16 %v4526
        %v4848 = vunpack.c.l.b16 %v4527
        %v4849 = vunpack.c.h.b16 %v4527
        %v4850 = vunpack.c.l.b16 %v4528
        %v4851 = vunpack.c.h.b16 %v4528
        %v4852 = vunpack.c.l.b16 %v4529
        %v4853 = vunpack.c.h.b16 %v4529
        %v4854 = vunpack.c.l.b16 %v4530
        %v4855 = vunpack.c.h.b16 %v4530
        %v4856 = vunpack.c.l.b16 %v4531
        %v4857 = vunpack.c.h.b16 %v4531
        %v4858 = vunpack.c.l.b16 %v4532
        %v4859 = vunpack.c.h.b16 %v4532
        %v4860 = vunpack.c.l.b16 %v4533
        %v4861 = vunpack.c.h.b16 %v4533
        %v4862 = vunpack.c.l.b16 %v4534
        %v4863 = vunpack.c.h.b16 %v4534
        %v4864 = vunpack.c.l.b16 %v4535
        %v4865 = vunpack.c.h.b16 %v4535
        %v4866 = vunpack.c.l.b16 %v4536
        %v4867 = vunpack.c.h.b16 %v4536
        %v4868 = vunpack.c.l.b16 %v4537
        %v4869 = vunpack.c.h.b16 %v4537
        %v4870 = vunpack.c.l.b16 %v4538
        %v4871 = vunpack.c.h.b16 %v4538
        %v4872 = vunpack.c.l.b16 %v4539
        %v4873 = vunpack.c.h.b16 %v4539
        %v4874 = vunpack.c.l.b16 %v4540
        %v4875 = vunpack.c.h.b16 %v4540
        %v4876 = vunpack.c.l.b16 %v4541
        %v4877 = vunpack.c.h.b16 %v4541
        %v4878 = vunpack.c.l.b16 %v4542
        %v4879 = vunpack.c.h.b16 %v4542
        %v4880 = vunpack.c.l.b16 %v4543
        %v4881 = vunpack.c.h.b16 %v4543
        %v4882 = vunpack.c.l.b16 %v4544
        %v4883 = vunpack.c.h.b16 %v4544
        %v4884 = vunpack.c.l.b16 %v4545
        %v4885 = vunpack.c.h.b16 %v4545
        %v4886 = vunpack.c.l.b16 %v4546
        %v4887 = vunpack.c.h.b16 %v4546
        %v4888 = vunpack.c.l.b16 %v4547
        %v4889 = vunpack.c.h.b16 %v4547
        %v4890 = vunpack.c.l.b16 %v4548
        %v4891 = vunpack.c.h.b16 %v4548
        %v4892 = vunpack.c.l.b16 %v4549
        %v4893 = vunpack.c.h.b16 %v4549
        %v4894 = vunpack.c.l.b16 %v4550
        %v4895 = vunpack.c.h.b16 %v4550
        %v4896 = vpack.c.b16 %v4834, %v4832
        %v4897 = vpack.c.b16 %v4835, %v4833
        %v4898 = vpack.c.b16 %v4838, %v4836
        %v4899 = vpack.c.b16 %v4839, %v4837
        %v4900 = vpack.c.b16 %v4842, %v4840
        %v4901 = vpack.c.b16 %v4843, %v4841
        %v4902 = vpack.c.b16 %v4846, %v4844
        %v4903 = vpack.c.b16 %v4847, %v4845
        %v4904 = vpack.c.b16 %v4850, %v4848
        %v4905 = vpack.c.b16 %v4851, %v4849
        %v4906 = vpack.c.b16 %v4854, %v4852
        %v4907 = vpack.c.b16 %v4855, %v4853
        %v4908 = vpack.c.b16 %v4858, %v4856
        %v4909 = vpack.c.b16 %v4859, %v4857
        %v4910 = vpack.c.b16 %v4862, %v4860
        %v4911 = vpack.c.b16 %v4863, %v4861
        %v4912 = vpack.c.b16 %v4866, %v4864
        %v4913 = vpack.c.b16 %v4867, %v4865
        %v4914 = vpack.c.b16 %v4870, %v4868
        %v4915 = vpack.c.b16 %v4871, %v4869
        %v4916 = vpack.c.b16 %v4874, %v4872
        %v4917 = vpack.c.b16 %v4875, %v4873
        %v4918 = vpack.c.b16 %v4878, %v4876
        %v4919 = vpack.c.b16 %v4879, %v4877
        %v4920 = vpack.c.b16 %v4882, %v4880
        %v4921 = vpack.c.b16 %v4883, %v4881
        %v4922 = vpack.c.b16 %v4886, %v4884
        %v4923 = vpack.c.b16 %v4887, %v4885
        %v4924 = vpack.c.b16 %v4890, %v4888
        %v4925 = vpack.c.b16 %v4891, %v4889
        %v4926 = vpack.c.b16 %v4894, %v4892
        %v4927 = vpack.c.b16 %v4895, %v4893
        %4960 = vmatprep.subr.bf16.mxu0 %v4897
        %4961 = vmatpush1.bf16.msra.mxu0 %v4896
        %4962 = vmatprep.subr.bf16.mxu0 %v4899
        %4963 = vmatpush1.bf16.msra.mxu0 %v4898
        %4964 = vmatprep.subr.bf16.mxu0 %v4901
        %4965 = vmatpush1.bf16.msra.mxu0 %v4900
        %4966 = vmatprep.subr.bf16.mxu0 %v4903
        %4967 = vmatpush1.bf16.msra.mxu0 %v4902
        %4968 = vmatprep.subr.bf16.mxu0 %v4905
        %4969 = vmatpush1.bf16.msra.mxu0 %v4904
        %4970 = vmatprep.subr.bf16.mxu0 %v4907
        %4971 = vmatpush1.bf16.msra.mxu0 %v4906
        %4972 = vmatprep.subr.bf16.mxu0 %v4909
        %4973 = vmatpush1.bf16.msra.mxu0 %v4908
        %4974 = vmatprep.subr.bf16.mxu0 %v4911
        %4975 = vmatpush1.bf16.msra.mxu0 %v4910
        %4976 = vmatprep.subr.bf16.mxu0 %v4913
        %4977 = vmatpush1.bf16.msra.mxu0 %v4912
        %4978 = vmatprep.subr.bf16.mxu0 %v4915
        %4979 = vmatpush1.bf16.msra.mxu0 %v4914
        %4980 = vmatprep.subr.bf16.mxu0 %v4917
        %4981 = vmatpush1.bf16.msra.mxu0 %v4916
        %4982 = vmatprep.subr.bf16.mxu0 %v4919
        %4983 = vmatpush1.bf16.msra.mxu0 %v4918
        %4984 = vmatprep.subr.bf16.mxu0 %v4921
        %4985 = vmatpush1.bf16.msra.mxu0 %v4920
        %4986 = vmatprep.subr.bf16.mxu0 %v4923
        %4987 = vmatpush1.bf16.msra.mxu0 %v4922
        %4988 = vmatprep.subr.bf16.mxu0 %v4925
        %4989 = vmatpush1.bf16.msra.mxu0 %v4924
        %4990 = vmatprep.subr.bf16.mxu0 %v4927
        %4991 = vmatpush1.bf16.msra.mxu0 %v4926
        %4992 = vmatprep.mubr.bf16.mxu0 %v4797
        %4993 = vmatmul.mubr.bf16.gmra.mrb[0].mxu0 %v4796
        %v4994 = vpop.f32.mrb[0].mxu0
        %v4995 = vadd.f32 %v4787, %v4994
        %v4996 = vpop.f32.mrb[0].mxu0
        %v4997 = vadd.f32 %v4789, %v4996
        %v4998 = vpop.f32.mrb[0].mxu0
        %v4999 = vpop.f32.mrb[0].mxu0
        %5000 = vdwg.mxu0
        %v5001 = vld [vmem:[#allocation5] sm:$0x77]
        %s5002 = scalar_lea.vmem [#allocation10], 512
        %v5003 = vld [vmem:[%s5002] sm:$0xff]
        %v5004 = vld [vmem:[%s5002 + $0x8] sm:$0xff]
        %v5005 = vld [vmem:[%s5002 + $0x10] sm:$0xff]
        %v5006 = vld [vmem:[%s5002 + $0x18] sm:$0xff]
        %v5007 = vld [vmem:[%s5002 + $0x20] sm:$0xff]
        %v5008 = vld [vmem:[%s5002 + $0x28] sm:$0xff]
        %v5009 = vld [vmem:[%s5002 + $0x30] sm:$0xff]
        %v5010 = vld [vmem:[%s5002 + $0x38] sm:$0xff]
        %v5011 = vld [vmem:[%s5002 + $0x40] sm:$0xff]
        %v5012 = vld [vmem:[%s5002 + $0x48] sm:$0xff]
        %v5013 = vld [vmem:[%s5002 + $0x50] sm:$0xff]
        %v5014 = vld [vmem:[%s5002 + $0x58] sm:$0xff]
        %v5015 = vld [vmem:[%s5002 + $0x60] sm:$0xff]
        %v5016 = vld [vmem:[%s5002 + $0x68] sm:$0xff]
        %v5017 = vld [vmem:[%s5002 + $0x70] sm:$0xff]
        %v5018 = vld [vmem:[%s5002 + $0x78] sm:$0xff]
        %v5019 = vld [vmem:[%s5002 + $0x80] sm:$0xff]
        %v5020 = vld [vmem:[%s5002 + $0x88] sm:$0xff]
        %v5021 = vld [vmem:[%s5002 + $0x90] sm:$0xff]
        %v5022 = vld [vmem:[%s5002 + $0x98] sm:$0xff]
        %v5023 = vld [vmem:[%s5002 + $0xa0] sm:$0xff]
        %v5024 = vld [vmem:[%s5002 + $0xa8] sm:$0xff]
        %v5025 = vld [vmem:[%s5002 + $0xb0] sm:$0xff]
        %v5026 = vld [vmem:[%s5002 + $0xb8] sm:$0xff]
        %v5027 = vld [vmem:[%s5002 + $0xc0] sm:$0xff]
        %v5028 = vld [vmem:[%s5002 + $0xc8] sm:$0xff]
        %v5029 = vld [vmem:[%s5002 + $0xd0] sm:$0xff]
        %v5030 = vld [vmem:[%s5002 + $0xd8] sm:$0xff]
        %v5031 = vld [vmem:[%s5002 + $0xe0] sm:$0xff]
        %v5032 = vld [vmem:[%s5002 + $0xe8] sm:$0xff]
        %v5033 = vld [vmem:[%s5002 + $0xf0] sm:$0xff]
        %v5034 = vld [vmem:[%s5002 + $0xf8] sm:$0xff]
        %v5036 = vunpack.c.l.b16 %v5001
        %v5037 = vunpack.c.h.b16 %v5001
        %v5038 = vpack.c.b16 %v5036, %v5036
        %v5039 = vpack.c.b16 %v5037, %v5037
        %v5041 = vshrl.u32 %v5038, 16
        %v5043 = vshll.u32 %v5038, 16
        %v5045 = vrot.slane %v5043, 1
        %v5046 = vor.u32 %v5041, %v5045
        %v5048 = vshrl.u32 %v5039, 16
        %v5050 = vshll.u32 %v5039, 16
        %v5052 = vrot.slane %v5050, 1
        %v5053 = vor.u32 %v5048, %v5052
        %v5088 = vunpack.c.l.b16 %v5003
        %v5089 = vunpack.c.h.b16 %v5003
        %v5090 = vunpack.c.l.b16 %v5004
        %v5091 = vunpack.c.h.b16 %v5004
        %v5092 = vunpack.c.l.b16 %v5005
        %v5093 = vunpack.c.h.b16 %v5005
        %v5094 = vunpack.c.l.b16 %v5006
        %v5095 = vunpack.c.h.b16 %v5006
        %v5096 = vunpack.c.l.b16 %v5007
        %v5097 = vunpack.c.h.b16 %v5007
        %v5098 = vunpack.c.l.b16 %v5008
        %v5099 = vunpack.c.h.b16 %v5008
        %v5100 = vunpack.c.l.b16 %v5009
        %v5101 = vunpack.c.h.b16 %v5009
        %v5102 = vunpack.c.l.b16 %v5010
        %v5103 = vunpack.c.h.b16 %v5010
        %v5104 = vunpack.c.l.b16 %v5011
        %v5105 = vunpack.c.h.b16 %v5011
        %v5106 = vunpack.c.l.b16 %v5012
        %v5107 = vunpack.c.h.b16 %v5012
        %v5108 = vunpack.c.l.b16 %v5013
        %v5109 = vunpack.c.h.b16 %v5013
        %v5110 = vunpack.c.l.b16 %v5014
        %v5111 = vunpack.c.h.b16 %v5014
        %v5112 = vunpack.c.l.b16 %v5015
        %v5113 = vunpack.c.h.b16 %v5015
        %v5114 = vunpack.c.l.b16 %v5016
        %v5115 = vunpack.c.h.b16 %v5016
        %v5116 = vunpack.c.l.b16 %v5017
        %v5117 = vunpack.c.h.b16 %v5017
        %v5118 = vunpack.c.l.b16 %v5018
        %v5119 = vunpack.c.h.b16 %v5018
        %v5120 = vunpack.c.l.b16 %v5019
        %v5121 = vunpack.c.h.b16 %v5019
        %v5122 = vunpack.c.l.b16 %v5020
        %v5123 = vunpack.c.h.b16 %v5020
        %v5124 = vunpack.c.l.b16 %v5021
        %v5125 = vunpack.c.h.b16 %v5021
        %v5126 = vunpack.c.l.b16 %v5022
        %v5127 = vunpack.c.h.b16 %v5022
        %v5128 = vunpack.c.l.b16 %v5023
        %v5129 = vunpack.c.h.b16 %v5023
        %v5130 = vunpack.c.l.b16 %v5024
        %v5131 = vunpack.c.h.b16 %v5024
        %v5132 = vunpack.c.l.b16 %v5025
        %v5133 = vunpack.c.h.b16 %v5025
        %v5134 = vunpack.c.l.b16 %v5026
        %v5135 = vunpack.c.h.b16 %v5026
        %v5136 = vunpack.c.l.b16 %v5027
        %v5137 = vunpack.c.h.b16 %v5027
        %v5138 = vunpack.c.l.b16 %v5028
        %v5139 = vunpack.c.h.b16 %v5028
        %v5140 = vunpack.c.l.b16 %v5029
        %v5141 = vunpack.c.h.b16 %v5029
        %v5142 = vunpack.c.l.b16 %v5030
        %v5143 = vunpack.c.h.b16 %v5030
        %v5144 = vunpack.c.l.b16 %v5031
        %v5145 = vunpack.c.h.b16 %v5031
        %v5146 = vunpack.c.l.b16 %v5032
        %v5147 = vunpack.c.h.b16 %v5032
        %v5148 = vunpack.c.l.b16 %v5033
        %v5149 = vunpack.c.h.b16 %v5033
        %v5150 = vunpack.c.l.b16 %v5034
        %v5151 = vunpack.c.h.b16 %v5034
        %v5152 = vpack.c.b16 %v5090, %v5088
        %v5153 = vpack.c.b16 %v5091, %v5089
        %v5154 = vpack.c.b16 %v5094, %v5092
        %v5155 = vpack.c.b16 %v5095, %v5093
        %v5156 = vpack.c.b16 %v5098, %v5096
        %v5157 = vpack.c.b16 %v5099, %v5097
        %v5158 = vpack.c.b16 %v5102, %v5100
        %v5159 = vpack.c.b16 %v5103, %v5101
        %v5160 = vpack.c.b16 %v5106, %v5104
        %v5161 = vpack.c.b16 %v5107, %v5105
        %v5162 = vpack.c.b16 %v5110, %v5108
        %v5163 = vpack.c.b16 %v5111, %v5109
        %v5164 = vpack.c.b16 %v5114, %v5112
        %v5165 = vpack.c.b16 %v5115, %v5113
        %v5166 = vpack.c.b16 %v5118, %v5116
        %v5167 = vpack.c.b16 %v5119, %v5117
        %v5168 = vpack.c.b16 %v5122, %v5120
        %v5169 = vpack.c.b16 %v5123, %v5121
        %v5170 = vpack.c.b16 %v5126, %v5124
        %v5171 = vpack.c.b16 %v5127, %v5125
        %v5172 = vpack.c.b16 %v5130, %v5128
        %v5173 = vpack.c.b16 %v5131, %v5129
        %v5174 = vpack.c.b16 %v5134, %v5132
        %v5175 = vpack.c.b16 %v5135, %v5133
        %v5176 = vpack.c.b16 %v5138, %v5136
        %v5177 = vpack.c.b16 %v5139, %v5137
        %v5178 = vpack.c.b16 %v5142, %v5140
        %v5179 = vpack.c.b16 %v5143, %v5141
        %v5180 = vpack.c.b16 %v5146, %v5144
        %v5181 = vpack.c.b16 %v5147, %v5145
        %v5182 = vpack.c.b16 %v5150, %v5148
        %v5183 = vpack.c.b16 %v5151, %v5149
        %5216 = vmatprep.subr.bf16.mxu0 %v5153
        %5217 = vmatpush1.bf16.msra.mxu0 %v5152
        %5218 = vmatprep.subr.bf16.mxu0 %v5155
        %5219 = vmatpush1.bf16.msra.mxu0 %v5154
        %5220 = vmatprep.subr.bf16.mxu0 %v5157
        %5221 = vmatpush1.bf16.msra.mxu0 %v5156
        %5222 = vmatprep.subr.bf16.mxu0 %v5159
        %5223 = vmatpush1.bf16.msra.mxu0 %v5158
        %5224 = vmatprep.subr.bf16.mxu0 %v5161
        %5225 = vmatpush1.bf16.msra.mxu0 %v5160
        %5226 = vmatprep.subr.bf16.mxu0 %v5163
        %5227 = vmatpush1.bf16.msra.mxu0 %v5162
        %5228 = vmatprep.subr.bf16.mxu0 %v5165
        %5229 = vmatpush1.bf16.msra.mxu0 %v5164
        %5230 = vmatprep.subr.bf16.mxu0 %v5167
        %5231 = vmatpush1.bf16.msra.mxu0 %v5166
        %5232 = vmatprep.subr.bf16.mxu0 %v5169
        %5233 = vmatpush1.bf16.msra.mxu0 %v5168
        %5234 = vmatprep.subr.bf16.mxu0 %v5171
        %5235 = vmatpush1.bf16.msra.mxu0 %v5170
        %5236 = vmatprep.subr.bf16.mxu0 %v5173
        %5237 = vmatpush1.bf16.msra.mxu0 %v5172
        %5238 = vmatprep.subr.bf16.mxu0 %v5175
        %5239 = vmatpush1.bf16.msra.mxu0 %v5174
        %5240 = vmatprep.subr.bf16.mxu0 %v5177
        %5241 = vmatpush1.bf16.msra.mxu0 %v5176
        %5242 = vmatprep.subr.bf16.mxu0 %v5179
        %5243 = vmatpush1.bf16.msra.mxu0 %v5178
        %5244 = vmatprep.subr.bf16.mxu0 %v5181
        %5245 = vmatpush1.bf16.msra.mxu0 %v5180
        %5246 = vmatprep.subr.bf16.mxu0 %v5183
        %5247 = vmatpush1.bf16.msra.mxu0 %v5182
        %5248 = vmatprep.mubr.bf16.mxu0 %v5053
        %5249 = vmatmul.mubr.bf16.gmra.mrb[0].mxu0 %v5046
        %v5250 = vpop.f32.mrb[0].mxu0
        %v5251 = vadd.f32 0.0, %v5250
        %v5252 = vpop.f32.mrb[0].mxu0
        %v5253 = vadd.f32 0.0, %v5252
        %v5254 = vpop.f32.mrb[0].mxu0
        %v5255 = vpop.f32.mrb[0].mxu0
        %5256 = vdwg.mxu0
        %v5257 = vadd.f32 %v4995, %v5251
        %v5258 = vadd.f32 %v4997, %v5253
        %v5259 = vld [vmem:[%s4480] sm:$0x77]
        %s5260 = scalar_lea.vmem [#allocation10], 768
        %v5261 = vld [vmem:[%s5260] sm:$0xff]
        %v5262 = vld [vmem:[%s5260 + $0x8] sm:$0xff]
        %v5263 = vld [vmem:[%s5260 + $0x10] sm:$0xff]
        %v5264 = vld [vmem:[%s5260 + $0x18] sm:$0xff]
        %v5265 = vld [vmem:[%s5260 + $0x20] sm:$0xff]
        %v5266 = vld [vmem:[%s5260 + $0x28] sm:$0xff]
        %v5267 = vld [vmem:[%s5260 + $0x30] sm:$0xff]
        %v5268 = vld [vmem:[%s5260 + $0x38] sm:$0xff]
        %v5269 = vld [vmem:[%s5260 + $0x40] sm:$0xff]
        %v5270 = vld [vmem:[%s5260 + $0x48] sm:$0xff]
        %v5271 = vld [vmem:[%s5260 + $0x50] sm:$0xff]
        %v5272 = vld [vmem:[%s5260 + $0x58] sm:$0xff]
        %v5273 = vld [vmem:[%s5260 + $0x60] sm:$0xff]
        %v5274 = vld [vmem:[%s5260 + $0x68] sm:$0xff]
        %v5275 = vld [vmem:[%s5260 + $0x70] sm:$0xff]
        %v5276 = vld [vmem:[%s5260 + $0x78] sm:$0xff]
        %v5277 = vld [vmem:[%s5260 + $0x80] sm:$0xff]
        %v5278 = vld [vmem:[%s5260 + $0x88] sm:$0xff]
        %v5279 = vld [vmem:[%s5260 + $0x90] sm:$0xff]
        %v5280 = vld [vmem:[%s5260 + $0x98] sm:$0xff]
        %v5281 = vld [vmem:[%s5260 + $0xa0] sm:$0xff]
        %v5282 = vld [vmem:[%s5260 + $0xa8] sm:$0xff]
        %v5283 = vld [vmem:[%s5260 + $0xb0] sm:$0xff]
        %v5284 = vld [vmem:[%s5260 + $0xb8] sm:$0xff]
        %v5285 = vld [vmem:[%s5260 + $0xc0] sm:$0xff]
        %v5286 = vld [vmem:[%s5260 + $0xc8] sm:$0xff]
        %v5287 = vld [vmem:[%s5260 + $0xd0] sm:$0xff]
        %v5288 = vld [vmem:[%s5260 + $0xd8] sm:$0xff]
        %v5289 = vld [vmem:[%s5260 + $0xe0] sm:$0xff]
        %v5290 = vld [vmem:[%s5260 + $0xe8] sm:$0xff]
        %v5291 = vld [vmem:[%s5260 + $0xf0] sm:$0xff]
        %v5292 = vld [vmem:[%s5260 + $0xf8] sm:$0xff]
        %v5294 = vunpack.c.l.b16 %v5259
        %v5295 = vunpack.c.h.b16 %v5259
        %v5296 = vpack.c.b16 %v5294, %v5294
        %v5297 = vpack.c.b16 %v5295, %v5295
        %v5299 = vshrl.u32 %v5296, 16
        %v5301 = vshll.u32 %v5296, 16
        %v5303 = vrot.slane %v5301, 1
        %v5304 = vor.u32 %v5299, %v5303
        %v5306 = vshrl.u32 %v5297, 16
        %v5308 = vshll.u32 %v5297, 16
        %v5310 = vrot.slane %v5308, 1
        %v5311 = vor.u32 %v5306, %v5310
        %v5346 = vunpack.c.l.b16 %v5261
        %v5347 = vunpack.c.h.b16 %v5261
        %v5348 = vunpack.c.l.b16 %v5262
        %v5349 = vunpack.c.h.b16 %v5262
        %v5350 = vunpack.c.l.b16 %v5263
        %v5351 = vunpack.c.h.b16 %v5263
        %v5352 = vunpack.c.l.b16 %v5264
        %v5353 = vunpack.c.h.b16 %v5264
        %v5354 = vunpack.c.l.b16 %v5265
        %v5355 = vunpack.c.h.b16 %v5265
        %v5356 = vunpack.c.l.b16 %v5266
        %v5357 = vunpack.c.h.b16 %v5266
        %v5358 = vunpack.c.l.b16 %v5267
        %v5359 = vunpack.c.h.b16 %v5267
        %v5360 = vunpack.c.l.b16 %v5268
        %v5361 = vunpack.c.h.b16 %v5268
        %v5362 = vunpack.c.l.b16 %v5269
        %v5363 = vunpack.c.h.b16 %v5269
        %v5364 = vunpack.c.l.b16 %v5270
        %v5365 = vunpack.c.h.b16 %v5270
        %v5366 = vunpack.c.l.b16 %v5271
        %v5367 = vunpack.c.h.b16 %v5271
        %v5368 = vunpack.c.l.b16 %v5272
        %v5369 = vunpack.c.h.b16 %v5272
        %v5370 = vunpack.c.l.b16 %v5273
        %v5371 = vunpack.c.h.b16 %v5273
        %v5372 = vunpack.c.l.b16 %v5274
        %v5373 = vunpack.c.h.b16 %v5274
        %v5374 = vunpack.c.l.b16 %v5275
        %v5375 = vunpack.c.h.b16 %v5275
        %v5376 = vunpack.c.l.b16 %v5276
        %v5377 = vunpack.c.h.b16 %v5276
        %v5378 = vunpack.c.l.b16 %v5277
        %v5379 = vunpack.c.h.b16 %v5277
        %v5380 = vunpack.c.l.b16 %v5278
        %v5381 = vunpack.c.h.b16 %v5278
        %v5382 = vunpack.c.l.b16 %v5279
        %v5383 = vunpack.c.h.b16 %v5279
        %v5384 = vunpack.c.l.b16 %v5280
        %v5385 = vunpack.c.h.b16 %v5280
        %v5386 = vunpack.c.l.b16 %v5281
        %v5387 = vunpack.c.h.b16 %v5281
        %v5388 = vunpack.c.l.b16 %v5282
        %v5389 = vunpack.c.h.b16 %v5282
        %v5390 = vunpack.c.l.b16 %v5283
        %v5391 = vunpack.c.h.b16 %v5283
        %v5392 = vunpack.c.l.b16 %v5284
        %v5393 = vunpack.c.h.b16 %v5284
        %v5394 = vunpack.c.l.b16 %v5285
        %v5395 = vunpack.c.h.b16 %v5285
        %v5396 = vunpack.c.l.b16 %v5286
        %v5397 = vunpack.c.h.b16 %v5286
        %v5398 = vunpack.c.l.b16 %v5287
        %v5399 = vunpack.c.h.b16 %v5287
        %v5400 = vunpack.c.l.b16 %v5288
        %v5401 = vunpack.c.h.b16 %v5288
        %v5402 = vunpack.c.l.b16 %v5289
        %v5403 = vunpack.c.h.b16 %v5289
        %v5404 = vunpack.c.l.b16 %v5290
        %v5405 = vunpack.c.h.b16 %v5290
        %v5406 = vunpack.c.l.b16 %v5291
        %v5407 = vunpack.c.h.b16 %v5291
        %v5408 = vunpack.c.l.b16 %v5292
        %v5409 = vunpack.c.h.b16 %v5292
        %v5410 = vpack.c.b16 %v5348, %v5346
        %v5411 = vpack.c.b16 %v5349, %v5347
        %v5412 = vpack.c.b16 %v5352, %v5350
        %v5413 = vpack.c.b16 %v5353, %v5351
        %v5414 = vpack.c.b16 %v5356, %v5354
        %v5415 = vpack.c.b16 %v5357, %v5355
        %v5416 = vpack.c.b16 %v5360, %v5358
        %v5417 = vpack.c.b16 %v5361, %v5359
        %v5418 = vpack.c.b16 %v5364, %v5362
        %v5419 = vpack.c.b16 %v5365, %v5363
        %v5420 = vpack.c.b16 %v5368, %v5366
        %v5421 = vpack.c.b16 %v5369, %v5367
        %v5422 = vpack.c.b16 %v5372, %v5370
        %v5423 = vpack.c.b16 %v5373, %v5371
        %v5424 = vpack.c.b16 %v5376, %v5374
        %v5425 = vpack.c.b16 %v5377, %v5375
        %v5426 = vpack.c.b16 %v5380, %v5378
        %v5427 = vpack.c.b16 %v5381, %v5379
        %v5428 = vpack.c.b16 %v5384, %v5382
        %v5429 = vpack.c.b16 %v5385, %v5383
        %v5430 = vpack.c.b16 %v5388, %v5386
        %v5431 = vpack.c.b16 %v5389, %v5387
        %v5432 = vpack.c.b16 %v5392, %v5390
        %v5433 = vpack.c.b16 %v5393, %v5391
        %v5434 = vpack.c.b16 %v5396, %v5394
        %v5435 = vpack.c.b16 %v5397, %v5395
        %v5436 = vpack.c.b16 %v5400, %v5398
        %v5437 = vpack.c.b16 %v5401, %v5399
        %v5438 = vpack.c.b16 %v5404, %v5402
        %v5439 = vpack.c.b16 %v5405, %v5403
        %v5440 = vpack.c.b16 %v5408, %v5406
        %v5441 = vpack.c.b16 %v5409, %v5407
        %5474 = vmatprep.subr.bf16.mxu0 %v5411
        %5475 = vmatpush1.bf16.msra.mxu0 %v5410
        %5476 = vmatprep.subr.bf16.mxu0 %v5413
        %5477 = vmatpush1.bf16.msra.mxu0 %v5412
        %5478 = vmatprep.subr.bf16.mxu0 %v5415
        %5479 = vmatpush1.bf16.msra.mxu0 %v5414
        %5480 = vmatprep.subr.bf16.mxu0 %v5417
        %5481 = vmatpush1.bf16.msra.mxu0 %v5416
        %5482 = vmatprep.subr.bf16.mxu0 %v5419
        %5483 = vmatpush1.bf16.msra.mxu0 %v5418
        %5484 = vmatprep.subr.bf16.mxu0 %v5421
        %5485 = vmatpush1.bf16.msra.mxu0 %v5420
        %5486 = vmatprep.subr.bf16.mxu0 %v5423
        %5487 = vmatpush1.bf16.msra.mxu0 %v5422
        %5488 = vmatprep.subr.bf16.mxu0 %v5425
        %5489 = vmatpush1.bf16.msra.mxu0 %v5424
        %5490 = vmatprep.subr.bf16.mxu0 %v5427
        %5491 = vmatpush1.bf16.msra.mxu0 %v5426
        %5492 = vmatprep.subr.bf16.mxu0 %v5429
        %5493 = vmatpush1.bf16.msra.mxu0 %v5428
        %5494 = vmatprep.subr.bf16.mxu0 %v5431
        %5495 = vmatpush1.bf16.msra.mxu0 %v5430
        %5496 = vmatprep.subr.bf16.mxu0 %v5433
        %5497 = vmatpush1.bf16.msra.mxu0 %v5432
        %5498 = vmatprep.subr.bf16.mxu0 %v5435
        %5499 = vmatpush1.bf16.msra.mxu0 %v5434
        %5500 = vmatprep.subr.bf16.mxu0 %v5437
        %5501 = vmatpush1.bf16.msra.mxu0 %v5436
        %5502 = vmatprep.subr.bf16.mxu0 %v5439
        %5503 = vmatpush1.bf16.msra.mxu0 %v5438
        %5504 = vmatprep.subr.bf16.mxu0 %v5441
        %5505 = vmatpush1.bf16.msra.mxu0 %v5440
        %5506 = vmatprep.mubr.bf16.mxu0 %v5311
        %5507 = vmatmul.mubr.bf16.gmra.mrb[0].mxu0 %v5304
        %v5508 = vpop.f32.mrb[0].mxu0
        %v5509 = vadd.f32 0.0, %v5508
        %v5510 = vpop.f32.mrb[0].mxu0
        %v5511 = vadd.f32 0.0, %v5510
        %v5512 = vpop.f32.mrb[0].mxu0
        %v5513 = vpop.f32.mrb[0].mxu0
        %5514 = vdwg.mxu0
        %v5515 = vadd.f32 %v5257, %v5509
        %v5516 = vadd.f32 %v5258, %v5511
        %v5517 = vmax.f32 %v5515, 0.0
        %v5518 = vmax.f32 %v5516, 0.0
        %v5519 = vpack.c.bf16 %v5517, %v5517
        %v5520 = vpack.c.bf16 %v5518, %v5518
        %v5521 = vld [vmem:[%s9] sm:$0xf]
        %v5522 = vld [vmem:[%s9 + $0x4] sm:$0xf]
        %v5523 = vld [vmem:[%s9 + $0x8] sm:$0xf]
        %v5524 = vld [vmem:[%s9 + $0xc] sm:$0xf]
        %v5525 = vld [vmem:[%s9 + $0x10] sm:$0xf]
        %v5526 = vld [vmem:[%s9 + $0x14] sm:$0xf]
        %v5527 = vld [vmem:[%s9 + $0x18] sm:$0xf]
        %v5528 = vld [vmem:[%s9 + $0x1c] sm:$0xf]
        %v5529 = vld [vmem:[%s9 + $0x20] sm:$0xf]
        %v5530 = vld [vmem:[%s9 + $0x24] sm:$0xf]
        %v5531 = vld [vmem:[%s9 + $0x28] sm:$0xf]
        %v5532 = vld [vmem:[%s9 + $0x2c] sm:$0xf]
        %v5533 = vld [vmem:[%s9 + $0x30] sm:$0xf]
        %v5534 = vld [vmem:[%s9 + $0x34] sm:$0xf]
        %v5535 = vld [vmem:[%s9 + $0x38] sm:$0xf]
        %v5536 = vld [vmem:[%s9 + $0x3c] sm:$0xf]
        %v5537 = vld [vmem:[%s9 + $0x40] sm:$0xf]
        %v5538 = vld [vmem:[%s9 + $0x44] sm:$0xf]
        %v5539 = vld [vmem:[%s9 + $0x48] sm:$0xf]
        %v5540 = vld [vmem:[%s9 + $0x4c] sm:$0xf]
        %v5541 = vld [vmem:[%s9 + $0x50] sm:$0xf]
        %v5542 = vld [vmem:[%s9 + $0x54] sm:$0xf]
        %v5543 = vld [vmem:[%s9 + $0x58] sm:$0xf]
        %v5544 = vld [vmem:[%s9 + $0x5c] sm:$0xf]
        %v5545 = vld [vmem:[%s9 + $0x60] sm:$0xf]
        %v5546 = vld [vmem:[%s9 + $0x64] sm:$0xf]
        %v5547 = vld [vmem:[%s9 + $0x68] sm:$0xf]
        %v5548 = vld [vmem:[%s9 + $0x6c] sm:$0xf]
        %v5549 = vld [vmem:[%s9 + $0x70] sm:$0xf]
        %v5550 = vld [vmem:[%s9 + $0x74] sm:$0xf]
        %v5551 = vld [vmem:[%s9 + $0x78] sm:$0xf]
        %v5552 = vld [vmem:[%s9 + $0x7c] sm:$0xf]
        %s5553 = scalar_lea.vmem %s9, 128
        %v5554 = vld [vmem:[%s5553] sm:$0xf]
        %v5555 = vld [vmem:[%s5553 + $0x4] sm:$0xf]
        %v5556 = vld [vmem:[%s5553 + $0x8] sm:$0xf]
        %v5557 = vld [vmem:[%s5553 + $0xc] sm:$0xf]
        %v5558 = vld [vmem:[%s5553 + $0x10] sm:$0xf]
        %v5559 = vld [vmem:[%s5553 + $0x14] sm:$0xf]
        %v5560 = vld [vmem:[%s5553 + $0x18] sm:$0xf]
        %v5561 = vld [vmem:[%s5553 + $0x1c] sm:$0xf]
        %v5562 = vld [vmem:[%s5553 + $0x20] sm:$0xf]
        %v5563 = vld [vmem:[%s5553 + $0x24] sm:$0xf]
        %v5564 = vld [vmem:[%s5553 + $0x28] sm:$0xf]
        %v5565 = vld [vmem:[%s5553 + $0x2c] sm:$0xf]
        %v5566 = vld [vmem:[%s5553 + $0x30] sm:$0xf]
        %v5567 = vld [vmem:[%s5553 + $0x34] sm:$0xf]
        %v5568 = vld [vmem:[%s5553 + $0x38] sm:$0xf]
        %v5569 = vld [vmem:[%s5553 + $0x3c] sm:$0xf]
        %v5570 = vld [vmem:[%s5553 + $0x40] sm:$0xf]
        %v5571 = vld [vmem:[%s5553 + $0x44] sm:$0xf]
        %v5572 = vld [vmem:[%s5553 + $0x48] sm:$0xf]
        %v5573 = vld [vmem:[%s5553 + $0x4c] sm:$0xf]
        %v5574 = vld [vmem:[%s5553 + $0x50] sm:$0xf]
        %v5575 = vld [vmem:[%s5553 + $0x54] sm:$0xf]
        %v5576 = vld [vmem:[%s5553 + $0x58] sm:$0xf]
        %v5577 = vld [vmem:[%s5553 + $0x5c] sm:$0xf]
        %v5578 = vld [vmem:[%s5553 + $0x60] sm:$0xf]
        %v5579 = vld [vmem:[%s5553 + $0x64] sm:$0xf]
        %v5580 = vld [vmem:[%s5553 + $0x68] sm:$0xf]
        %v5581 = vld [vmem:[%s5553 + $0x6c] sm:$0xf]
        %v5582 = vld [vmem:[%s5553 + $0x70] sm:$0xf]
        %v5583 = vld [vmem:[%s5553 + $0x74] sm:$0xf]
        %v5584 = vld [vmem:[%s5553 + $0x78] sm:$0xf]
        %v5585 = vld [vmem:[%s5553 + $0x7c] sm:$0xf]
        %v5587 = vshrl.u32 %v5519, 16
        %v5590 = vshrl.u32 %v5520, 16
        %v5626 = vunpack.c.l.b16 %v5554
        %v5627 = vunpack.c.l.b16 %v5555
        %v5628 = vunpack.c.l.b16 %v5556
        %v5629 = vunpack.c.l.b16 %v5557
        %v5630 = vunpack.c.l.b16 %v5558
        %v5631 = vunpack.c.l.b16 %v5559
        %v5632 = vunpack.c.l.b16 %v5560
        %v5633 = vunpack.c.l.b16 %v5561
        %v5634 = vunpack.c.l.b16 %v5562
        %v5635 = vunpack.c.l.b16 %v5563
        %v5636 = vunpack.c.l.b16 %v5564
        %v5637 = vunpack.c.l.b16 %v5565
        %v5638 = vunpack.c.l.b16 %v5566
        %v5639 = vunpack.c.l.b16 %v5567
        %v5640 = vunpack.c.l.b16 %v5568
        %v5641 = vunpack.c.l.b16 %v5569
        %v5642 = vunpack.c.l.b16 %v5570
        %v5643 = vunpack.c.l.b16 %v5571
        %v5644 = vunpack.c.l.b16 %v5572
        %v5645 = vunpack.c.l.b16 %v5573
        %v5646 = vunpack.c.l.b16 %v5574
        %v5647 = vunpack.c.l.b16 %v5575
        %v5648 = vunpack.c.l.b16 %v5576
        %v5649 = vunpack.c.l.b16 %v5577
        %v5650 = vunpack.c.l.b16 %v5578
        %v5651 = vunpack.c.l.b16 %v5579
        %v5652 = vunpack.c.l.b16 %v5580
        %v5653 = vunpack.c.l.b16 %v5581
        %v5654 = vunpack.c.l.b16 %v5582
        %v5655 = vunpack.c.l.b16 %v5583
        %v5656 = vunpack.c.l.b16 %v5584
        %v5657 = vunpack.c.l.b16 %v5585
        %v5658 = vpack.c.b16 %v5627, %v5626
        %v5659 = vpack.c.b16 %v5629, %v5628
        %v5660 = vpack.c.b16 %v5631, %v5630
        %v5661 = vpack.c.b16 %v5633, %v5632
        %v5662 = vpack.c.b16 %v5635, %v5634
        %v5663 = vpack.c.b16 %v5637, %v5636
        %v5664 = vpack.c.b16 %v5639, %v5638
        %v5665 = vpack.c.b16 %v5641, %v5640
        %v5666 = vpack.c.b16 %v5643, %v5642
        %v5667 = vpack.c.b16 %v5645, %v5644
        %v5668 = vpack.c.b16 %v5647, %v5646
        %v5669 = vpack.c.b16 %v5649, %v5648
        %v5670 = vpack.c.b16 %v5651, %v5650
        %v5671 = vpack.c.b16 %v5653, %v5652
        %v5672 = vpack.c.b16 %v5655, %v5654
        %v5673 = vpack.c.b16 %v5657, %v5656
        %5690 = vmatprep.subr.bf16.mxu0 0
        %5691 = vmatpush1.bf16.msra.mxu0 %v5658
        %5692 = vmatprep.subr.bf16.mxu0 0
        %5693 = vmatpush1.bf16.msra.mxu0 %v5659
        %5694 = vmatprep.subr.bf16.mxu0 0
        %5695 = vmatpush1.bf16.msra.mxu0 %v5660
        %5696 = vmatprep.subr.bf16.mxu0 0
        %5697 = vmatpush1.bf16.msra.mxu0 %v5661
        %5698 = vmatprep.subr.bf16.mxu0 0
        %5699 = vmatpush1.bf16.msra.mxu0 %v5662
        %5700 = vmatprep.subr.bf16.mxu0 0
        %5701 = vmatpush1.bf16.msra.mxu0 %v5663
        %5702 = vmatprep.subr.bf16.mxu0 0
        %5703 = vmatpush1.bf16.msra.mxu0 %v5664
        %5704 = vmatprep.subr.bf16.mxu0 0
        %5705 = vmatpush1.bf16.msra.mxu0 %v5665
        %5706 = vmatprep.subr.bf16.mxu0 0
        %5707 = vmatpush1.bf16.msra.mxu0 %v5666
        %5708 = vmatprep.subr.bf16.mxu0 0
        %5709 = vmatpush1.bf16.msra.mxu0 %v5667
        %5710 = vmatprep.subr.bf16.mxu0 0
        %5711 = vmatpush1.bf16.msra.mxu0 %v5668
        %5712 = vmatprep.subr.bf16.mxu0 0
        %5713 = vmatpush1.bf16.msra.mxu0 %v5669
        %5714 = vmatprep.subr.bf16.mxu0 0
        %5715 = vmatpush1.bf16.msra.mxu0 %v5670
        %5716 = vmatprep.subr.bf16.mxu0 0
        %5717 = vmatpush1.bf16.msra.mxu0 %v5671
        %5718 = vmatprep.subr.bf16.mxu0 0
        %5719 = vmatpush1.bf16.msra.mxu0 %v5672
        %5720 = vmatprep.subr.bf16.mxu0 0
        %5721 = vmatpush1.bf16.msra.mxu0 %v5673
        %5722 = vmatprep.mubr.bf16.mxu0 %v5590
        %5723 = vmatmul.mubr.bf16.gmra.mrb[0].mxu0 %v5587
        %v5724 = vpop.f32.mrb[0].mxu0
        %v5725 = vadd.f32 0.0, %v5724
        %v5726 = vpop.f32.mrb[0].mxu0
        %v5727 = vpop.f32.mrb[0].mxu0
        %v5728 = vpop.f32.mrb[0].mxu0
        %5729 = vdwg.mxu0
        %v5762 = vunpack.c.l.b16 %v5521
        %v5763 = vunpack.c.l.b16 %v5522
        %v5764 = vunpack.c.l.b16 %v5523
        %v5765 = vunpack.c.l.b16 %v5524
        %v5766 = vunpack.c.l.b16 %v5525
        %v5767 = vunpack.c.l.b16 %v5526
        %v5768 = vunpack.c.l.b16 %v5527
        %v5769 = vunpack.c.l.b16 %v5528
        %v5770 = vunpack.c.l.b16 %v5529
        %v5771 = vunpack.c.l.b16 %v5530
        %v5772 = vunpack.c.l.b16 %v5531
        %v5773 = vunpack.c.l.b16 %v5532
        %v5774 = vunpack.c.l.b16 %v5533
        %v5775 = vunpack.c.l.b16 %v5534
        %v5776 = vunpack.c.l.b16 %v5535
        %v5777 = vunpack.c.l.b16 %v5536
        %v5778 = vunpack.c.l.b16 %v5537
        %v5779 = vunpack.c.l.b16 %v5538
        %v5780 = vunpack.c.l.b16 %v5539
        %v5781 = vunpack.c.l.b16 %v5540
        %v5782 = vunpack.c.l.b16 %v5541
        %v5783 = vunpack.c.l.b16 %v5542
        %v5784 = vunpack.c.l.b16 %v5543
        %v5785 = vunpack.c.l.b16 %v5544
        %v5786 = vunpack.c.l.b16 %v5545
        %v5787 = vunpack.c.l.b16 %v5546
        %v5788 = vunpack.c.l.b16 %v5547
        %v5789 = vunpack.c.l.b16 %v5548
        %v5790 = vunpack.c.l.b16 %v5549
        %v5791 = vunpack.c.l.b16 %v5550
        %v5792 = vunpack.c.l.b16 %v5551
        %v5793 = vunpack.c.l.b16 %v5552
        %v5794 = vpack.c.b16 %v5763, %v5762
        %v5795 = vpack.c.b16 %v5765, %v5764
        %v5796 = vpack.c.b16 %v5767, %v5766
        %v5797 = vpack.c.b16 %v5769, %v5768
        %v5798 = vpack.c.b16 %v5771, %v5770
        %v5799 = vpack.c.b16 %v5773, %v5772
        %v5800 = vpack.c.b16 %v5775, %v5774
        %v5801 = vpack.c.b16 %v5777, %v5776
        %v5802 = vpack.c.b16 %v5779, %v5778
        %v5803 = vpack.c.b16 %v5781, %v5780
        %v5804 = vpack.c.b16 %v5783, %v5782
        %v5805 = vpack.c.b16 %v5785, %v5784
        %v5806 = vpack.c.b16 %v5787, %v5786
        %v5807 = vpack.c.b16 %v5789, %v5788
        %v5808 = vpack.c.b16 %v5791, %v5790
        %v5809 = vpack.c.b16 %v5793, %v5792
        %5826 = vmatprep.subr.bf16.mxu0 0
        %5827 = vmatpush1.bf16.msra.mxu0 %v5794
        %5828 = vmatprep.subr.bf16.mxu0 0
        %5829 = vmatpush1.bf16.msra.mxu0 %v5795
        %5830 = vmatprep.subr.bf16.mxu0 0
        %5831 = vmatpush1.bf16.msra.mxu0 %v5796
        %5832 = vmatprep.subr.bf16.mxu0 0
        %5833 = vmatpush1.bf16.msra.mxu0 %v5797
        %5834 = vmatprep.subr.bf16.mxu0 0
        %5835 = vmatpush1.bf16.msra.mxu0 %v5798
        %5836 = vmatprep.subr.bf16.mxu0 0
        %5837 = vmatpush1.bf16.msra.mxu0 %v5799
        %5838 = vmatprep.subr.bf16.mxu0 0
        %5839 = vmatpush1.bf16.msra.mxu0 %v5800
        %5840 = vmatprep.subr.bf16.mxu0 0
        %5841 = vmatpush1.bf16.msra.mxu0 %v5801
        %5842 = vmatprep.subr.bf16.mxu0 0
        %5843 = vmatpush1.bf16.msra.mxu0 %v5802
        %5844 = vmatprep.subr.bf16.mxu0 0
        %5845 = vmatpush1.bf16.msra.mxu0 %v5803
        %5846 = vmatprep.subr.bf16.mxu0 0
        %5847 = vmatpush1.bf16.msra.mxu0 %v5804
        %5848 = vmatprep.subr.bf16.mxu0 0
        %5849 = vmatpush1.bf16.msra.mxu0 %v5805
        %5850 = vmatprep.subr.bf16.mxu0 0
        %5851 = vmatpush1.bf16.msra.mxu0 %v5806
        %5852 = vmatprep.subr.bf16.mxu0 0
        %5853 = vmatpush1.bf16.msra.mxu0 %v5807
        %5854 = vmatprep.subr.bf16.mxu0 0
        %5855 = vmatpush1.bf16.msra.mxu0 %v5808
        %5856 = vmatprep.subr.bf16.mxu0 0
        %5857 = vmatpush1.bf16.msra.mxu0 %v5809
        %5858 = vmatprep.mubr.bf16.mxu0 %v5520
        %5859 = vmatmul.mubr.bf16.gmra.mrb[0].mxu0 %v5519
        %v5860 = vpop.f32.mrb[0].mxu0
        %v5861 = vadd.f32 %v5725, %v5860
        %v5862 = vpop.f32.mrb[0].mxu0
        %v5863 = vpop.f32.mrb[0].mxu0
        %v5864 = vpop.f32.mrb[0].mxu0
        %5865 = vdwg.mxu0
        %s5866 = scalar_lea.vmem %s9, 256
        %v5867 = vld [vmem:[%s5866] sm:$0xf]
        %v5868 = vld [vmem:[%s5866 + $0x4] sm:$0xf]
        %v5869 = vld [vmem:[%s5866 + $0x8] sm:$0xf]
        %v5870 = vld [vmem:[%s5866 + $0xc] sm:$0xf]
        %v5871 = vld [vmem:[%s5866 + $0x10] sm:$0xf]
        %v5872 = vld [vmem:[%s5866 + $0x14] sm:$0xf]
        %v5873 = vld [vmem:[%s5866 + $0x18] sm:$0xf]
        %v5874 = vld [vmem:[%s5866 + $0x1c] sm:$0xf]
        %v5875 = vld [vmem:[%s5866 + $0x20] sm:$0xf]
        %v5876 = vld [vmem:[%s5866 + $0x24] sm:$0xf]
        %v5877 = vld [vmem:[%s5866 + $0x28] sm:$0xf]
        %v5878 = vld [vmem:[%s5866 + $0x2c] sm:$0xf]
        %v5879 = vld [vmem:[%s5866 + $0x30] sm:$0xf]
        %v5880 = vld [vmem:[%s5866 + $0x34] sm:$0xf]
        %v5881 = vld [vmem:[%s5866 + $0x38] sm:$0xf]
        %v5882 = vld [vmem:[%s5866 + $0x3c] sm:$0xf]
        %v5883 = vld [vmem:[%s5866 + $0x40] sm:$0xf]
        %v5884 = vld [vmem:[%s5866 + $0x44] sm:$0xf]
        %v5885 = vld [vmem:[%s5866 + $0x48] sm:$0xf]
        %v5886 = vld [vmem:[%s5866 + $0x4c] sm:$0xf]
        %v5887 = vld [vmem:[%s5866 + $0x50] sm:$0xf]
        %v5888 = vld [vmem:[%s5866 + $0x54] sm:$0xf]
        %v5889 = vld [vmem:[%s5866 + $0x58] sm:$0xf]
        %v5890 = vld [vmem:[%s5866 + $0x5c] sm:$0xf]
        %v5891 = vld [vmem:[%s5866 + $0x60] sm:$0xf]
        %v5892 = vld [vmem:[%s5866 + $0x64] sm:$0xf]
        %v5893 = vld [vmem:[%s5866 + $0x68] sm:$0xf]
        %v5894 = vld [vmem:[%s5866 + $0x6c] sm:$0xf]
        %v5895 = vld [vmem:[%s5866 + $0x70] sm:$0xf]
        %v5896 = vld [vmem:[%s5866 + $0x74] sm:$0xf]
        %v5897 = vld [vmem:[%s5866 + $0x78] sm:$0xf]
        %v5898 = vld [vmem:[%s5866 + $0x7c] sm:$0xf]
        %v5901 = vrot.slane %v5519, 1
        %v5902 = vrot.slane %v5520, 1
        %v5937 = vunpack.c.l.b16 %v5867
        %v5938 = vunpack.c.l.b16 %v5868
        %v5939 = vunpack.c.l.b16 %v5869
        %v5940 = vunpack.c.l.b16 %v5870
        %v5941 = vunpack.c.l.b16 %v5871
        %v5942 = vunpack.c.l.b16 %v5872
        %v5943 = vunpack.c.l.b16 %v5873
        %v5944 = vunpack.c.l.b16 %v5874
        %v5945 = vunpack.c.l.b16 %v5875
        %v5946 = vunpack.c.l.b16 %v5876
        %v5947 = vunpack.c.l.b16 %v5877
        %v5948 = vunpack.c.l.b16 %v5878
        %v5949 = vunpack.c.l.b16 %v5879
        %v5950 = vunpack.c.l.b16 %v5880
        %v5951 = vunpack.c.l.b16 %v5881
        %v5952 = vunpack.c.l.b16 %v5882
        %v5953 = vunpack.c.l.b16 %v5883
        %v5954 = vunpack.c.l.b16 %v5884
        %v5955 = vunpack.c.l.b16 %v5885
        %v5956 = vunpack.c.l.b16 %v5886
        %v5957 = vunpack.c.l.b16 %v5887
        %v5958 = vunpack.c.l.b16 %v5888
        %v5959 = vunpack.c.l.b16 %v5889
        %v5960 = vunpack.c.l.b16 %v5890
        %v5961 = vunpack.c.l.b16 %v5891
        %v5962 = vunpack.c.l.b16 %v5892
        %v5963 = vunpack.c.l.b16 %v5893
        %v5964 = vunpack.c.l.b16 %v5894
        %v5965 = vunpack.c.l.b16 %v5895
        %v5966 = vunpack.c.l.b16 %v5896
        %v5967 = vunpack.c.l.b16 %v5897
        %v5968 = vunpack.c.l.b16 %v5898
        %v5969 = vpack.c.b16 %v5938, %v5937
        %v5970 = vpack.c.b16 %v5940, %v5939
        %v5971 = vpack.c.b16 %v5942, %v5941
        %v5972 = vpack.c.b16 %v5944, %v5943
        %v5973 = vpack.c.b16 %v5946, %v5945
        %v5974 = vpack.c.b16 %v5948, %v5947
        %v5975 = vpack.c.b16 %v5950, %v5949
        %v5976 = vpack.c.b16 %v5952, %v5951
        %v5977 = vpack.c.b16 %v5954, %v5953
        %v5978 = vpack.c.b16 %v5956, %v5955
        %v5979 = vpack.c.b16 %v5958, %v5957
        %v5980 = vpack.c.b16 %v5960, %v5959
        %v5981 = vpack.c.b16 %v5962, %v5961
        %v5982 = vpack.c.b16 %v5964, %v5963
        %v5983 = vpack.c.b16 %v5966, %v5965
        %v5984 = vpack.c.b16 %v5968, %v5967
        %6001 = vmatprep.subr.bf16.mxu0 0
        %6002 = vmatpush1.bf16.msra.mxu0 %v5969
        %6003 = vmatprep.subr.bf16.mxu0 0
        %6004 = vmatpush1.bf16.msra.mxu0 %v5970
        %6005 = vmatprep.subr.bf16.mxu0 0
        %6006 = vmatpush1.bf16.msra.mxu0 %v5971
        %6007 = vmatprep.subr.bf16.mxu0 0
        %6008 = vmatpush1.bf16.msra.mxu0 %v5972
        %6009 = vmatprep.subr.bf16.mxu0 0
        %6010 = vmatpush1.bf16.msra.mxu0 %v5973
        %6011 = vmatprep.subr.bf16.mxu0 0
        %6012 = vmatpush1.bf16.msra.mxu0 %v5974
        %6013 = vmatprep.subr.bf16.mxu0 0
        %6014 = vmatpush1.bf16.msra.mxu0 %v5975
        %6015 = vmatprep.subr.bf16.mxu0 0
        %6016 = vmatpush1.bf16.msra.mxu0 %v5976
        %6017 = vmatprep.subr.bf16.mxu0 0
        %6018 = vmatpush1.bf16.msra.mxu0 %v5977
        %6019 = vmatprep.subr.bf16.mxu0 0
        %6020 = vmatpush1.bf16.msra.mxu0 %v5978
        %6021 = vmatprep.subr.bf16.mxu0 0
        %6022 = vmatpush1.bf16.msra.mxu0 %v5979
        %6023 = vmatprep.subr.bf16.mxu0 0
        %6024 = vmatpush1.bf16.msra.mxu0 %v5980
        %6025 = vmatprep.subr.bf16.mxu0 0
        %6026 = vmatpush1.bf16.msra.mxu0 %v5981
        %6027 = vmatprep.subr.bf16.mxu0 0
        %6028 = vmatpush1.bf16.msra.mxu0 %v5982
        %6029 = vmatprep.subr.bf16.mxu0 0
        %6030 = vmatpush1.bf16.msra.mxu0 %v5983
        %6031 = vmatprep.subr.bf16.mxu0 0
        %6032 = vmatpush1.bf16.msra.mxu0 %v5984
        %6033 = vmatprep.mubr.bf16.mxu0 %v5902
        %6034 = vmatmul.mubr.bf16.gmra.mrb[0].mxu0 %v5901
        %v6035 = vpop.f32.mrb[0].mxu0
        %v6036 = vadd.f32 0.0, %v6035
        %v6037 = vpop.f32.mrb[0].mxu0
        %v6038 = vpop.f32.mrb[0].mxu0
        %v6039 = vpop.f32.mrb[0].mxu0
        %6040 = vdwg.mxu0
        %v6041 = vadd.f32 %v5861, %v6036
        %s6042 = scalar_lea.vmem %s9, 384
        %v6043 = vld [vmem:[%s6042] sm:$0xf]
        %v6044 = vld [vmem:[%s6042 + $0x4] sm:$0xf]
        %v6045 = vld [vmem:[%s6042 + $0x8] sm:$0xf]
        %v6046 = vld [vmem:[%s6042 + $0xc] sm:$0xf]
        %v6047 = vld [vmem:[%s6042 + $0x10] sm:$0xf]
        %v6048 = vld [vmem:[%s6042 + $0x14] sm:$0xf]
        %v6049 = vld [vmem:[%s6042 + $0x18] sm:$0xf]
        %v6050 = vld [vmem:[%s6042 + $0x1c] sm:$0xf]
        %v6051 = vld [vmem:[%s6042 + $0x20] sm:$0xf]
        %v6052 = vld [vmem:[%s6042 + $0x24] sm:$0xf]
        %v6053 = vld [vmem:[%s6042 + $0x28] sm:$0xf]
        %v6054 = vld [vmem:[%s6042 + $0x2c] sm:$0xf]
        %v6055 = vld [vmem:[%s6042 + $0x30] sm:$0xf]
        %v6056 = vld [vmem:[%s6042 + $0x34] sm:$0xf]
        %v6057 = vld [vmem:[%s6042 + $0x38] sm:$0xf]
        %v6058 = vld [vmem:[%s6042 + $0x3c] sm:$0xf]
        %v6059 = vld [vmem:[%s6042 + $0x40] sm:$0xf]
        %v6060 = vld [vmem:[%s6042 + $0x44] sm:$0xf]
        %v6061 = vld [vmem:[%s6042 + $0x48] sm:$0xf]
        %v6062 = vld [vmem:[%s6042 + $0x4c] sm:$0xf]
        %v6063 = vld [vmem:[%s6042 + $0x50] sm:$0xf]
        %v6064 = vld [vmem:[%s6042 + $0x54] sm:$0xf]
        %v6065 = vld [vmem:[%s6042 + $0x58] sm:$0xf]
        %v6066 = vld [vmem:[%s6042 + $0x5c] sm:$0xf]
        %v6067 = vld [vmem:[%s6042 + $0x60] sm:$0xf]
        %v6068 = vld [vmem:[%s6042 + $0x64] sm:$0xf]
        %v6069 = vld [vmem:[%s6042 + $0x68] sm:$0xf]
        %v6070 = vld [vmem:[%s6042 + $0x6c] sm:$0xf]
        %v6071 = vld [vmem:[%s6042 + $0x70] sm:$0xf]
        %v6072 = vld [vmem:[%s6042 + $0x74] sm:$0xf]
        %v6073 = vld [vmem:[%s6042 + $0x78] sm:$0xf]
        %v6074 = vld [vmem:[%s6042 + $0x7c] sm:$0xf]
        %v6075 = vrot.slane %v5587, 1
        %v6076 = vrot.slane %v5590, 1
        %v6111 = vunpack.c.l.b16 %v6043
        %v6112 = vunpack.c.l.b16 %v6044
        %v6113 = vunpack.c.l.b16 %v6045
        %v6114 = vunpack.c.l.b16 %v6046
        %v6115 = vunpack.c.l.b16 %v6047
        %v6116 = vunpack.c.l.b16 %v6048
        %v6117 = vunpack.c.l.b16 %v6049
        %v6118 = vunpack.c.l.b16 %v6050
        %v6119 = vunpack.c.l.b16 %v6051
        %v6120 = vunpack.c.l.b16 %v6052
        %v6121 = vunpack.c.l.b16 %v6053
        %v6122 = vunpack.c.l.b16 %v6054
        %v6123 = vunpack.c.l.b16 %v6055
        %v6124 = vunpack.c.l.b16 %v6056
        %v6125 = vunpack.c.l.b16 %v6057
        %v6126 = vunpack.c.l.b16 %v6058
        %v6127 = vunpack.c.l.b16 %v6059
        %v6128 = vunpack.c.l.b16 %v6060
        %v6129 = vunpack.c.l.b16 %v6061
        %v6130 = vunpack.c.l.b16 %v6062
        %v6131 = vunpack.c.l.b16 %v6063
        %v6132 = vunpack.c.l.b16 %v6064
        %v6133 = vunpack.c.l.b16 %v6065
        %v6134 = vunpack.c.l.b16 %v6066
        %v6135 = vunpack.c.l.b16 %v6067
        %v6136 = vunpack.c.l.b16 %v6068
        %v6137 = vunpack.c.l.b16 %v6069
        %v6138 = vunpack.c.l.b16 %v6070
        %v6139 = vunpack.c.l.b16 %v6071
        %v6140 = vunpack.c.l.b16 %v6072
        %v6141 = vunpack.c.l.b16 %v6073
        %v6142 = vunpack.c.l.b16 %v6074
        %v6143 = vpack.c.b16 %v6112, %v6111
        %v6144 = vpack.c.b16 %v6114, %v6113
        %v6145 = vpack.c.b16 %v6116, %v6115
        %v6146 = vpack.c.b16 %v6118, %v6117
        %v6147 = vpack.c.b16 %v6120, %v6119
        %v6148 = vpack.c.b16 %v6122, %v6121
        %v6149 = vpack.c.b16 %v6124, %v6123
        %v6150 = vpack.c.b16 %v6126, %v6125
        %v6151 = vpack.c.b16 %v6128, %v6127
        %v6152 = vpack.c.b16 %v6130, %v6129
        %v6153 = vpack.c.b16 %v6132, %v6131
        %v6154 = vpack.c.b16 %v6134, %v6133
        %v6155 = vpack.c.b16 %v6136, %v6135
        %v6156 = vpack.c.b16 %v6138, %v6137
        %v6157 = vpack.c.b16 %v6140, %v6139
        %v6158 = vpack.c.b16 %v6142, %v6141
        %6175 = vmatprep.subr.bf16.mxu0 0
        %6176 = vmatpush1.bf16.msra.mxu0 %v6143
        %6177 = vmatprep.subr.bf16.mxu0 0
        %6178 = vmatpush1.bf16.msra.mxu0 %v6144
        %6179 = vmatprep.subr.bf16.mxu0 0
        %6180 = vmatpush1.bf16.msra.mxu0 %v6145
        %6181 = vmatprep.subr.bf16.mxu0 0
        %6182 = vmatpush1.bf16.msra.mxu0 %v6146
        %6183 = vmatprep.subr.bf16.mxu0 0
        %6184 = vmatpush1.bf16.msra.mxu0 %v6147
        %6185 = vmatprep.subr.bf16.mxu0 0
        %6186 = vmatpush1.bf16.msra.mxu0 %v6148
        %6187 = vmatprep.subr.bf16.mxu0 0
        %6188 = vmatpush1.bf16.msra.mxu0 %v6149
        %6189 = vmatprep.subr.bf16.mxu0 0
        %6190 = vmatpush1.bf16.msra.mxu0 %v6150
        %6191 = vmatprep.subr.bf16.mxu0 0
        %6192 = vmatpush1.bf16.msra.mxu0 %v6151
        %6193 = vmatprep.subr.bf16.mxu0 0
        %6194 = vmatpush1.bf16.msra.mxu0 %v6152
        %6195 = vmatprep.subr.bf16.mxu0 0
        %6196 = vmatpush1.bf16.msra.mxu0 %v6153
        %6197 = vmatprep.subr.bf16.mxu0 0
        %6198 = vmatpush1.bf16.msra.mxu0 %v6154
        %6199 = vmatprep.subr.bf16.mxu0 0
        %6200 = vmatpush1.bf16.msra.mxu0 %v6155
        %6201 = vmatprep.subr.bf16.mxu0 0
        %6202 = vmatpush1.bf16.msra.mxu0 %v6156
        %6203 = vmatprep.subr.bf16.mxu0 0
        %6204 = vmatpush1.bf16.msra.mxu0 %v6157
        %6205 = vmatprep.subr.bf16.mxu0 0
        %6206 = vmatpush1.bf16.msra.mxu0 %v6158
        %6207 = vmatprep.mubr.bf16.mxu0 %v6076
        %6208 = vmatmul.mubr.bf16.gmra.mrb[0].mxu0 %v6075
        %v6209 = vpop.f32.mrb[0].mxu0
        %v6210 = vadd.f32 0.0, %v6209
        %v6211 = vpop.f32.mrb[0].mxu0
        %v6212 = vpop.f32.mrb[0].mxu0
        %v6213 = vpop.f32.mrb[0].mxu0
        %6214 = vdwg.mxu0
        %v6215 = vadd.f32 %v6041, %v6210
        %v6216 = vld [vmem:[%s10] sm:$0x1]
        %v6217 = vadd.f32 %v6215, %v6216
        %v6218 = vmax.f32 %v6217, 0.0
        %v6219 = vpack.c.bf16 %v6218, %v6218
        %v6220 = vld [vmem:[%s11] sm:$0xf]
        %v6221 = vld [vmem:[%s11 + $0x4] sm:$0xf]
        %v6222 = vld [vmem:[%s11 + $0x8] sm:$0xf]
        %v6223 = vld [vmem:[%s11 + $0xc] sm:$0xf]
        %v6224 = vld [vmem:[%s11 + $0x10] sm:$0xf]
        %v6225 = vld [vmem:[%s11 + $0x14] sm:$0xf]
        %v6226 = vld [vmem:[%s11 + $0x18] sm:$0xf]
        %v6227 = vld [vmem:[%s11 + $0x1c] sm:$0xf]
        %v6228 = vld [vmem:[%s11 + $0x20] sm:$0xf]
        %v6229 = vld [vmem:[%s11 + $0x24] sm:$0xf]
        %v6230 = vld [vmem:[%s11 + $0x28] sm:$0xf]
        %v6231 = vld [vmem:[%s11 + $0x2c] sm:$0xf]
        %v6232 = vld [vmem:[%s11 + $0x30] sm:$0xf]
        %v6233 = vld [vmem:[%s11 + $0x34] sm:$0xf]
        %v6234 = vld [vmem:[%s11 + $0x38] sm:$0xf]
        %v6235 = vld [vmem:[%s11 + $0x3c] sm:$0xf]
        %v6236 = vld [vmem:[%s12] sm:$0x1]
        %v6253 = vunpack.c.l.b16 %v6220
        %v6254 = vunpack.c.l.b16 %v6221
        %v6255 = vunpack.c.l.b16 %v6222
        %v6256 = vunpack.c.l.b16 %v6223
        %v6257 = vunpack.c.l.b16 %v6224
        %v6258 = vunpack.c.l.b16 %v6225
        %v6259 = vunpack.c.l.b16 %v6226
        %v6260 = vunpack.c.l.b16 %v6227
        %v6261 = vunpack.c.l.b16 %v6228
        %v6262 = vunpack.c.l.b16 %v6229
        %v6263 = vunpack.c.l.b16 %v6230
        %v6264 = vunpack.c.l.b16 %v6231
        %v6265 = vunpack.c.l.b16 %v6232
        %v6266 = vunpack.c.l.b16 %v6233
        %v6267 = vunpack.c.l.b16 %v6234
        %v6268 = vunpack.c.l.b16 %v6235
        %v6269 = vpack.c.b16 %v6254, %v6253
        %v6270 = vpack.c.b16 %v6256, %v6255
        %v6271 = vpack.c.b16 %v6258, %v6257
        %v6272 = vpack.c.b16 %v6260, %v6259
        %v6273 = vpack.c.b16 %v6262, %v6261
        %v6274 = vpack.c.b16 %v6264, %v6263
        %v6275 = vpack.c.b16 %v6266, %v6265
        %v6276 = vpack.c.b16 %v6268, %v6267
        %6285 = vmatprep.subr.bf16.mxu0 0
        %6286 = vmatpush1.bf16.msra.mxu0 %v6269
        %6287 = vmatprep.subr.bf16.mxu0 0
        %6288 = vmatpush1.bf16.msra.mxu0 %v6270
        %6289 = vmatprep.subr.bf16.mxu0 0
        %6290 = vmatpush1.bf16.msra.mxu0 %v6271
        %6291 = vmatprep.subr.bf16.mxu0 0
        %6292 = vmatpush1.bf16.msra.mxu0 %v6272
        %6293 = vmatprep.subr.bf16.mxu0 0
        %6294 = vmatpush1.bf16.msra.mxu0 %v6273
        %6295 = vmatprep.subr.bf16.mxu0 0
        %6296 = vmatpush1.bf16.msra.mxu0 %v6274
        %6297 = vmatprep.subr.bf16.mxu0 0
        %6298 = vmatpush1.bf16.msra.mxu0 %v6275
        %6299 = vmatprep.subr.bf16.mxu0 0
        %6300 = vmatpush1.bf16.msra.mxu0 %v6276
        %6301 = vmatprep.subr.bf16.mxu0 0
        %6302 = vmatpush1.bf16.msra.mxu0 0
        %6303 = vmatprep.subr.bf16.mxu0 0
        %6304 = vmatpush1.bf16.msra.mxu0 0
        %6305 = vmatprep.subr.bf16.mxu0 0
        %6306 = vmatpush1.bf16.msra.mxu0 0
        %6307 = vmatprep.subr.bf16.mxu0 0
        %6308 = vmatpush1.bf16.msra.mxu0 0
        %6309 = vmatprep.subr.bf16.mxu0 0
        %6310 = vmatpush1.bf16.msra.mxu0 0
        %6311 = vmatprep.subr.bf16.mxu0 0
        %6312 = vmatpush1.bf16.msra.mxu0 0
        %6313 = vmatprep.subr.bf16.mxu0 0
        %6314 = vmatpush1.bf16.msra.mxu0 0
        %6315 = vmatprep.subr.bf16.mxu0 0
        %6316 = vmatpush1.bf16.msra.mxu0 0
        %6317 = vmatprep.mubr.bf16.mxu0 0
        %6318 = vmatmul.mubr.bf16.gmra.mrb[0].mxu0 %v6219
        %v6319 = vpop.f32.mrb[0].mxu0
        %v6320 = vadd.f32 %v6236, %v6319
        %v6321 = vpop.f32.mrb[0].mxu0
        %v6322 = vpop.f32.mrb[0].mxu0
        %v6323 = vpop.f32.mrb[0].mxu0
        %6324 = vdwg.mxu0
        %6325 = vst [vmem:[%s480] sm:$0x1] %v6320
        %p6326 = scmp.lt.s32.totalorder %s26, 1
        %s6327 = scalar_select %p6326, %s26, 1
        %s6328 = scalar_lea.vmem %s13, %s6327
        // Predicated region
        $region85: #{encoder_forward.1} parent=71 // pred_check
          %p6329 = pneg %p322
        $region86: #{encoder_forward.1} parent=71 // pred_check_branch
          %6331 = sbr.rel (%p6329) target = $region88
        $region87: #{encoder_forward.1} parent=71 // pred_region
          _
        $region88: #{encoder_forward.1} parent=71 // pred_fallthru
          _
      $region72: #{encoder_forward.1} parent=5 // pred_fallthru
        _
      %p6332 = scmp.le.s32.totalorder 2, %s21
      // Predicated region
      $region89: #{encoder_forward.1} parent=5 // pred_check
        %p6333 = pneg %p6332
      $region90: #{encoder_forward.1} parent=5 // pred_check_branch
        %6335 = sbr.rel (%p6333) target = $region92
      $region91: #{encoder_forward.1} parent=5 // pred_region
        %s6336 = ssub.s32 %s21, 2
        // Predicated region
        $region93: #{encoder_forward.1} parent=91 // pred_check
          %p6337 = pneg %p328
        $region94: #{encoder_forward.1} parent=91 // pred_check_branch
          %6339 = sbr.rel (%p6337) target = $region96
        $region95: #{encoder_forward.1} parent=91 // pred_region
          %p6340 = scmp.lt.s32.totalorder %s27, 1
          %s6341 = scalar_select %p6340, %s27, 1
          %s6342 = scalar_lea.vmem %s13, %s6341
        $region96: #{encoder_forward.1} parent=91 // pred_fallthru
          _
      $region92: #{encoder_forward.1} parent=5 // pred_fallthru
        _
    $region6: #{encoder_forward.1} parent=1 // loop_footer
      %s25 = sadd.s32 1, %s21
    $region7: #{encoder_forward.1} parent=1 // loop_footer_branch
      %20 = sbr.rel target = $region3
    $region8: #{encoder_forward.1} parent=1 // loop_exit
      _
    %6343 = vsyncpa [#allocation7], 1
    %s6344 = scalar_lea.sflag [#allocation7], 1
    %6345 = vsyncpa %s6344, 1
    %6346 = vsyncpa [#allocation9], 1

</llo_original>
